<compile_context>
chip_gen: v6e
topology: v6e:2x2x1
jax: 0.10.0
libtpu: 0.0.40
codegen_flags: <defaults>
</compile_context>

<pallas_src>
import jax
import jax.numpy as jnp
import numpy as np
from jax.experimental import pallas as pl
from jax.experimental.pallas import tpu as pltpu

# ---- model config (small, consistent with the module) ----------------------
BATCH = 2
SEQ = 8
INPUT_SIZE = 16
HIDDEN = 32
NUM_LAYERS = 2
NUM_CLASSES = 4
EPS = 1e-5
BPAD = 8                       # batch rows padded to one sublane tile


def _full_spec(shape):
    nd = len(shape)
    return pl.BlockSpec(shape, lambda *_: (0,) * nd)


# ---------------------------------------------------------------------------
# Single fused kernel: 2-layer bidirectional LSTM + attention + MLP head.
# ---------------------------------------------------------------------------
def _fused_kernel(x_ref,
                  pf0_ref, pf1_ref, pb0_ref, pb1_ref,
                  w0f_ref, w0b_ref, whh0_ref, b0_ref,
                  m1_ref, n1_ref, whh1_ref, b1_ref,
                  wa1_ref, ba1_ref, wa2_ref, ba2_ref,
                  wf1_ref, bf1_ref, wf2_ref, bf2_ref, wf3_ref, bf3_ref,
                  o_ref):
    H = HIDDEN
    S = SEQ
    Bp = BPAD
    f32 = jnp.float32
    bf16 = jnp.bfloat16

    def dot32(a, b):
        return jnp.dot(a, b, preferred_element_type=f32)

    def run_layer(in_a, in_b, wx, wy, whh, bias):
        # in_a / in_b: (S*Bp, Din) bf16.  Row block t of in_a feeds the fwd gate
        # columns at step t; row block t of in_b (reversed-time stacking) feeds
        # the bwd gate columns at step t.  Gate columns are interleaved
        # [i_f i_b | f_f f_b | o_f o_b | g_f g_b] (each chunk H wide).
        xp = dot32(in_a, wx) + dot32(in_b, wy) + bias          # (S*Bp, 8H) f32, hoisted
        h = jnp.zeros((Bp, 2 * H), f32)                        # [h_f | h_b]
        c = jnp.zeros((Bp, 2 * H), f32)                        # [c_f | c_b]
        outs = [None] * S
        for t in range(S):                                     # fully unrolled, static
            g = xp[t * Bp:(t + 1) * Bp, :] + dot32(h.astype(bf16), whh)
            sg = jax.nn.sigmoid(g[:, 0:6 * H])                 # i,f,o both dirs: one EUP chain
            gg = jnp.tanh(g[:, 6 * H:8 * H])                   # g both dirs
            c = sg[:, 2 * H:4 * H] * c + sg[:, 0:2 * H] * gg
            h = sg[:, 4 * H:6 * H] * jnp.tanh(c)               # = [h_f(t) | h_b(S-1-t)]
            outs[t] = h
        a_fwd = jnp.concatenate(outs, axis=0)                  # (S*Bp, 2H), step order
        a_rev = jnp.concatenate(outs[::-1], axis=0)            # reversed step order
        return a_fwd, a_rev

    # ---- layer-0 input: time-major, batch padded to 8, fwd + time-reversed ----
    x0 = x_ref[0].astype(bf16)                                 # (S, D): rows are time (batch 0)
    x1 = x_ref[1].astype(bf16)
    xf = dot32(pf0_ref[...], x0) + dot32(pf1_ref[...], x1)     # (S*Bp, D) fwd time order
    xb = dot32(pb0_ref[...], x0) + dot32(pb1_ref[...], x1)     # (S*Bp, D) reversed time order

    a0, a0r = run_layer(xf.astype(bf16), xb.astype(bf16),
                        w0f_ref[...], w0b_ref[...], whh0_ref[...], b0_ref[...])
    a1, a1r = run_layer(a0.astype(bf16), a0r.astype(bf16),
                        m1_ref[...], n1_ref[...], whh1_ref[...], b1_ref[...])

    # lstm_out(t) = [h1_f(t) | h1_b(t)]  (single hoisted lane concat)
    F = jnp.concatenate([a1[:, 0:H], a1r[:, H:2 * H]], axis=-1)        # (S*Bp, 2H) f32

    # ---- attention: Linear(2H,H) -> Tanh -> Linear(H,1) -> Softmax over seq ----
    att = jnp.tanh(dot32(F.astype(bf16), wa1_ref[...]) + ba1_ref[...])  # (S*Bp, H)
    scores = jnp.sum(att * wa2_ref[...], axis=-1, keepdims=True) + ba2_ref[...]
    # All slabs below are (Bp,1)/(Bp,2H) tile-aligned views (Bp=8).
    sc = [scores[t * Bp:(t + 1) * Bp, :] for t in range(S)]
    m = sc[0]
    for t in range(1, S):
        m = jnp.maximum(m, sc[t])
    es = [jnp.exp(s - m) for s in sc]
    den = es[0]
    for t in range(1, S):
        den = den + es[t]
    inv = pl.reciprocal(den, approx=True)                      # (Bp, 1), EUP
    ctx = (es[0] * inv) * F[0:Bp, :]
    for t in range(1, S):
        ctx = ctx + (es[t] * inv) * F[t * Bp:(t + 1) * Bp, :]  # (Bp, 2H)

    # ---- fc1(+bn1 folded)+relu -> fc2(+bn2 folded)+relu -> (residual) -> fc3 ----
    o1 = jnp.maximum(dot32(ctx.astype(bf16), wf1_ref[...]) + bf1_ref[...], 0.0)
    o2 = jnp.maximum(dot32(o1.astype(bf16), wf2_ref[...]) + bf2_ref[...], 0.0)
    if o1.shape[-1] == o2.shape[-1]:          # static: false for H=32 -> H//2=16
        o2 = o2 + o1
    logits = dot32(o2.astype(bf16), wf3_ref[...]) + bf3_ref[...]        # (Bp, C)
    o_ref[...] = logits[0:BATCH, :]


# ---------------------------------------------------------------------------
# Parameters (deterministic, synthetic; PyTorch-shaped)
# ---------------------------------------------------------------------------
def init_params(key):
    keys = iter(jax.random.split(key, 64))

    def nrm(shape, s=0.1):
        return jax.random.normal(next(keys), shape, dtype=jnp.float32) * s

    def uni(shape, lo, hi):
        return jax.random.uniform(next(keys), shape, dtype=jnp.float32, minval=lo, maxval=hi)

    p = {}
    p['ibn_g'] = uni((INPUT_SIZE,), 0.8, 1.2)
    p['ibn_b'] = nrm((INPUT_SIZE,))
    p['ibn_m'] = nrm((INPUT_SIZE,))
    p['ibn_v'] = uni((INPUT_SIZE,), 0.5, 1.5)

    layers = []
    for l in range(NUM_LAYERS):
        din = INPUT_SIZE if l == 0 else 2 * HIDDEN
        lp = {}
        for d in ('f', 'b'):
            lp[f'wih_{d}'] = nrm((4 * HIDDEN, din))
            lp[f'whh_{d}'] = nrm((4 * HIDDEN, HIDDEN))
            lp[f'bih_{d}'] = nrm((4 * HIDDEN,))
            lp[f'bhh_{d}'] = nrm((4 * HIDDEN,))
        layers.append(lp)
    p['lstm'] = layers

    H, H2, C = HIDDEN, HIDDEN // 2, NUM_CLASSES
    p['wa1'] = nrm((H, 2 * H)); p['ba1'] = nrm((H,))
    p['wa2'] = nrm((1, H));     p['ba2'] = nrm((1,))
    p['wf1'] = nrm((H, 2 * H)); p['bf1'] = nrm((H,))
    p['bn1_g'] = uni((H,), 0.8, 1.2); p['bn1_b'] = nrm((H,))
    p['bn1_m'] = nrm((H,));           p['bn1_v'] = uni((H,), 0.5, 1.5)
    p['wf2'] = nrm((H2, H)); p['bf2'] = nrm((H2,))
    p['bn2_g'] = uni((H2,), 0.8, 1.2); p['bn2_b'] = nrm((H2,))
    p['bn2_m'] = nrm((H2,));           p['bn2_v'] = uni((H2,), 0.5, 1.5)
    p['wf3'] = nrm((C, H2)); p['bf3'] = nrm((C,))
    return p


def _bn_scale_shift(g, b, m, v):
    s = g / jnp.sqrt(v + EPS)
    return s, b - m * s


# PyTorch gate row ranges [i, f, g, o] -> kernel gate index k (0=i,1=f,2=o,3=g)
_PT_ROWS = {0: (0, HIDDEN),
            1: (HIDDEN, 2 * HIDDEN),
            2: (3 * HIDDEN, 4 * HIDDEN),
            3: (2 * HIDDEN, 3 * HIDDEN)}


def _gate_cols(k, d):
    # interleaved column layout: [i_f i_b | f_f f_b | o_f o_b | g_f g_b]
    return 2 * k * HIDDEN + d * HIDDEN


def _dir_input_proj(wih_d, d):
    """(4H, Din) torch weight -> (Din, 8H) with only this direction's gate cols filled."""
    din = wih_d.shape[1]
    w = np.zeros((din, 8 * HIDDEN), np.float32)
    wn = np.asarray(wih_d)
    for k in range(4):
        r0, r1 = _PT_ROWS[k]
        c0 = _gate_cols(k, d)
        w[:, c0:c0 + HIDDEN] = wn[r0:r1, :].T
    return w


def _rec_proj(whh_f, whh_b):
    """Packed (2H, 8H) recurrent weight: rows 0:H = h_f -> fwd cols, rows H:2H = h_b -> bwd cols."""
    w = np.zeros((2 * HIDDEN, 8 * HIDDEN), np.float32)
    for d, whh_d in enumerate((whh_f, whh_b)):
        wn = np.asarray(whh_d)
        for k in range(4):
            r0, r1 = _PT_ROWS[k]
            c0 = _gate_cols(k, d)
            w[d * HIDDEN:(d + 1) * HIDDEN, c0:c0 + HIDDEN] = wn[r0:r1, :].T
    return w


def _dir_bias(bih_d, bhh_d, d):
    b = np.zeros((8 * HIDDEN,), np.float32)
    tot = np.asarray(bih_d) + np.asarray(bhh_d)
    for k in range(4):
        r0, r1 = _PT_ROWS[k]
        c0 = _gate_cols(k, d)
        b[c0:c0 + HIDDEN] = tot[r0:r1]
    return b


def _layer1_in_proj(wih_f, wih_b):
    """Layer-1 input weights packed so that xp1 = A0 @ M + A0rev @ N, where A0 row
    block t = [h0_f(t) | h0_b(S-1-t)] (the layer-0 per-step h_cat in step order)."""
    H = HIDDEN
    wf = np.asarray(wih_f)          # (4H, 2H): cols 0:H act on h_f, H:2H on h_b
    wb = np.asarray(wih_b)
    m = np.zeros((2 * H, 8 * H), np.float32)
    n = np.zeros((2 * H, 8 * H), np.float32)
    for k in range(4):
        r0, r1 = _PT_ROWS[k]
        cf = _gate_cols(k, 0)
        cb = _gate_cols(k, 1)
        m[0:H, cf:cf + H] = wf[r0:r1, 0:H].T        # h0_f(t)      -> fwd gates
        m[H:2 * H, cb:cb + H] = wb[r0:r1, H:2 * H].T  # h0_b(S-1-t) -> bwd gates
        n[0:H, cb:cb + H] = wb[r0:r1, 0:H].T        # h0_f(S-1-t)  -> bwd gates
        n[H:2 * H, cf:cf + H] = wf[r0:r1, H:2 * H].T  # h0_b(t)     -> fwd gates
    return m, n


def pack_params(p):
    """Run ONCE (host side): folds BNs, reorders/interleaves gates, builds the
    constant time-major scatter matrices, casts matmul operands to bf16."""
    H, H2, C, D = HIDDEN, HIDDEN // 2, NUM_CLASSES, INPUT_SIZE
    S, B, Bp = SEQ, BATCH, BPAD
    f32, bf16 = jnp.float32, jnp.bfloat16

    # constant permutation/padding matrices: row t*Bp+b of (Pf_b @ x[b]) = x[b, t]
    pf = np.zeros((B, S * Bp, S), np.float32)
    pb = np.zeros((B, S * Bp, S), np.float32)
    for b in range(B):
        for t in range(S):
            pf[b, t * Bp + b, t] = 1.0
            pb[b, t * Bp + b, S - 1 - t] = 1.0

    ibn_s, ibn_sh = _bn_scale_shift(p['ibn_g'], p['ibn_b'], p['ibn_m'], p['ibn_v'])
    ibn_s, ibn_sh = np.asarray(ibn_s), np.asarray(ibn_sh)

    l0 = p['lstm'][0]
    w0f = _dir_input_proj(l0['wih_f'], 0)
    w0b = _dir_input_proj(l0['wih_b'], 1)
    b0 = _dir_bias(l0['bih_f'], l0['bhh_f'], 0) + _dir_bias(l0['bih_b'], l0['bhh_b'], 1)
    b0 = b0 + ibn_sh @ w0f + ibn_sh @ w0b          # fold BN shift (uses unscaled W)
    w0f = ibn_s[:, None] * w0f                     # fold BN scale
    w0b = ibn_s[:, None] * w0b
    whh0 = _rec_proj(l0['whh_f'], l0['whh_b'])

    l1 = p['lstm'][1]
    m1, n1 = _layer1_in_proj(l1['wih_f'], l1['wih_b'])
    b1 = _dir_bias(l1['bih_f'], l1['bhh_f'], 0) + _dir_bias(l1['bih_b'], l1['bhh_b'], 1)
    whh1 = _rec_proj(l1['whh_f'], l1['whh_b'])

    bn1s, bn1b = _bn_scale_shift(p['bn1_g'], p['bn1_b'], p['bn1_m'], p['bn1_v'])
    bn2s, bn2b = _bn_scale_shift(p['bn2_g'], p['bn2_b'], p['bn2_m'], p['bn2_v'])
    bn1s, bn1b, bn2s, bn2b = map(np.asarray, (bn1s, bn1b, bn2s, bn2b))

    packed = (
        jnp.asarray(pf[0], bf16), jnp.asarray(pf[1], bf16),
        jnp.asarray(pb[0], bf16), jnp.asarray(pb[1], bf16),
        jnp.asarray(w0f, bf16), jnp.asarray(w0b, bf16),
        jnp.asarray(whh0, bf16), jnp.asarray(b0, f32).reshape(1, 8 * H),
        jnp.asarray(m1, bf16), jnp.asarray(n1, bf16),
        jnp.asarray(whh1, bf16), jnp.asarray(b1, f32).reshape(1, 8 * H),
        jnp.asarray(np.asarray(p['wa1']).T, bf16),
        jnp.asarray(p['ba1'], f32).reshape(1, H),
        jnp.asarray(p['wa2'], f32).reshape(1, H),
        jnp.asarray(p['ba2'], f32).reshape(1, 1),
        jnp.asarray(np.asarray(p['wf1']).T * bn1s[None, :], bf16),
        jnp.asarray(np.asarray(p['bf1']) * bn1s + bn1b, f32).reshape(1, H),
        jnp.asarray(np.asarray(p['wf2']).T * bn2s[None, :], bf16),
        jnp.asarray(np.asarray(p['bf2']) * bn2s + bn2b, f32).reshape(1, H2),
        jnp.asarray(np.asarray(p['wf3']).T, bf16),
        jnp.asarray(p['bf3'], f32).reshape(1, C),
    )
    return packed


# ---------------------------------------------------------------------------
# Full forward: a single Pallas call, nothing else in the jitted path.
# ---------------------------------------------------------------------------
@jax.jit
def forward(x, packed):
    args = (x,) + tuple(packed)
    return pl.pallas_call(
        _fused_kernel,
        out_shape=jax.ShapeDtypeStruct((BATCH, NUM_CLASSES), jnp.float32),
        grid=(1,),
        in_specs=[_full_spec(a.shape) for a in args],
        out_specs=_full_spec((BATCH, NUM_CLASSES)),
        compiler_params=pltpu.CompilerParams(dimension_semantics=("arbitrary",)),
    )(*args)


# ---------------------------------------------------------------------------
# Pure-JAX reference (for correctness check)
# ---------------------------------------------------------------------------
def reference(x, p):
    B, S, D = x.shape
    s, sh = _bn_scale_shift(p['ibn_g'], p['ibn_b'], p['ibn_m'], p['ibn_v'])
    h = x * s + sh
    for l in range(NUM_LAYERS):
        lp = p['lstm'][l]

        def run_dir(seq, wih, whh, b):
            def cell(carry, x_t):
                hh, cc = carry
                g = x_t @ wih.T + hh @ whh.T + b
                i, f, gg, o = jnp.split(g, 4, axis=-1)
                i, f, o = jax.nn.sigmoid(i), jax.nn.sigmoid(f), jax.nn.sigmoid(o)
                gg = jnp.tanh(gg)
                cc = f * cc + i * gg
                hh = o * jnp.tanh(cc)
                return (hh, cc), hh

            init = (jnp.zeros((B, HIDDEN), jnp.float32), jnp.zeros((B, HIDDEN), jnp.float32))
            _, outs = jax.lax.scan(cell, init, jnp.transpose(seq, (1, 0, 2)))
            return jnp.transpose(outs, (1, 0, 2))

        bf = lp['bih_f'] + lp['bhh_f']
        bb = lp['bih_b'] + lp['bhh_b']
        fwd = run_dir(h, lp['wih_f'], lp['whh_f'], bf)
        bwd = jnp.flip(run_dir(jnp.flip(h, 1), lp['wih_b'], lp['whh_b'], bb), 1)
        h = jnp.concatenate([fwd, bwd], axis=-1)

    a = jnp.tanh(h @ p['wa1'].T + p['ba1'])
    scores = (a @ p['wa2'].T + p['ba2'])[..., 0]
    w = jax.nn.softmax(scores, axis=1)
    context = jnp.sum(w[..., None] * h, axis=1)
    bn1s, bn1b = _bn_scale_shift(p['bn1_g'], p['bn1_b'], p['bn1_m'], p['bn1_v'])
    bn2s, bn2b = _bn_scale_shift(p['bn2_g'], p['bn2_b'], p['bn2_m'], p['bn2_v'])
    o1 = jnp.maximum((context @ p['wf1'].T + p['bf1']) * bn1s + bn1b, 0.0)
    o2 = jnp.maximum((o1 @ p['wf2'].T + p['bf2']) * bn2s + bn2b, 0.0)
    if o1.shape[-1] == o2.shape[-1]:
        o2 = o2 + o1
    return o2 @ p['wf3'].T + p['bf3']


if __name__ == "__main__":
    key = jax.random.PRNGKey(0)
    kx, kp = jax.random.split(key)
    x = jax.random.normal(kx, (BATCH, SEQ, INPUT_SIZE), dtype=jnp.float32)
    params = init_params(kp)

    # Packing happens ONCE, off the per-call path.
    packed = jax.block_until_ready(pack_params(params))

    out = jax.block_until_ready(forward(x, packed))
    ref = jax.block_until_ready(reference(x, params))

    assert out.shape == (BATCH, NUM_CLASSES)
    assert bool(jnp.all(jnp.isfinite(out)))
    assert bool(jnp.allclose(out, ref, atol=5e-2, rtol=5e-2))
    print("KERNEL_OK")
</pallas_src>

<mosaic_0001>
module attributes {stable_mosaic.version = 11 : i64} {
  func.func @_fused_kernel(%arg0: i32, %arg1: memref<2x8x16xf32, #tpu.memory_space<vmem>>, %arg2: memref<64x8xbf16, #tpu.memory_space<vmem>>, %arg3: memref<64x8xbf16, #tpu.memory_space<vmem>>, %arg4: memref<64x8xbf16, #tpu.memory_space<vmem>>, %arg5: memref<64x8xbf16, #tpu.memory_space<vmem>>, %arg6: memref<16x256xbf16, #tpu.memory_space<vmem>>, %arg7: memref<16x256xbf16, #tpu.memory_space<vmem>>, %arg8: memref<64x256xbf16, #tpu.memory_space<vmem>>, %arg9: memref<1x256xf32, #tpu.memory_space<vmem>>, %arg10: memref<64x256xbf16, #tpu.memory_space<vmem>>, %arg11: memref<64x256xbf16, #tpu.memory_space<vmem>>, %arg12: memref<64x256xbf16, #tpu.memory_space<vmem>>, %arg13: memref<1x256xf32, #tpu.memory_space<vmem>>, %arg14: memref<64x32xbf16, #tpu.memory_space<vmem>>, %arg15: memref<1x32xf32, #tpu.memory_space<vmem>>, %arg16: memref<1x32xf32, #tpu.memory_space<vmem>>, %arg17: memref<1x1xf32, #tpu.memory_space<vmem>>, %arg18: memref<64x32xbf16, #tpu.memory_space<vmem>>, %arg19: memref<1x32xf32, #tpu.memory_space<vmem>>, %arg20: memref<32x16xbf16, #tpu.memory_space<vmem>>, %arg21: memref<1x16xf32, #tpu.memory_space<vmem>>, %arg22: memref<16x4xbf16, #tpu.memory_space<vmem>>, %arg23: memref<1x4xf32, #tpu.memory_space<vmem>>, %arg24: memref<2x4xf32, #tpu.memory_space<vmem>>) attributes {dimension_semantics = [#tpu.dimension_semantics<arbitrary>], iteration_bounds = array<i64: 1>, scalar_prefetch = 0 : i64, scratch_operands = 0 : i64, tpu.core_type = #tpu.core_type<tc>, window_params = [{pipeline_mode = #tpu.pipeline_mode<synchronous>, transform_indices = @transform_0, window_bounds = array<i64: 2, 8, 16>}, {pipeline_mode = #tpu.pipeline_mode<synchronous>, transform_indices = @transform_1, window_bounds = array<i64: 64, 8>}, {pipeline_mode = #tpu.pipeline_mode<synchronous>, transform_indices = @transform_2, window_bounds = array<i64: 64, 8>}, {pipeline_mode = #tpu.pipeline_mode<synchronous>, transform_indices = @transform_3, window_bounds = array<i64: 64, 8>}, {pipeline_mode = #tpu.pipeline_mode<synchronous>, transform_indices = @transform_4, window_bounds = array<i64: 64, 8>}, {pipeline_mode = #tpu.pipeline_mode<synchronous>, transform_indices = @transform_5, window_bounds = array<i64: 16, 256>}, {pipeline_mode = #tpu.pipeline_mode<synchronous>, transform_indices = @transform_6, window_bounds = array<i64: 16, 256>}, {pipeline_mode = #tpu.pipeline_mode<synchronous>, transform_indices = @transform_7, window_bounds = array<i64: 64, 256>}, {pipeline_mode = #tpu.pipeline_mode<synchronous>, transform_indices = @transform_8, window_bounds = array<i64: 1, 256>}, {pipeline_mode = #tpu.pipeline_mode<synchronous>, transform_indices = @transform_9, window_bounds = array<i64: 64, 256>}, {pipeline_mode = #tpu.pipeline_mode<synchronous>, transform_indices = @transform_10, window_bounds = array<i64: 64, 256>}, {pipeline_mode = #tpu.pipeline_mode<synchronous>, transform_indices = @transform_11, window_bounds = array<i64: 64, 256>}, {pipeline_mode = #tpu.pipeline_mode<synchronous>, transform_indices = @transform_12, window_bounds = array<i64: 1, 256>}, {pipeline_mode = #tpu.pipeline_mode<synchronous>, transform_indices = @transform_13, window_bounds = array<i64: 64, 32>}, {pipeline_mode = #tpu.pipeline_mode<synchronous>, transform_indices = @transform_14, window_bounds = array<i64: 1, 32>}, {pipeline_mode = #tpu.pipeline_mode<synchronous>, transform_indices = @transform_15, window_bounds = array<i64: 1, 32>}, {pipeline_mode = #tpu.pipeline_mode<synchronous>, transform_indices = @transform_16, window_bounds = array<i64: 1, 1>}, {pipeline_mode = #tpu.pipeline_mode<synchronous>, transform_indices = @transform_17, window_bounds = array<i64: 64, 32>}, {pipeline_mode = #tpu.pipeline_mode<synchronous>, transform_indices = @transform_18, window_bounds = array<i64: 1, 32>}, {pipeline_mode = #tpu.pipeline_mode<synchronous>, transform_indices = @transform_19, window_bounds = array<i64: 32, 16>}, {pipeline_mode = #tpu.pipeline_mode<synchronous>, transform_indices = @transform_20, window_bounds = array<i64: 1, 16>}, {pipeline_mode = #tpu.pipeline_mode<synchronous>, transform_indices = @transform_21, window_bounds = array<i64: 16, 4>}, {pipeline_mode = #tpu.pipeline_mode<synchronous>, transform_indices = @transform_22, window_bounds = array<i64: 1, 4>}, {pipeline_mode = #tpu.pipeline_mode<synchronous>, transform_indices = @transform_23, window_bounds = array<i64: 2, 4>}]} {
    %c0 = arith.constant 0 : index
    %c0_0 = arith.constant 0 : index
    %c0_1 = arith.constant 0 : index
    %0 = vector.load %arg1[%c0, %c0_0, %c0_1] : memref<2x8x16xf32, #tpu.memory_space<vmem>>, vector<1x8x16xf32>
    %1 = vector.shape_cast %0 : vector<1x8x16xf32> to vector<8x16xf32>
    %2 = arith.truncf %1 : vector<8x16xf32> to vector<8x16xbf16>
    %c1 = arith.constant 1 : index
    %c0_2 = arith.constant 0 : index
    %c0_3 = arith.constant 0 : index
    %3 = vector.load %arg1[%c1, %c0_2, %c0_3] : memref<2x8x16xf32, #tpu.memory_space<vmem>>, vector<1x8x16xf32>
    %4 = vector.shape_cast %3 : vector<1x8x16xf32> to vector<8x16xf32>
    %5 = arith.truncf %4 : vector<8x16xf32> to vector<8x16xbf16>
    %c0_4 = arith.constant 0 : index
    %c0_5 = arith.constant 0 : index
    %6 = vector.load %arg2[%c0_4, %c0_5] : memref<64x8xbf16, #tpu.memory_space<vmem>>, vector<64x8xbf16>
    %cst = arith.constant dense<0.000000e+00> : vector<64x16xf32>
    %7 = tpu.matmul %6, %2, %cst {dimension_numbers = #tpu.dot_dimension_numbers<[1], [0], [0], [1], [0, 0, 1, 1], [], []>} : vector<64x8xbf16>, vector<8x16xbf16>, vector<64x16xf32> -> vector<64x16xf32>
    %c0_6 = arith.constant 0 : index
    %c0_7 = arith.constant 0 : index
    %8 = vector.load %arg3[%c0_6, %c0_7] : memref<64x8xbf16, #tpu.memory_space<vmem>>, vector<64x8xbf16>
    %cst_8 = arith.constant dense<0.000000e+00> : vector<64x16xf32>
    %9 = tpu.matmul %8, %5, %cst_8 {dimension_numbers = #tpu.dot_dimension_numbers<[1], [0], [0], [1], [0, 0, 1, 1], [], []>} : vector<64x8xbf16>, vector<8x16xbf16>, vector<64x16xf32> -> vector<64x16xf32>
    %10 = arith.addf %7, %9 : vector<64x16xf32>
    %c0_9 = arith.constant 0 : index
    %c0_10 = arith.constant 0 : index
    %11 = vector.load %arg4[%c0_9, %c0_10] : memref<64x8xbf16, #tpu.memory_space<vmem>>, vector<64x8xbf16>
    %cst_11 = arith.constant dense<0.000000e+00> : vector<64x16xf32>
    %12 = tpu.matmul %11, %2, %cst_11 {dimension_numbers = #tpu.dot_dimension_numbers<[1], [0], [0], [1], [0, 0, 1, 1], [], []>} : vector<64x8xbf16>, vector<8x16xbf16>, vector<64x16xf32> -> vector<64x16xf32>
    %c0_12 = arith.constant 0 : index
    %c0_13 = arith.constant 0 : index
    %13 = vector.load %arg5[%c0_12, %c0_13] : memref<64x8xbf16, #tpu.memory_space<vmem>>, vector<64x8xbf16>
    %cst_14 = arith.constant dense<0.000000e+00> : vector<64x16xf32>
    %14 = tpu.matmul %13, %5, %cst_14 {dimension_numbers = #tpu.dot_dimension_numbers<[1], [0], [0], [1], [0, 0, 1, 1], [], []>} : vector<64x8xbf16>, vector<8x16xbf16>, vector<64x16xf32> -> vector<64x16xf32>
    %15 = arith.addf %12, %14 : vector<64x16xf32>
    %16 = arith.truncf %10 : vector<64x16xf32> to vector<64x16xbf16>
    %17 = arith.truncf %15 : vector<64x16xf32> to vector<64x16xbf16>
    %c0_15 = arith.constant 0 : index
    %c0_16 = arith.constant 0 : index
    %18 = vector.load %arg6[%c0_15, %c0_16] : memref<16x256xbf16, #tpu.memory_space<vmem>>, vector<16x256xbf16>
    %c0_17 = arith.constant 0 : index
    %c0_18 = arith.constant 0 : index
    %19 = vector.load %arg7[%c0_17, %c0_18] : memref<16x256xbf16, #tpu.memory_space<vmem>>, vector<16x256xbf16>
    %c0_19 = arith.constant 0 : index
    %c0_20 = arith.constant 0 : index
    %20 = vector.load %arg8[%c0_19, %c0_20] : memref<64x256xbf16, #tpu.memory_space<vmem>>, vector<64x256xbf16>
    %c0_21 = arith.constant 0 : index
    %c0_22 = arith.constant 0 : index
    %21 = vector.load %arg9[%c0_21, %c0_22] : memref<1x256xf32, #tpu.memory_space<vmem>>, vector<1x256xf32>
    %cst_23 = arith.constant dense<0.000000e+00> : vector<64x256xf32>
    %22 = tpu.matmul %16, %18, %cst_23 {dimension_numbers = #tpu.dot_dimension_numbers<[1], [0], [0], [1], [0, 0, 1, 1], [], []>} : vector<64x16xbf16>, vector<16x256xbf16>, vector<64x256xf32> -> vector<64x256xf32>
    %cst_24 = arith.constant dense<0.000000e+00> : vector<64x256xf32>
    %23 = tpu.matmul %17, %19, %cst_24 {dimension_numbers = #tpu.dot_dimension_numbers<[1], [0], [0], [1], [0, 0, 1, 1], [], []>} : vector<64x16xbf16>, vector<16x256xbf16>, vector<64x256xf32> -> vector<64x256xf32>
    %24 = arith.addf %22, %23 : vector<64x256xf32>
    %25 = vector.broadcast %21 : vector<1x256xf32> to vector<64x256xf32>
    %26 = arith.addf %24, %25 : vector<64x256xf32>
    %cst_25 = arith.constant 0.000000e+00 : f32
    %27 = vector.broadcast %cst_25 : f32 to vector<8x64xf32>
    %cst_26 = arith.constant 0.000000e+00 : f32
    %28 = vector.broadcast %cst_26 : f32 to vector<8x64xf32>
    %29 = vector.extract_strided_slice %26 {offsets = [0, 0], sizes = [8, 256], strides = [1, 1]} : vector<64x256xf32> to vector<8x256xf32>
    %30 = arith.truncf %27 : vector<8x64xf32> to vector<8x64xbf16>
    %cst_27 = arith.constant dense<0.000000e+00> : vector<8x256xf32>
    %31 = tpu.matmul %30, %20, %cst_27 {dimension_numbers = #tpu.dot_dimension_numbers<[1], [0], [0], [1], [0, 0, 1, 1], [], []>} : vector<8x64xbf16>, vector<64x256xbf16>, vector<8x256xf32> -> vector<8x256xf32>
    %32 = arith.addf %29, %31 : vector<8x256xf32>
    %33 = vector.extract_strided_slice %32 {offsets = [0, 0], sizes = [8, 192], strides = [1, 1]} : vector<8x256xf32> to vector<8x192xf32>
    %34 = arith.negf %33 : vector<8x192xf32>
    %35 = math.exp %34 : vector<8x192xf32>
    %cst_28 = arith.constant 1.000000e+00 : f32
    %36 = vector.broadcast %cst_28 : f32 to vector<8x192xf32>
    %37 = arith.addf %36, %35 : vector<8x192xf32>
    %38 = arith.divf %36, %37 : vector<8x192xf32>
    %39 = vector.extract_strided_slice %32 {offsets = [0, 192], sizes = [8, 64], strides = [1, 1]} : vector<8x256xf32> to vector<8x64xf32>
    %40 = math.tanh %39 : vector<8x64xf32>
    %41 = vector.extract_strided_slice %38 {offsets = [0, 64], sizes = [8, 64], strides = [1, 1]} : vector<8x192xf32> to vector<8x64xf32>
    %42 = arith.mulf %41, %28 : vector<8x64xf32>
    %43 = vector.extract_strided_slice %38 {offsets = [0, 0], sizes = [8, 64], strides = [1, 1]} : vector<8x192xf32> to vector<8x64xf32>
    %44 = arith.mulf %43, %40 : vector<8x64xf32>
    %45 = arith.addf %42, %44 : vector<8x64xf32>
    %46 = vector.extract_strided_slice %38 {offsets = [0, 128], sizes = [8, 64], strides = [1, 1]} : vector<8x192xf32> to vector<8x64xf32>
    %47 = math.tanh %45 : vector<8x64xf32>
    %48 = arith.mulf %46, %47 : vector<8x64xf32>
    %49 = vector.extract_strided_slice %26 {offsets = [8, 0], sizes = [8, 256], strides = [1, 1]} : vector<64x256xf32> to vector<8x256xf32>
    %50 = arith.truncf %48 : vector<8x64xf32> to vector<8x64xbf16>
    %cst_29 = arith.constant dense<0.000000e+00> : vector<8x256xf32>
    %51 = tpu.matmul %50, %20, %cst_29 {dimension_numbers = #tpu.dot_dimension_numbers<[1], [0], [0], [1], [0, 0, 1, 1], [], []>} : vector<8x64xbf16>, vector<64x256xbf16>, vector<8x256xf32> -> vector<8x256xf32>
    %52 = arith.addf %49, %51 : vector<8x256xf32>
    %53 = vector.extract_strided_slice %52 {offsets = [0, 0], sizes = [8, 192], strides = [1, 1]} : vector<8x256xf32> to vector<8x192xf32>
    %54 = arith.negf %53 : vector<8x192xf32>
    %55 = math.exp %54 : vector<8x192xf32>
    %cst_30 = arith.constant 1.000000e+00 : f32
    %56 = vector.broadcast %cst_30 : f32 to vector<8x192xf32>
    %57 = arith.addf %56, %55 : vector<8x192xf32>
    %58 = arith.divf %56, %57 : vector<8x192xf32>
    %59 = vector.extract_strided_slice %52 {offsets = [0, 192], sizes = [8, 64], strides = [1, 1]} : vector<8x256xf32> to vector<8x64xf32>
    %60 = math.tanh %59 : vector<8x64xf32>
    %61 = vector.extract_strided_slice %58 {offsets = [0, 64], sizes = [8, 64], strides = [1, 1]} : vector<8x192xf32> to vector<8x64xf32>
    %62 = arith.mulf %61, %45 : vector<8x64xf32>
    %63 = vector.extract_strided_slice %58 {offsets = [0, 0], sizes = [8, 64], strides = [1, 1]} : vector<8x192xf32> to vector<8x64xf32>
    %64 = arith.mulf %63, %60 : vector<8x64xf32>
    %65 = arith.addf %62, %64 : vector<8x64xf32>
    %66 = vector.extract_strided_slice %58 {offsets = [0, 128], sizes = [8, 64], strides = [1, 1]} : vector<8x192xf32> to vector<8x64xf32>
    %67 = math.tanh %65 : vector<8x64xf32>
    %68 = arith.mulf %66, %67 : vector<8x64xf32>
    %69 = vector.extract_strided_slice %26 {offsets = [16, 0], sizes = [8, 256], strides = [1, 1]} : vector<64x256xf32> to vector<8x256xf32>
    %70 = arith.truncf %68 : vector<8x64xf32> to vector<8x64xbf16>
    %cst_31 = arith.constant dense<0.000000e+00> : vector<8x256xf32>
    %71 = tpu.matmul %70, %20, %cst_31 {dimension_numbers = #tpu.dot_dimension_numbers<[1], [0], [0], [1], [0, 0, 1, 1], [], []>} : vector<8x64xbf16>, vector<64x256xbf16>, vector<8x256xf32> -> vector<8x256xf32>
    %72 = arith.addf %69, %71 : vector<8x256xf32>
    %73 = vector.extract_strided_slice %72 {offsets = [0, 0], sizes = [8, 192], strides = [1, 1]} : vector<8x256xf32> to vector<8x192xf32>
    %74 = arith.negf %73 : vector<8x192xf32>
    %75 = math.exp %74 : vector<8x192xf32>
    %cst_32 = arith.constant 1.000000e+00 : f32
    %76 = vector.broadcast %cst_32 : f32 to vector<8x192xf32>
    %77 = arith.addf %76, %75 : vector<8x192xf32>
    %78 = arith.divf %76, %77 : vector<8x192xf32>
    %79 = vector.extract_strided_slice %72 {offsets = [0, 192], sizes = [8, 64], strides = [1, 1]} : vector<8x256xf32> to vector<8x64xf32>
    %80 = math.tanh %79 : vector<8x64xf32>
    %81 = vector.extract_strided_slice %78 {offsets = [0, 64], sizes = [8, 64], strides = [1, 1]} : vector<8x192xf32> to vector<8x64xf32>
    %82 = arith.mulf %81, %65 : vector<8x64xf32>
    %83 = vector.extract_strided_slice %78 {offsets = [0, 0], sizes = [8, 64], strides = [1, 1]} : vector<8x192xf32> to vector<8x64xf32>
    %84 = arith.mulf %83, %80 : vector<8x64xf32>
    %85 = arith.addf %82, %84 : vector<8x64xf32>
    %86 = vector.extract_strided_slice %78 {offsets = [0, 128], sizes = [8, 64], strides = [1, 1]} : vector<8x192xf32> to vector<8x64xf32>
    %87 = math.tanh %85 : vector<8x64xf32>
    %88 = arith.mulf %86, %87 : vector<8x64xf32>
    %89 = vector.extract_strided_slice %26 {offsets = [24, 0], sizes = [8, 256], strides = [1, 1]} : vector<64x256xf32> to vector<8x256xf32>
    %90 = arith.truncf %88 : vector<8x64xf32> to vector<8x64xbf16>
    %cst_33 = arith.constant dense<0.000000e+00> : vector<8x256xf32>
    %91 = tpu.matmul %90, %20, %cst_33 {dimension_numbers = #tpu.dot_dimension_numbers<[1], [0], [0], [1], [0, 0, 1, 1], [], []>} : vector<8x64xbf16>, vector<64x256xbf16>, vector<8x256xf32> -> vector<8x256xf32>
    %92 = arith.addf %89, %91 : vector<8x256xf32>
    %93 = vector.extract_strided_slice %92 {offsets = [0, 0], sizes = [8, 192], strides = [1, 1]} : vector<8x256xf32> to vector<8x192xf32>
    %94 = arith.negf %93 : vector<8x192xf32>
    %95 = math.exp %94 : vector<8x192xf32>
    %cst_34 = arith.constant 1.000000e+00 : f32
    %96 = vector.broadcast %cst_34 : f32 to vector<8x192xf32>
    %97 = arith.addf %96, %95 : vector<8x192xf32>
    %98 = arith.divf %96, %97 : vector<8x192xf32>
    %99 = vector.extract_strided_slice %92 {offsets = [0, 192], sizes = [8, 64], strides = [1, 1]} : vector<8x256xf32> to vector<8x64xf32>
    %100 = math.tanh %99 : vector<8x64xf32>
    %101 = vector.extract_strided_slice %98 {offsets = [0, 64], sizes = [8, 64], strides = [1, 1]} : vector<8x192xf32> to vector<8x64xf32>
    %102 = arith.mulf %101, %85 : vector<8x64xf32>
    %103 = vector.extract_strided_slice %98 {offsets = [0, 0], sizes = [8, 64], strides = [1, 1]} : vector<8x192xf32> to vector<8x64xf32>
    %104 = arith.mulf %103, %100 : vector<8x64xf32>
    %105 = arith.addf %102, %104 : vector<8x64xf32>
    %106 = vector.extract_strided_slice %98 {offsets = [0, 128], sizes = [8, 64], strides = [1, 1]} : vector<8x192xf32> to vector<8x64xf32>
    %107 = math.tanh %105 : vector<8x64xf32>
    %108 = arith.mulf %106, %107 : vector<8x64xf32>
    %109 = vector.extract_strided_slice %26 {offsets = [32, 0], sizes = [8, 256], strides = [1, 1]} : vector<64x256xf32> to vector<8x256xf32>
    %110 = arith.truncf %108 : vector<8x64xf32> to vector<8x64xbf16>
    %cst_35 = arith.constant dense<0.000000e+00> : vector<8x256xf32>
    %111 = tpu.matmul %110, %20, %cst_35 {dimension_numbers = #tpu.dot_dimension_numbers<[1], [0], [0], [1], [0, 0, 1, 1], [], []>} : vector<8x64xbf16>, vector<64x256xbf16>, vector<8x256xf32> -> vector<8x256xf32>
    %112 = arith.addf %109, %111 : vector<8x256xf32>
    %113 = vector.extract_strided_slice %112 {offsets = [0, 0], sizes = [8, 192], strides = [1, 1]} : vector<8x256xf32> to vector<8x192xf32>
    %114 = arith.negf %113 : vector<8x192xf32>
    %115 = math.exp %114 : vector<8x192xf32>
    %cst_36 = arith.constant 1.000000e+00 : f32
    %116 = vector.broadcast %cst_36 : f32 to vector<8x192xf32>
    %117 = arith.addf %116, %115 : vector<8x192xf32>
    %118 = arith.divf %116, %117 : vector<8x192xf32>
    %119 = vector.extract_strided_slice %112 {offsets = [0, 192], sizes = [8, 64], strides = [1, 1]} : vector<8x256xf32> to vector<8x64xf32>
    %120 = math.tanh %119 : vector<8x64xf32>
    %121 = vector.extract_strided_slice %118 {offsets = [0, 64], sizes = [8, 64], strides = [1, 1]} : vector<8x192xf32> to vector<8x64xf32>
    %122 = arith.mulf %121, %105 : vector<8x64xf32>
    %123 = vector.extract_strided_slice %118 {offsets = [0, 0], sizes = [8, 64], strides = [1, 1]} : vector<8x192xf32> to vector<8x64xf32>
    %124 = arith.mulf %123, %120 : vector<8x64xf32>
    %125 = arith.addf %122, %124 : vector<8x64xf32>
    %126 = vector.extract_strided_slice %118 {offsets = [0, 128], sizes = [8, 64], strides = [1, 1]} : vector<8x192xf32> to vector<8x64xf32>
    %127 = math.tanh %125 : vector<8x64xf32>
    %128 = arith.mulf %126, %127 : vector<8x64xf32>
    %129 = vector.extract_strided_slice %26 {offsets = [40, 0], sizes = [8, 256], strides = [1, 1]} : vector<64x256xf32> to vector<8x256xf32>
    %130 = arith.truncf %128 : vector<8x64xf32> to vector<8x64xbf16>
    %cst_37 = arith.constant dense<0.000000e+00> : vector<8x256xf32>
    %131 = tpu.matmul %130, %20, %cst_37 {dimension_numbers = #tpu.dot_dimension_numbers<[1], [0], [0], [1], [0, 0, 1, 1], [], []>} : vector<8x64xbf16>, vector<64x256xbf16>, vector<8x256xf32> -> vector<8x256xf32>
    %132 = arith.addf %129, %131 : vector<8x256xf32>
    %133 = vector.extract_strided_slice %132 {offsets = [0, 0], sizes = [8, 192], strides = [1, 1]} : vector<8x256xf32> to vector<8x192xf32>
    %134 = arith.negf %133 : vector<8x192xf32>
    %135 = math.exp %134 : vector<8x192xf32>
    %cst_38 = arith.constant 1.000000e+00 : f32
    %136 = vector.broadcast %cst_38 : f32 to vector<8x192xf32>
    %137 = arith.addf %136, %135 : vector<8x192xf32>
    %138 = arith.divf %136, %137 : vector<8x192xf32>
    %139 = vector.extract_strided_slice %132 {offsets = [0, 192], sizes = [8, 64], strides = [1, 1]} : vector<8x256xf32> to vector<8x64xf32>
    %140 = math.tanh %139 : vector<8x64xf32>
    %141 = vector.extract_strided_slice %138 {offsets = [0, 64], sizes = [8, 64], strides = [1, 1]} : vector<8x192xf32> to vector<8x64xf32>
    %142 = arith.mulf %141, %125 : vector<8x64xf32>
    %143 = vector.extract_strided_slice %138 {offsets = [0, 0], sizes = [8, 64], strides = [1, 1]} : vector<8x192xf32> to vector<8x64xf32>
    %144 = arith.mulf %143, %140 : vector<8x64xf32>
    %145 = arith.addf %142, %144 : vector<8x64xf32>
    %146 = vector.extract_strided_slice %138 {offsets = [0, 128], sizes = [8, 64], strides = [1, 1]} : vector<8x192xf32> to vector<8x64xf32>
    %147 = math.tanh %145 : vector<8x64xf32>
    %148 = arith.mulf %146, %147 : vector<8x64xf32>
    %149 = vector.extract_strided_slice %26 {offsets = [48, 0], sizes = [8, 256], strides = [1, 1]} : vector<64x256xf32> to vector<8x256xf32>
    %150 = arith.truncf %148 : vector<8x64xf32> to vector<8x64xbf16>
    %cst_39 = arith.constant dense<0.000000e+00> : vector<8x256xf32>
    %151 = tpu.matmul %150, %20, %cst_39 {dimension_numbers = #tpu.dot_dimension_numbers<[1], [0], [0], [1], [0, 0, 1, 1], [], []>} : vector<8x64xbf16>, vector<64x256xbf16>, vector<8x256xf32> -> vector<8x256xf32>
    %152 = arith.addf %149, %151 : vector<8x256xf32>
    %153 = vector.extract_strided_slice %152 {offsets = [0, 0], sizes = [8, 192], strides = [1, 1]} : vector<8x256xf32> to vector<8x192xf32>
    %154 = arith.negf %153 : vector<8x192xf32>
    %155 = math.exp %154 : vector<8x192xf32>
    %cst_40 = arith.constant 1.000000e+00 : f32
    %156 = vector.broadcast %cst_40 : f32 to vector<8x192xf32>
    %157 = arith.addf %156, %155 : vector<8x192xf32>
    %158 = arith.divf %156, %157 : vector<8x192xf32>
    %159 = vector.extract_strided_slice %152 {offsets = [0, 192], sizes = [8, 64], strides = [1, 1]} : vector<8x256xf32> to vector<8x64xf32>
    %160 = math.tanh %159 : vector<8x64xf32>
    %161 = vector.extract_strided_slice %158 {offsets = [0, 64], sizes = [8, 64], strides = [1, 1]} : vector<8x192xf32> to vector<8x64xf32>
    %162 = arith.mulf %161, %145 : vector<8x64xf32>
    %163 = vector.extract_strided_slice %158 {offsets = [0, 0], sizes = [8, 64], strides = [1, 1]} : vector<8x192xf32> to vector<8x64xf32>
    %164 = arith.mulf %163, %160 : vector<8x64xf32>
    %165 = arith.addf %162, %164 : vector<8x64xf32>
    %166 = vector.extract_strided_slice %158 {offsets = [0, 128], sizes = [8, 64], strides = [1, 1]} : vector<8x192xf32> to vector<8x64xf32>
    %167 = math.tanh %165 : vector<8x64xf32>
    %168 = arith.mulf %166, %167 : vector<8x64xf32>
    %169 = vector.extract_strided_slice %26 {offsets = [56, 0], sizes = [8, 256], strides = [1, 1]} : vector<64x256xf32> to vector<8x256xf32>
    %170 = arith.truncf %168 : vector<8x64xf32> to vector<8x64xbf16>
    %cst_41 = arith.constant dense<0.000000e+00> : vector<8x256xf32>
    %171 = tpu.matmul %170, %20, %cst_41 {dimension_numbers = #tpu.dot_dimension_numbers<[1], [0], [0], [1], [0, 0, 1, 1], [], []>} : vector<8x64xbf16>, vector<64x256xbf16>, vector<8x256xf32> -> vector<8x256xf32>
    %172 = arith.addf %169, %171 : vector<8x256xf32>
    %173 = vector.extract_strided_slice %172 {offsets = [0, 0], sizes = [8, 192], strides = [1, 1]} : vector<8x256xf32> to vector<8x192xf32>
    %174 = arith.negf %173 : vector<8x192xf32>
    %175 = math.exp %174 : vector<8x192xf32>
    %cst_42 = arith.constant 1.000000e+00 : f32
    %176 = vector.broadcast %cst_42 : f32 to vector<8x192xf32>
    %177 = arith.addf %176, %175 : vector<8x192xf32>
    %178 = arith.divf %176, %177 : vector<8x192xf32>
    %179 = vector.extract_strided_slice %172 {offsets = [0, 192], sizes = [8, 64], strides = [1, 1]} : vector<8x256xf32> to vector<8x64xf32>
    %180 = math.tanh %179 : vector<8x64xf32>
    %181 = vector.extract_strided_slice %178 {offsets = [0, 64], sizes = [8, 64], strides = [1, 1]} : vector<8x192xf32> to vector<8x64xf32>
    %182 = arith.mulf %181, %165 : vector<8x64xf32>
    %183 = vector.extract_strided_slice %178 {offsets = [0, 0], sizes = [8, 64], strides = [1, 1]} : vector<8x192xf32> to vector<8x64xf32>
    %184 = arith.mulf %183, %180 : vector<8x64xf32>
    %185 = arith.addf %182, %184 : vector<8x64xf32>
    %186 = vector.extract_strided_slice %178 {offsets = [0, 128], sizes = [8, 64], strides = [1, 1]} : vector<8x192xf32> to vector<8x64xf32>
    %187 = math.tanh %185 : vector<8x64xf32>
    %188 = arith.mulf %186, %187 : vector<8x64xf32>
    %189 = tpu.concatenate %48, %68, %88, %108, %128, %148, %168, %188 in 0 : vector<8x64xf32>, vector<8x64xf32>, vector<8x64xf32>, vector<8x64xf32>, vector<8x64xf32>, vector<8x64xf32>, vector<8x64xf32>, vector<8x64xf32> -> vector<64x64xf32>
    %190 = tpu.concatenate %188, %168, %148, %128, %108, %88, %68, %48 in 0 : vector<8x64xf32>, vector<8x64xf32>, vector<8x64xf32>, vector<8x64xf32>, vector<8x64xf32>, vector<8x64xf32>, vector<8x64xf32>, vector<8x64xf32> -> vector<64x64xf32>
    %191 = arith.truncf %189 : vector<64x64xf32> to vector<64x64xbf16>
    %192 = arith.truncf %190 : vector<64x64xf32> to vector<64x64xbf16>
    %c0_43 = arith.constant 0 : index
    %c0_44 = arith.constant 0 : index
    %193 = vector.load %arg10[%c0_43, %c0_44] : memref<64x256xbf16, #tpu.memory_space<vmem>>, vector<64x256xbf16>
    %c0_45 = arith.constant 0 : index
    %c0_46 = arith.constant 0 : index
    %194 = vector.load %arg11[%c0_45, %c0_46] : memref<64x256xbf16, #tpu.memory_space<vmem>>, vector<64x256xbf16>
    %c0_47 = arith.constant 0 : index
    %c0_48 = arith.constant 0 : index
    %195 = vector.load %arg12[%c0_47, %c0_48] : memref<64x256xbf16, #tpu.memory_space<vmem>>, vector<64x256xbf16>
    %c0_49 = arith.constant 0 : index
    %c0_50 = arith.constant 0 : index
    %196 = vector.load %arg13[%c0_49, %c0_50] : memref<1x256xf32, #tpu.memory_space<vmem>>, vector<1x256xf32>
    %cst_51 = arith.constant dense<0.000000e+00> : vector<64x256xf32>
    %197 = tpu.matmul %191, %193, %cst_51 {dimension_numbers = #tpu.dot_dimension_numbers<[1], [0], [0], [1], [0, 0, 1, 1], [], []>} : vector<64x64xbf16>, vector<64x256xbf16>, vector<64x256xf32> -> vector<64x256xf32>
    %cst_52 = arith.constant dense<0.000000e+00> : vector<64x256xf32>
    %198 = tpu.matmul %192, %194, %cst_52 {dimension_numbers = #tpu.dot_dimension_numbers<[1], [0], [0], [1], [0, 0, 1, 1], [], []>} : vector<64x64xbf16>, vector<64x256xbf16>, vector<64x256xf32> -> vector<64x256xf32>
    %199 = arith.addf %197, %198 : vector<64x256xf32>
    %200 = vector.broadcast %196 : vector<1x256xf32> to vector<64x256xf32>
    %201 = arith.addf %199, %200 : vector<64x256xf32>
    %cst_53 = arith.constant 0.000000e+00 : f32
    %202 = vector.broadcast %cst_53 : f32 to vector<8x64xf32>
    %cst_54 = arith.constant 0.000000e+00 : f32
    %203 = vector.broadcast %cst_54 : f32 to vector<8x64xf32>
    %204 = vector.extract_strided_slice %201 {offsets = [0, 0], sizes = [8, 256], strides = [1, 1]} : vector<64x256xf32> to vector<8x256xf32>
    %205 = arith.truncf %202 : vector<8x64xf32> to vector<8x64xbf16>
    %cst_55 = arith.constant dense<0.000000e+00> : vector<8x256xf32>
    %206 = tpu.matmul %205, %195, %cst_55 {dimension_numbers = #tpu.dot_dimension_numbers<[1], [0], [0], [1], [0, 0, 1, 1], [], []>} : vector<8x64xbf16>, vector<64x256xbf16>, vector<8x256xf32> -> vector<8x256xf32>
    %207 = arith.addf %204, %206 : vector<8x256xf32>
    %208 = vector.extract_strided_slice %207 {offsets = [0, 0], sizes = [8, 192], strides = [1, 1]} : vector<8x256xf32> to vector<8x192xf32>
    %209 = arith.negf %208 : vector<8x192xf32>
    %210 = math.exp %209 : vector<8x192xf32>
    %cst_56 = arith.constant 1.000000e+00 : f32
    %211 = vector.broadcast %cst_56 : f32 to vector<8x192xf32>
    %212 = arith.addf %211, %210 : vector<8x192xf32>
    %213 = arith.divf %211, %212 : vector<8x192xf32>
    %214 = vector.extract_strided_slice %207 {offsets = [0, 192], sizes = [8, 64], strides = [1, 1]} : vector<8x256xf32> to vector<8x64xf32>
    %215 = math.tanh %214 : vector<8x64xf32>
    %216 = vector.extract_strided_slice %213 {offsets = [0, 64], sizes = [8, 64], strides = [1, 1]} : vector<8x192xf32> to vector<8x64xf32>
    %217 = arith.mulf %216, %203 : vector<8x64xf32>
    %218 = vector.extract_strided_slice %213 {offsets = [0, 0], sizes = [8, 64], strides = [1, 1]} : vector<8x192xf32> to vector<8x64xf32>
    %219 = arith.mulf %218, %215 : vector<8x64xf32>
    %220 = arith.addf %217, %219 : vector<8x64xf32>
    %221 = vector.extract_strided_slice %213 {offsets = [0, 128], sizes = [8, 64], strides = [1, 1]} : vector<8x192xf32> to vector<8x64xf32>
    %222 = math.tanh %220 : vector<8x64xf32>
    %223 = arith.mulf %221, %222 : vector<8x64xf32>
    %224 = vector.extract_strided_slice %201 {offsets = [8, 0], sizes = [8, 256], strides = [1, 1]} : vector<64x256xf32> to vector<8x256xf32>
    %225 = arith.truncf %223 : vector<8x64xf32> to vector<8x64xbf16>
    %cst_57 = arith.constant dense<0.000000e+00> : vector<8x256xf32>
    %226 = tpu.matmul %225, %195, %cst_57 {dimension_numbers = #tpu.dot_dimension_numbers<[1], [0], [0], [1], [0, 0, 1, 1], [], []>} : vector<8x64xbf16>, vector<64x256xbf16>, vector<8x256xf32> -> vector<8x256xf32>
    %227 = arith.addf %224, %226 : vector<8x256xf32>
    %228 = vector.extract_strided_slice %227 {offsets = [0, 0], sizes = [8, 192], strides = [1, 1]} : vector<8x256xf32> to vector<8x192xf32>
    %229 = arith.negf %228 : vector<8x192xf32>
    %230 = math.exp %229 : vector<8x192xf32>
    %cst_58 = arith.constant 1.000000e+00 : f32
    %231 = vector.broadcast %cst_58 : f32 to vector<8x192xf32>
    %232 = arith.addf %231, %230 : vector<8x192xf32>
    %233 = arith.divf %231, %232 : vector<8x192xf32>
    %234 = vector.extract_strided_slice %227 {offsets = [0, 192], sizes = [8, 64], strides = [1, 1]} : vector<8x256xf32> to vector<8x64xf32>
    %235 = math.tanh %234 : vector<8x64xf32>
    %236 = vector.extract_strided_slice %233 {offsets = [0, 64], sizes = [8, 64], strides = [1, 1]} : vector<8x192xf32> to vector<8x64xf32>
    %237 = arith.mulf %236, %220 : vector<8x64xf32>
    %238 = vector.extract_strided_slice %233 {offsets = [0, 0], sizes = [8, 64], strides = [1, 1]} : vector<8x192xf32> to vector<8x64xf32>
    %239 = arith.mulf %238, %235 : vector<8x64xf32>
    %240 = arith.addf %237, %239 : vector<8x64xf32>
    %241 = vector.extract_strided_slice %233 {offsets = [0, 128], sizes = [8, 64], strides = [1, 1]} : vector<8x192xf32> to vector<8x64xf32>
    %242 = math.tanh %240 : vector<8x64xf32>
    %243 = arith.mulf %241, %242 : vector<8x64xf32>
    %244 = vector.extract_strided_slice %201 {offsets = [16, 0], sizes = [8, 256], strides = [1, 1]} : vector<64x256xf32> to vector<8x256xf32>
    %245 = arith.truncf %243 : vector<8x64xf32> to vector<8x64xbf16>
    %cst_59 = arith.constant dense<0.000000e+00> : vector<8x256xf32>
    %246 = tpu.matmul %245, %195, %cst_59 {dimension_numbers = #tpu.dot_dimension_numbers<[1], [0], [0], [1], [0, 0, 1, 1], [], []>} : vector<8x64xbf16>, vector<64x256xbf16>, vector<8x256xf32> -> vector<8x256xf32>
    %247 = arith.addf %244, %246 : vector<8x256xf32>
    %248 = vector.extract_strided_slice %247 {offsets = [0, 0], sizes = [8, 192], strides = [1, 1]} : vector<8x256xf32> to vector<8x192xf32>
    %249 = arith.negf %248 : vector<8x192xf32>
    %250 = math.exp %249 : vector<8x192xf32>
    %cst_60 = arith.constant 1.000000e+00 : f32
    %251 = vector.broadcast %cst_60 : f32 to vector<8x192xf32>
    %252 = arith.addf %251, %250 : vector<8x192xf32>
    %253 = arith.divf %251, %252 : vector<8x192xf32>
    %254 = vector.extract_strided_slice %247 {offsets = [0, 192], sizes = [8, 64], strides = [1, 1]} : vector<8x256xf32> to vector<8x64xf32>
    %255 = math.tanh %254 : vector<8x64xf32>
    %256 = vector.extract_strided_slice %253 {offsets = [0, 64], sizes = [8, 64], strides = [1, 1]} : vector<8x192xf32> to vector<8x64xf32>
    %257 = arith.mulf %256, %240 : vector<8x64xf32>
    %258 = vector.extract_strided_slice %253 {offsets = [0, 0], sizes = [8, 64], strides = [1, 1]} : vector<8x192xf32> to vector<8x64xf32>
    %259 = arith.mulf %258, %255 : vector<8x64xf32>
    %260 = arith.addf %257, %259 : vector<8x64xf32>
    %261 = vector.extract_strided_slice %253 {offsets = [0, 128], sizes = [8, 64], strides = [1, 1]} : vector<8x192xf32> to vector<8x64xf32>
    %262 = math.tanh %260 : vector<8x64xf32>
    %263 = arith.mulf %261, %262 : vector<8x64xf32>
    %264 = vector.extract_strided_slice %201 {offsets = [24, 0], sizes = [8, 256], strides = [1, 1]} : vector<64x256xf32> to vector<8x256xf32>
    %265 = arith.truncf %263 : vector<8x64xf32> to vector<8x64xbf16>
    %cst_61 = arith.constant dense<0.000000e+00> : vector<8x256xf32>
    %266 = tpu.matmul %265, %195, %cst_61 {dimension_numbers = #tpu.dot_dimension_numbers<[1], [0], [0], [1], [0, 0, 1, 1], [], []>} : vector<8x64xbf16>, vector<64x256xbf16>, vector<8x256xf32> -> vector<8x256xf32>
    %267 = arith.addf %264, %266 : vector<8x256xf32>
    %268 = vector.extract_strided_slice %267 {offsets = [0, 0], sizes = [8, 192], strides = [1, 1]} : vector<8x256xf32> to vector<8x192xf32>
    %269 = arith.negf %268 : vector<8x192xf32>
    %270 = math.exp %269 : vector<8x192xf32>
    %cst_62 = arith.constant 1.000000e+00 : f32
    %271 = vector.broadcast %cst_62 : f32 to vector<8x192xf32>
    %272 = arith.addf %271, %270 : vector<8x192xf32>
    %273 = arith.divf %271, %272 : vector<8x192xf32>
    %274 = vector.extract_strided_slice %267 {offsets = [0, 192], sizes = [8, 64], strides = [1, 1]} : vector<8x256xf32> to vector<8x64xf32>
    %275 = math.tanh %274 : vector<8x64xf32>
    %276 = vector.extract_strided_slice %273 {offsets = [0, 64], sizes = [8, 64], strides = [1, 1]} : vector<8x192xf32> to vector<8x64xf32>
    %277 = arith.mulf %276, %260 : vector<8x64xf32>
    %278 = vector.extract_strided_slice %273 {offsets = [0, 0], sizes = [8, 64], strides = [1, 1]} : vector<8x192xf32> to vector<8x64xf32>
    %279 = arith.mulf %278, %275 : vector<8x64xf32>
    %280 = arith.addf %277, %279 : vector<8x64xf32>
    %281 = vector.extract_strided_slice %273 {offsets = [0, 128], sizes = [8, 64], strides = [1, 1]} : vector<8x192xf32> to vector<8x64xf32>
    %282 = math.tanh %280 : vector<8x64xf32>
    %283 = arith.mulf %281, %282 : vector<8x64xf32>
    %284 = vector.extract_strided_slice %201 {offsets = [32, 0], sizes = [8, 256], strides = [1, 1]} : vector<64x256xf32> to vector<8x256xf32>
    %285 = arith.truncf %283 : vector<8x64xf32> to vector<8x64xbf16>
    %cst_63 = arith.constant dense<0.000000e+00> : vector<8x256xf32>
    %286 = tpu.matmul %285, %195, %cst_63 {dimension_numbers = #tpu.dot_dimension_numbers<[1], [0], [0], [1], [0, 0, 1, 1], [], []>} : vector<8x64xbf16>, vector<64x256xbf16>, vector<8x256xf32> -> vector<8x256xf32>
    %287 = arith.addf %284, %286 : vector<8x256xf32>
    %288 = vector.extract_strided_slice %287 {offsets = [0, 0], sizes = [8, 192], strides = [1, 1]} : vector<8x256xf32> to vector<8x192xf32>
    %289 = arith.negf %288 : vector<8x192xf32>
    %290 = math.exp %289 : vector<8x192xf32>
    %cst_64 = arith.constant 1.000000e+00 : f32
    %291 = vector.broadcast %cst_64 : f32 to vector<8x192xf32>
    %292 = arith.addf %291, %290 : vector<8x192xf32>
    %293 = arith.divf %291, %292 : vector<8x192xf32>
    %294 = vector.extract_strided_slice %287 {offsets = [0, 192], sizes = [8, 64], strides = [1, 1]} : vector<8x256xf32> to vector<8x64xf32>
    %295 = math.tanh %294 : vector<8x64xf32>
    %296 = vector.extract_strided_slice %293 {offsets = [0, 64], sizes = [8, 64], strides = [1, 1]} : vector<8x192xf32> to vector<8x64xf32>
    %297 = arith.mulf %296, %280 : vector<8x64xf32>
    %298 = vector.extract_strided_slice %293 {offsets = [0, 0], sizes = [8, 64], strides = [1, 1]} : vector<8x192xf32> to vector<8x64xf32>
    %299 = arith.mulf %298, %295 : vector<8x64xf32>
    %300 = arith.addf %297, %299 : vector<8x64xf32>
    %301 = vector.extract_strided_slice %293 {offsets = [0, 128], sizes = [8, 64], strides = [1, 1]} : vector<8x192xf32> to vector<8x64xf32>
    %302 = math.tanh %300 : vector<8x64xf32>
    %303 = arith.mulf %301, %302 : vector<8x64xf32>
    %304 = vector.extract_strided_slice %201 {offsets = [40, 0], sizes = [8, 256], strides = [1, 1]} : vector<64x256xf32> to vector<8x256xf32>
    %305 = arith.truncf %303 : vector<8x64xf32> to vector<8x64xbf16>
    %cst_65 = arith.constant dense<0.000000e+00> : vector<8x256xf32>
    %306 = tpu.matmul %305, %195, %cst_65 {dimension_numbers = #tpu.dot_dimension_numbers<[1], [0], [0], [1], [0, 0, 1, 1], [], []>} : vector<8x64xbf16>, vector<64x256xbf16>, vector<8x256xf32> -> vector<8x256xf32>
    %307 = arith.addf %304, %306 : vector<8x256xf32>
    %308 = vector.extract_strided_slice %307 {offsets = [0, 0], sizes = [8, 192], strides = [1, 1]} : vector<8x256xf32> to vector<8x192xf32>
    %309 = arith.negf %308 : vector<8x192xf32>
    %310 = math.exp %309 : vector<8x192xf32>
    %cst_66 = arith.constant 1.000000e+00 : f32
    %311 = vector.broadcast %cst_66 : f32 to vector<8x192xf32>
    %312 = arith.addf %311, %310 : vector<8x192xf32>
    %313 = arith.divf %311, %312 : vector<8x192xf32>
    %314 = vector.extract_strided_slice %307 {offsets = [0, 192], sizes = [8, 64], strides = [1, 1]} : vector<8x256xf32> to vector<8x64xf32>
    %315 = math.tanh %314 : vector<8x64xf32>
    %316 = vector.extract_strided_slice %313 {offsets = [0, 64], sizes = [8, 64], strides = [1, 1]} : vector<8x192xf32> to vector<8x64xf32>
    %317 = arith.mulf %316, %300 : vector<8x64xf32>
    %318 = vector.extract_strided_slice %313 {offsets = [0, 0], sizes = [8, 64], strides = [1, 1]} : vector<8x192xf32> to vector<8x64xf32>
    %319 = arith.mulf %318, %315 : vector<8x64xf32>
    %320 = arith.addf %317, %319 : vector<8x64xf32>
    %321 = vector.extract_strided_slice %313 {offsets = [0, 128], sizes = [8, 64], strides = [1, 1]} : vector<8x192xf32> to vector<8x64xf32>
    %322 = math.tanh %320 : vector<8x64xf32>
    %323 = arith.mulf %321, %322 : vector<8x64xf32>
    %324 = vector.extract_strided_slice %201 {offsets = [48, 0], sizes = [8, 256], strides = [1, 1]} : vector<64x256xf32> to vector<8x256xf32>
    %325 = arith.truncf %323 : vector<8x64xf32> to vector<8x64xbf16>
    %cst_67 = arith.constant dense<0.000000e+00> : vector<8x256xf32>
    %326 = tpu.matmul %325, %195, %cst_67 {dimension_numbers = #tpu.dot_dimension_numbers<[1], [0], [0], [1], [0, 0, 1, 1], [], []>} : vector<8x64xbf16>, vector<64x256xbf16>, vector<8x256xf32> -> vector<8x256xf32>
    %327 = arith.addf %324, %326 : vector<8x256xf32>
    %328 = vector.extract_strided_slice %327 {offsets = [0, 0], sizes = [8, 192], strides = [1, 1]} : vector<8x256xf32> to vector<8x192xf32>
    %329 = arith.negf %328 : vector<8x192xf32>
    %330 = math.exp %329 : vector<8x192xf32>
    %cst_68 = arith.constant 1.000000e+00 : f32
    %331 = vector.broadcast %cst_68 : f32 to vector<8x192xf32>
    %332 = arith.addf %331, %330 : vector<8x192xf32>
    %333 = arith.divf %331, %332 : vector<8x192xf32>
    %334 = vector.extract_strided_slice %327 {offsets = [0, 192], sizes = [8, 64], strides = [1, 1]} : vector<8x256xf32> to vector<8x64xf32>
    %335 = math.tanh %334 : vector<8x64xf32>
    %336 = vector.extract_strided_slice %333 {offsets = [0, 64], sizes = [8, 64], strides = [1, 1]} : vector<8x192xf32> to vector<8x64xf32>
    %337 = arith.mulf %336, %320 : vector<8x64xf32>
    %338 = vector.extract_strided_slice %333 {offsets = [0, 0], sizes = [8, 64], strides = [1, 1]} : vector<8x192xf32> to vector<8x64xf32>
    %339 = arith.mulf %338, %335 : vector<8x64xf32>
    %340 = arith.addf %337, %339 : vector<8x64xf32>
    %341 = vector.extract_strided_slice %333 {offsets = [0, 128], sizes = [8, 64], strides = [1, 1]} : vector<8x192xf32> to vector<8x64xf32>
    %342 = math.tanh %340 : vector<8x64xf32>
    %343 = arith.mulf %341, %342 : vector<8x64xf32>
    %344 = vector.extract_strided_slice %201 {offsets = [56, 0], sizes = [8, 256], strides = [1, 1]} : vector<64x256xf32> to vector<8x256xf32>
    %345 = arith.truncf %343 : vector<8x64xf32> to vector<8x64xbf16>
    %cst_69 = arith.constant dense<0.000000e+00> : vector<8x256xf32>
    %346 = tpu.matmul %345, %195, %cst_69 {dimension_numbers = #tpu.dot_dimension_numbers<[1], [0], [0], [1], [0, 0, 1, 1], [], []>} : vector<8x64xbf16>, vector<64x256xbf16>, vector<8x256xf32> -> vector<8x256xf32>
    %347 = arith.addf %344, %346 : vector<8x256xf32>
    %348 = vector.extract_strided_slice %347 {offsets = [0, 0], sizes = [8, 192], strides = [1, 1]} : vector<8x256xf32> to vector<8x192xf32>
    %349 = arith.negf %348 : vector<8x192xf32>
    %350 = math.exp %349 : vector<8x192xf32>
    %cst_70 = arith.constant 1.000000e+00 : f32
    %351 = vector.broadcast %cst_70 : f32 to vector<8x192xf32>
    %352 = arith.addf %351, %350 : vector<8x192xf32>
    %353 = arith.divf %351, %352 : vector<8x192xf32>
    %354 = vector.extract_strided_slice %347 {offsets = [0, 192], sizes = [8, 64], strides = [1, 1]} : vector<8x256xf32> to vector<8x64xf32>
    %355 = math.tanh %354 : vector<8x64xf32>
    %356 = vector.extract_strided_slice %353 {offsets = [0, 64], sizes = [8, 64], strides = [1, 1]} : vector<8x192xf32> to vector<8x64xf32>
    %357 = arith.mulf %356, %340 : vector<8x64xf32>
    %358 = vector.extract_strided_slice %353 {offsets = [0, 0], sizes = [8, 64], strides = [1, 1]} : vector<8x192xf32> to vector<8x64xf32>
    %359 = arith.mulf %358, %355 : vector<8x64xf32>
    %360 = arith.addf %357, %359 : vector<8x64xf32>
    %361 = vector.extract_strided_slice %353 {offsets = [0, 128], sizes = [8, 64], strides = [1, 1]} : vector<8x192xf32> to vector<8x64xf32>
    %362 = math.tanh %360 : vector<8x64xf32>
    %363 = arith.mulf %361, %362 : vector<8x64xf32>
    %364 = tpu.concatenate %223, %243, %263, %283, %303, %323, %343, %363 in 0 : vector<8x64xf32>, vector<8x64xf32>, vector<8x64xf32>, vector<8x64xf32>, vector<8x64xf32>, vector<8x64xf32>, vector<8x64xf32>, vector<8x64xf32> -> vector<64x64xf32>
    %365 = tpu.concatenate %363, %343, %323, %303, %283, %263, %243, %223 in 0 : vector<8x64xf32>, vector<8x64xf32>, vector<8x64xf32>, vector<8x64xf32>, vector<8x64xf32>, vector<8x64xf32>, vector<8x64xf32>, vector<8x64xf32> -> vector<64x64xf32>
    %366 = vector.extract_strided_slice %364 {offsets = [0, 0], sizes = [64, 32], strides = [1, 1]} : vector<64x64xf32> to vector<64x32xf32>
    %367 = vector.extract_strided_slice %365 {offsets = [0, 32], sizes = [64, 32], strides = [1, 1]} : vector<64x64xf32> to vector<64x32xf32>
    %368 = tpu.concatenate %366, %367 in 1 : vector<64x32xf32>, vector<64x32xf32> -> vector<64x64xf32>
    %369 = arith.truncf %368 : vector<64x64xf32> to vector<64x64xbf16>
    %c0_71 = arith.constant 0 : index
    %c0_72 = arith.constant 0 : index
    %370 = vector.load %arg14[%c0_71, %c0_72] : memref<64x32xbf16, #tpu.memory_space<vmem>>, vector<64x32xbf16>
    %cst_73 = arith.constant dense<0.000000e+00> : vector<64x32xf32>
    %371 = tpu.matmul %369, %370, %cst_73 {dimension_numbers = #tpu.dot_dimension_numbers<[1], [0], [0], [1], [0, 0, 1, 1], [], []>} : vector<64x64xbf16>, vector<64x32xbf16>, vector<64x32xf32> -> vector<64x32xf32>
    %c0_74 = arith.constant 0 : index
    %c0_75 = arith.constant 0 : index
    %372 = vector.load %arg15[%c0_74, %c0_75] : memref<1x32xf32, #tpu.memory_space<vmem>>, vector<1x32xf32>
    %373 = vector.broadcast %372 : vector<1x32xf32> to vector<64x32xf32>
    %374 = arith.addf %371, %373 : vector<64x32xf32>
    %375 = math.tanh %374 : vector<64x32xf32>
    %c0_76 = arith.constant 0 : index
    %c0_77 = arith.constant 0 : index
    %376 = vector.load %arg16[%c0_76, %c0_77] : memref<1x32xf32, #tpu.memory_space<vmem>>, vector<1x32xf32>
    %377 = vector.broadcast %376 : vector<1x32xf32> to vector<64x32xf32>
    %378 = arith.mulf %375, %377 : vector<64x32xf32>
    %cst_78 = arith.constant dense<0.000000e+00> : vector<64xf32>
    %379 = vector.multi_reduction <add>, %378, %cst_78 [1] : vector<64x32xf32> to vector<64xf32>
    %380 = vector.shape_cast %379 : vector<64xf32> to vector<64x1xf32>
    %c0_79 = arith.constant 0 : index
    %c0_80 = arith.constant 0 : index
    %381 = vector.load %arg17[%c0_79, %c0_80] : memref<1x1xf32, #tpu.memory_space<vmem>>, vector<1x1xf32>
    %382 = vector.broadcast %381 : vector<1x1xf32> to vector<64x1xf32>
    %383 = arith.addf %380, %382 : vector<64x1xf32>
    %384 = vector.extract_strided_slice %383 {offsets = [0, 0], sizes = [8, 1], strides = [1, 1]} : vector<64x1xf32> to vector<8x1xf32>
    %385 = vector.extract_strided_slice %383 {offsets = [8, 0], sizes = [8, 1], strides = [1, 1]} : vector<64x1xf32> to vector<8x1xf32>
    %386 = vector.extract_strided_slice %383 {offsets = [16, 0], sizes = [8, 1], strides = [1, 1]} : vector<64x1xf32> to vector<8x1xf32>
    %387 = vector.extract_strided_slice %383 {offsets = [24, 0], sizes = [8, 1], strides = [1, 1]} : vector<64x1xf32> to vector<8x1xf32>
    %388 = vector.extract_strided_slice %383 {offsets = [32, 0], sizes = [8, 1], strides = [1, 1]} : vector<64x1xf32> to vector<8x1xf32>
    %389 = vector.extract_strided_slice %383 {offsets = [40, 0], sizes = [8, 1], strides = [1, 1]} : vector<64x1xf32> to vector<8x1xf32>
    %390 = vector.extract_strided_slice %383 {offsets = [48, 0], sizes = [8, 1], strides = [1, 1]} : vector<64x1xf32> to vector<8x1xf32>
    %391 = vector.extract_strided_slice %383 {offsets = [56, 0], sizes = [8, 1], strides = [1, 1]} : vector<64x1xf32> to vector<8x1xf32>
    %392 = arith.maximumf %384, %385 : vector<8x1xf32>
    %393 = arith.maximumf %392, %386 : vector<8x1xf32>
    %394 = arith.maximumf %393, %387 : vector<8x1xf32>
    %395 = arith.maximumf %394, %388 : vector<8x1xf32>
    %396 = arith.maximumf %395, %389 : vector<8x1xf32>
    %397 = arith.maximumf %396, %390 : vector<8x1xf32>
    %398 = arith.maximumf %397, %391 : vector<8x1xf32>
    %399 = arith.subf %384, %398 : vector<8x1xf32>
    %400 = math.exp %399 : vector<8x1xf32>
    %401 = arith.subf %385, %398 : vector<8x1xf32>
    %402 = math.exp %401 : vector<8x1xf32>
    %403 = arith.subf %386, %398 : vector<8x1xf32>
    %404 = math.exp %403 : vector<8x1xf32>
    %405 = arith.subf %387, %398 : vector<8x1xf32>
    %406 = math.exp %405 : vector<8x1xf32>
    %407 = arith.subf %388, %398 : vector<8x1xf32>
    %408 = math.exp %407 : vector<8x1xf32>
    %409 = arith.subf %389, %398 : vector<8x1xf32>
    %410 = math.exp %409 : vector<8x1xf32>
    %411 = arith.subf %390, %398 : vector<8x1xf32>
    %412 = math.exp %411 : vector<8x1xf32>
    %413 = arith.subf %391, %398 : vector<8x1xf32>
    %414 = math.exp %413 : vector<8x1xf32>
    %415 = arith.addf %400, %402 : vector<8x1xf32>
    %416 = arith.addf %415, %404 : vector<8x1xf32>
    %417 = arith.addf %416, %406 : vector<8x1xf32>
    %418 = arith.addf %417, %408 : vector<8x1xf32>
    %419 = arith.addf %418, %410 : vector<8x1xf32>
    %420 = arith.addf %419, %412 : vector<8x1xf32>
    %421 = arith.addf %420, %414 : vector<8x1xf32>
    %422 = tpu.reciprocal %421 {approx = true} : vector<8x1xf32> -> vector<8x1xf32>
    %423 = arith.mulf %400, %422 : vector<8x1xf32>
    %424 = vector.extract_strided_slice %368 {offsets = [0, 0], sizes = [8, 64], strides = [1, 1]} : vector<64x64xf32> to vector<8x64xf32>
    %425 = vector.broadcast %423 : vector<8x1xf32> to vector<8x64xf32>
    %426 = arith.mulf %425, %424 : vector<8x64xf32>
    %427 = arith.mulf %402, %422 : vector<8x1xf32>
    %428 = vector.extract_strided_slice %368 {offsets = [8, 0], sizes = [8, 64], strides = [1, 1]} : vector<64x64xf32> to vector<8x64xf32>
    %429 = vector.broadcast %427 : vector<8x1xf32> to vector<8x64xf32>
    %430 = arith.mulf %429, %428 : vector<8x64xf32>
    %431 = arith.addf %426, %430 : vector<8x64xf32>
    %432 = arith.mulf %404, %422 : vector<8x1xf32>
    %433 = vector.extract_strided_slice %368 {offsets = [16, 0], sizes = [8, 64], strides = [1, 1]} : vector<64x64xf32> to vector<8x64xf32>
    %434 = vector.broadcast %432 : vector<8x1xf32> to vector<8x64xf32>
    %435 = arith.mulf %434, %433 : vector<8x64xf32>
    %436 = arith.addf %431, %435 : vector<8x64xf32>
    %437 = arith.mulf %406, %422 : vector<8x1xf32>
    %438 = vector.extract_strided_slice %368 {offsets = [24, 0], sizes = [8, 64], strides = [1, 1]} : vector<64x64xf32> to vector<8x64xf32>
    %439 = vector.broadcast %437 : vector<8x1xf32> to vector<8x64xf32>
    %440 = arith.mulf %439, %438 : vector<8x64xf32>
    %441 = arith.addf %436, %440 : vector<8x64xf32>
    %442 = arith.mulf %408, %422 : vector<8x1xf32>
    %443 = vector.extract_strided_slice %368 {offsets = [32, 0], sizes = [8, 64], strides = [1, 1]} : vector<64x64xf32> to vector<8x64xf32>
    %444 = vector.broadcast %442 : vector<8x1xf32> to vector<8x64xf32>
    %445 = arith.mulf %444, %443 : vector<8x64xf32>
    %446 = arith.addf %441, %445 : vector<8x64xf32>
    %447 = arith.mulf %410, %422 : vector<8x1xf32>
    %448 = vector.extract_strided_slice %368 {offsets = [40, 0], sizes = [8, 64], strides = [1, 1]} : vector<64x64xf32> to vector<8x64xf32>
    %449 = vector.broadcast %447 : vector<8x1xf32> to vector<8x64xf32>
    %450 = arith.mulf %449, %448 : vector<8x64xf32>
    %451 = arith.addf %446, %450 : vector<8x64xf32>
    %452 = arith.mulf %412, %422 : vector<8x1xf32>
    %453 = vector.extract_strided_slice %368 {offsets = [48, 0], sizes = [8, 64], strides = [1, 1]} : vector<64x64xf32> to vector<8x64xf32>
    %454 = vector.broadcast %452 : vector<8x1xf32> to vector<8x64xf32>
    %455 = arith.mulf %454, %453 : vector<8x64xf32>
    %456 = arith.addf %451, %455 : vector<8x64xf32>
    %457 = arith.mulf %414, %422 : vector<8x1xf32>
    %458 = vector.extract_strided_slice %368 {offsets = [56, 0], sizes = [8, 64], strides = [1, 1]} : vector<64x64xf32> to vector<8x64xf32>
    %459 = vector.broadcast %457 : vector<8x1xf32> to vector<8x64xf32>
    %460 = arith.mulf %459, %458 : vector<8x64xf32>
    %461 = arith.addf %456, %460 : vector<8x64xf32>
    %462 = arith.truncf %461 : vector<8x64xf32> to vector<8x64xbf16>
    %c0_81 = arith.constant 0 : index
    %c0_82 = arith.constant 0 : index
    %463 = vector.load %arg18[%c0_81, %c0_82] : memref<64x32xbf16, #tpu.memory_space<vmem>>, vector<64x32xbf16>
    %cst_83 = arith.constant dense<0.000000e+00> : vector<8x32xf32>
    %464 = tpu.matmul %462, %463, %cst_83 {dimension_numbers = #tpu.dot_dimension_numbers<[1], [0], [0], [1], [0, 0, 1, 1], [], []>} : vector<8x64xbf16>, vector<64x32xbf16>, vector<8x32xf32> -> vector<8x32xf32>
    %c0_84 = arith.constant 0 : index
    %c0_85 = arith.constant 0 : index
    %465 = vector.load %arg19[%c0_84, %c0_85] : memref<1x32xf32, #tpu.memory_space<vmem>>, vector<1x32xf32>
    %466 = vector.broadcast %465 : vector<1x32xf32> to vector<8x32xf32>
    %467 = arith.addf %464, %466 : vector<8x32xf32>
    %cst_86 = arith.constant 0.000000e+00 : f32
    %468 = vector.broadcast %cst_86 : f32 to vector<8x32xf32>
    %469 = arith.maximumf %467, %468 : vector<8x32xf32>
    %470 = arith.truncf %469 : vector<8x32xf32> to vector<8x32xbf16>
    %c0_87 = arith.constant 0 : index
    %c0_88 = arith.constant 0 : index
    %471 = vector.load %arg20[%c0_87, %c0_88] : memref<32x16xbf16, #tpu.memory_space<vmem>>, vector<32x16xbf16>
    %cst_89 = arith.constant dense<0.000000e+00> : vector<8x16xf32>
    %472 = tpu.matmul %470, %471, %cst_89 {dimension_numbers = #tpu.dot_dimension_numbers<[1], [0], [0], [1], [0, 0, 1, 1], [], []>} : vector<8x32xbf16>, vector<32x16xbf16>, vector<8x16xf32> -> vector<8x16xf32>
    %c0_90 = arith.constant 0 : index
    %c0_91 = arith.constant 0 : index
    %473 = vector.load %arg21[%c0_90, %c0_91] : memref<1x16xf32, #tpu.memory_space<vmem>>, vector<1x16xf32>
    %474 = vector.broadcast %473 : vector<1x16xf32> to vector<8x16xf32>
    %475 = arith.addf %472, %474 : vector<8x16xf32>
    %cst_92 = arith.constant 0.000000e+00 : f32
    %476 = vector.broadcast %cst_92 : f32 to vector<8x16xf32>
    %477 = arith.maximumf %475, %476 : vector<8x16xf32>
    %478 = arith.truncf %477 : vector<8x16xf32> to vector<8x16xbf16>
    %c0_93 = arith.constant 0 : index
    %c0_94 = arith.constant 0 : index
    %479 = vector.load %arg22[%c0_93, %c0_94] : memref<16x4xbf16, #tpu.memory_space<vmem>>, vector<16x4xbf16>
    %cst_95 = arith.constant dense<0.000000e+00> : vector<8x4xf32>
    %480 = tpu.matmul %478, %479, %cst_95 {dimension_numbers = #tpu.dot_dimension_numbers<[1], [0], [0], [1], [0, 0, 1, 1], [], []>} : vector<8x16xbf16>, vector<16x4xbf16>, vector<8x4xf32> -> vector<8x4xf32>
    %c0_96 = arith.constant 0 : index
    %c0_97 = arith.constant 0 : index
    %481 = vector.load %arg23[%c0_96, %c0_97] : memref<1x4xf32, #tpu.memory_space<vmem>>, vector<1x4xf32>
    %482 = vector.broadcast %481 : vector<1x4xf32> to vector<8x4xf32>
    %483 = arith.addf %480, %482 : vector<8x4xf32>
    %484 = vector.extract_strided_slice %483 {offsets = [0, 0], sizes = [2, 4], strides = [1, 1]} : vector<8x4xf32> to vector<2x4xf32>
    %c0_98 = arith.constant 0 : index
    %c0_99 = arith.constant 0 : index
    %485 = vector.load %arg24[%c0_98, %c0_99] : memref<2x4xf32, #tpu.memory_space<vmem>>, vector<2x4xf32>
    tpu.vector_store %arg24[%c0_98, %c0_99], %484 {strides = array<i32>} : memref<2x4xf32, #tpu.memory_space<vmem>>, vector<2x4xf32>,
    return
  }
  func.func @transform_0(%arg0: i32) -> (i32, i32, i32) {
    %c0_i32 = arith.constant 0 : i32
    %c0_i32_0 = arith.constant 0 : i32
    %c0_i32_1 = arith.constant 0 : i32
    %c0_i32_2 = arith.constant 0 : i32
    return %c0_i32, %c0_i32_0, %c0_i32_1 : i32, i32, i32
  }
  func.func @transform_1(%arg0: i32) -> (i32, i32) {
    %c0_i32 = arith.constant 0 : i32
    %c0_i32_0 = arith.constant 0 : i32
    %c0_i32_1 = arith.constant 0 : i32
    return %c0_i32, %c0_i32_0 : i32, i32
  }
  func.func @transform_2(%arg0: i32) -> (i32, i32) {
    %c0_i32 = arith.constant 0 : i32
    %c0_i32_0 = arith.constant 0 : i32
    %c0_i32_1 = arith.constant 0 : i32
    return %c0_i32, %c0_i32_0 : i32, i32
  }
  func.func @transform_3(%arg0: i32) -> (i32, i32) {
    %c0_i32 = arith.constant 0 : i32
    %c0_i32_0 = arith.constant 0 : i32
    %c0_i32_1 = arith.constant 0 : i32
    return %c0_i32, %c0_i32_0 : i32, i32
  }
  func.func @transform_4(%arg0: i32) -> (i32, i32) {
    %c0_i32 = arith.constant 0 : i32
    %c0_i32_0 = arith.constant 0 : i32
    %c0_i32_1 = arith.constant 0 : i32
    return %c0_i32, %c0_i32_0 : i32, i32
  }
  func.func @transform_5(%arg0: i32) -> (i32, i32) {
    %c0_i32 = arith.constant 0 : i32
    %c0_i32_0 = arith.constant 0 : i32
    %c0_i32_1 = arith.constant 0 : i32
    return %c0_i32, %c0_i32_0 : i32, i32
  }
  func.func @transform_6(%arg0: i32) -> (i32, i32) {
    %c0_i32 = arith.constant 0 : i32
    %c0_i32_0 = arith.constant 0 : i32
    %c0_i32_1 = arith.constant 0 : i32
    return %c0_i32, %c0_i32_0 : i32, i32
  }
  func.func @transform_7(%arg0: i32) -> (i32, i32) {
    %c0_i32 = arith.constant 0 : i32
    %c0_i32_0 = arith.constant 0 : i32
    %c0_i32_1 = arith.constant 0 : i32
    return %c0_i32, %c0_i32_0 : i32, i32
  }
  func.func @transform_8(%arg0: i32) -> (i32, i32) {
    %c0_i32 = arith.constant 0 : i32
    %c0_i32_0 = arith.constant 0 : i32
    %c0_i32_1 = arith.constant 0 : i32
    return %c0_i32, %c0_i32_0 : i32, i32
  }
  func.func @transform_9(%arg0: i32) -> (i32, i32) {
    %c0_i32 = arith.constant 0 : i32
    %c0_i32_0 = arith.constant 0 : i32
    %c0_i32_1 = arith.constant 0 : i32
    return %c0_i32, %c0_i32_0 : i32, i32
  }
  func.func @transform_10(%arg0: i32) -> (i32, i32) {
    %c0_i32 = arith.constant 0 : i32
    %c0_i32_0 = arith.constant 0 : i32
    %c0_i32_1 = arith.constant 0 : i32
    return %c0_i32, %c0_i32_0 : i32, i32
  }
  func.func @transform_11(%arg0: i32) -> (i32, i32) {
    %c0_i32 = arith.constant 0 : i32
    %c0_i32_0 = arith.constant 0 : i32
    %c0_i32_1 = arith.constant 0 : i32
    return %c0_i32, %c0_i32_0 : i32, i32
  }
  func.func @transform_12(%arg0: i32) -> (i32, i32) {
    %c0_i32 = arith.constant 0 : i32
    %c0_i32_0 = arith.constant 0 : i32
    %c0_i32_1 = arith.constant 0 : i32
    return %c0_i32, %c0_i32_0 : i32, i32
  }
  func.func @transform_13(%arg0: i32) -> (i32, i32) {
    %c0_i32 = arith.constant 0 : i32
    %c0_i32_0 = arith.constant 0 : i32
    %c0_i32_1 = arith.constant 0 : i32
    return %c0_i32, %c0_i32_0 : i32, i32
  }
  func.func @transform_14(%arg0: i32) -> (i32, i32) {
    %c0_i32 = arith.constant 0 : i32
    %c0_i32_0 = arith.constant 0 : i32
    %c0_i32_1 = arith.constant 0 : i32
    return %c0_i32, %c0_i32_0 : i32, i32
  }
  func.func @transform_15(%arg0: i32) -> (i32, i32) {
    %c0_i32 = arith.constant 0 : i32
    %c0_i32_0 = arith.constant 0 : i32
    %c0_i32_1 = arith.constant 0 : i32
    return %c0_i32, %c0_i32_0 : i32, i32
  }
  func.func @transform_16(%arg0: i32) -> (i32, i32) {
    %c0_i32 = arith.constant 0 : i32
    %c0_i32_0 = arith.constant 0 : i32
    %c0_i32_1 = arith.constant 0 : i32
    return %c0_i32, %c0_i32_0 : i32, i32
  }
  func.func @transform_17(%arg0: i32) -> (i32, i32) {
    %c0_i32 = arith.constant 0 : i32
    %c0_i32_0 = arith.constant 0 : i32
    %c0_i32_1 = arith.constant 0 : i32
    return %c0_i32, %c0_i32_0 : i32, i32
  }
  func.func @transform_18(%arg0: i32) -> (i32, i32) {
    %c0_i32 = arith.constant 0 : i32
    %c0_i32_0 = arith.constant 0 : i32
    %c0_i32_1 = arith.constant 0 : i32
    return %c0_i32, %c0_i32_0 : i32, i32
  }
  func.func @transform_19(%arg0: i32) -> (i32, i32) {
    %c0_i32 = arith.constant 0 : i32
    %c0_i32_0 = arith.constant 0 : i32
    %c0_i32_1 = arith.constant 0 : i32
    return %c0_i32, %c0_i32_0 : i32, i32
  }
  func.func @transform_20(%arg0: i32) -> (i32, i32) {
    %c0_i32 = arith.constant 0 : i32
    %c0_i32_0 = arith.constant 0 : i32
    %c0_i32_1 = arith.constant 0 : i32
    return %c0_i32, %c0_i32_0 : i32, i32
  }
  func.func @transform_21(%arg0: i32) -> (i32, i32) {
    %c0_i32 = arith.constant 0 : i32
    %c0_i32_0 = arith.constant 0 : i32
    %c0_i32_1 = arith.constant 0 : i32
    return %c0_i32, %c0_i32_0 : i32, i32
  }
  func.func @transform_22(%arg0: i32) -> (i32, i32) {
    %c0_i32 = arith.constant 0 : i32
    %c0_i32_0 = arith.constant 0 : i32
    %c0_i32_1 = arith.constant 0 : i32
    return %c0_i32, %c0_i32_0 : i32, i32
  }
  func.func @transform_23(%arg0: i32) -> (i32, i32) {
    %c0_i32 = arith.constant 0 : i32
    %c0_i32_0 = arith.constant 0 : i32
    %c0_i32_1 = arith.constant 0 : i32
    return %c0_i32, %c0_i32_0 : i32, i32
  }
}

</mosaic_0001>

<llo_original>
// kernel: forward.1
$region0: #{forward.1}
  #allocation0 [shape = 'u32[]', space=smem, size = 0x4, offset = 0x4, fixed_abs, tag = 'smem constant byte address 0x4 - core index']
  #allocation1 [shape = 'u32[144,128]{1,0:T(1,128)}', space=vmem, size = 0x12000, scoped, tag = 'internal scratch']
  #allocation2 [shape = 'f32[1,1]{1,0:T(1,128)S(1)}', space=vmem, size = 0x200, scoped, tag = 'scoped memory for forward.1']
  %s0 = inlined_call_operand.hbm [shape: f32[2,8,16], index: 0, kind: input, shape index: {}]
  %s1 = inlined_call_operand.vmem [shape: bf16[64,8], index: 1, kind: input, shape index: {}]
  %s2 = inlined_call_operand.vmem [shape: bf16[64,8], index: 2, kind: input, shape index: {}]
  %s3 = inlined_call_operand.vmem [shape: bf16[64,8], index: 3, kind: input, shape index: {}]
  %s4 = inlined_call_operand.vmem [shape: bf16[64,8], index: 4, kind: input, shape index: {}]
  %s5 = inlined_call_operand.hbm [shape: bf16[16,256], index: 5, kind: input, shape index: {}]
  %s6 = inlined_call_operand.hbm [shape: bf16[16,256], index: 6, kind: input, shape index: {}]
  %s7 = inlined_call_operand.vmem [shape: bf16[64,256], index: 7, kind: input, shape index: {}]
  %s8 = inlined_call_operand.hbm [shape: f32[1,256], index: 8, kind: input, shape index: {}]
  %s9 = inlined_call_operand.vmem [shape: bf16[64,256], index: 9, kind: input, shape index: {}]
  %s10 = inlined_call_operand.vmem [shape: bf16[64,256], index: 10, kind: input, shape index: {}]
  %s11 = inlined_call_operand.vmem [shape: bf16[64,256], index: 11, kind: input, shape index: {}]
  %s12 = inlined_call_operand.hbm [shape: f32[1,256], index: 12, kind: input, shape index: {}]
  %s13 = inlined_call_operand.vmem [shape: bf16[64,32], index: 13, kind: input, shape index: {}]
  %s14 = inlined_call_operand.vmem [shape: f32[1,32], index: 14, kind: input, shape index: {}]
  %s15 = inlined_call_operand.vmem [shape: f32[1,32], index: 15, kind: input, shape index: {}]
  %s16 = inlined_call_operand.<no memory space> [shape: f32[1,1], index: 16, kind: input, shape index: {}]
  %s17 = inlined_call_operand.vmem [shape: bf16[64,32], index: 17, kind: input, shape index: {}]
  %s18 = inlined_call_operand.vmem [shape: f32[1,32], index: 18, kind: input, shape index: {}]
  %s19 = inlined_call_operand.vmem [shape: bf16[32,16], index: 19, kind: input, shape index: {}]
  %s20 = inlined_call_operand.vmem [shape: f32[1,16], index: 20, kind: input, shape index: {}]
  %s21 = inlined_call_operand.vmem [shape: bf16[16,4], index: 21, kind: input, shape index: {}]
  %s22 = inlined_call_operand.vmem [shape: f32[1,4], index: 22, kind: input, shape index: {}]
  %s23 = inlined_call_operand.hbm [shape: f32[2,4], index: 23, kind: output, shape index: {}]
  %s24 = sld [smem:[#allocation0]]
  $region122: #{forward.1} parent=0
    _
  %s26 = ssub.s32 1, %s24
  %s27 = scalar_select 0, %s26, %s24
  %v28 = vstv %s16
  %29 = vst [vmem:[#allocation2] sm:$0x1] %v28
  $region1: #{forward.1} parent=0
    #allocation3 [shape = 'u8[8192]{0}', space=vmem, size = 0x2000, scoped, tag = 'input window, operand 0, single buffered']
    #allocation4 [shape = 's32[1]{0}', space=sflag, size = 0x4, scoped, tag = 'scoped memory for forward.1']
    #allocation5 [shape = 's32[1]{0}', space=sflag, size = 0x4, scoped, tag = 'scoped memory for forward.1']
    #allocation6 [shape = 'u8[8192]{0}', space=vmem, size = 0x2000, scoped, tag = 'input window, operand 5, single buffered']
    #allocation7 [shape = 's32[1]{0}', space=sflag, size = 0x4, scoped, tag = 'scoped memory for forward.1']
    #allocation8 [shape = 'u8[8192]{0}', space=vmem, size = 0x2000, scoped, tag = 'input window, operand 6, single buffered']
    #allocation9 [shape = 'u8[1024]{0}', space=vmem, size = 0x400, scoped, tag = 'input window, operand 8, single buffered']
    #allocation10 [shape = 's32[1]{0}', space=sflag, size = 0x4, scoped, tag = 'scoped memory for forward.1']
    #allocation11 [shape = 'u8[1024]{0}', space=vmem, size = 0x400, scoped, tag = 'input window, operand 12, single buffered']
    #allocation12 [shape = 'u8[1024]{0}', space=vmem, size = 0x400, scoped, tag = 'output window, operand 0, single buffered']
    %30 = vsyncpa [#allocation4], 0
    %31 = vsyncpa [#allocation7], 0
    %32 = vsyncpa [#allocation10], 0
    %33 = vsyncpa [#allocation5], 0
    // Predicated region
    $region2: #{forward.1} parent=1 // pred_check
      _
    $region3: #{forward.1} parent=1 // pred_check_branch
      %35 = sbr.rel (0) target = $region5
    $region4: #{forward.1} parent=1 // pred_region
      %s37 = ssub.s32 256, 256
      %38 = vsyncadd [#allocation4], %s37
      %s39 = sshll.u32 [#allocation3], 4
      %s40 = int_to_ptr.vmem [resolvable:$true] %s39
      %45 = dma.hbm_to_vmem [thread:$0]  %s0, 256, %s40, [#allocation4], 128, 128, 8
    $region5: #{forward.1} parent=1 // pred_fallthru
      _
    // Predicated region
    $region6: #{forward.1} parent=1 // pred_check
      _
    $region7: #{forward.1} parent=1 // pred_check_branch
      %47 = sbr.rel (0) target = $region9
    $region8: #{forward.1} parent=1 // pred_region
      _
    $region9: #{forward.1} parent=1 // pred_fallthru
      _
    // Predicated region
    $region10: #{forward.1} parent=1 // pred_check
      _
    $region11: #{forward.1} parent=1 // pred_check_branch
      %49 = sbr.rel (0) target = $region13
    $region12: #{forward.1} parent=1 // pred_region
      _
    $region13: #{forward.1} parent=1 // pred_fallthru
      _
    // Predicated region
    $region14: #{forward.1} parent=1 // pred_check
      _
    $region15: #{forward.1} parent=1 // pred_check_branch
      %51 = sbr.rel (0) target = $region17
    $region16: #{forward.1} parent=1 // pred_region
      _
    $region17: #{forward.1} parent=1 // pred_fallthru
      _
    // Predicated region
    $region18: #{forward.1} parent=1 // pred_check
      _
    $region19: #{forward.1} parent=1 // pred_check_branch
      %53 = sbr.rel (0) target = $region21
    $region20: #{forward.1} parent=1 // pred_region
      _
    $region21: #{forward.1} parent=1 // pred_fallthru
      _
    // Predicated region
    $region22: #{forward.1} parent=1 // pred_check
      _
    $region23: #{forward.1} parent=1 // pred_check_branch
      %55 = sbr.rel (0) target = $region25
    $region24: #{forward.1} parent=1 // pred_region
      %s57 = ssub.s32 256, 256
      %58 = vsyncadd [#allocation7], %s57
      %s59 = sshll.u32 [#allocation6], 4
      %s60 = int_to_ptr.vmem [resolvable:$true] %s59
      %65 = dma.hbm_to_vmem [thread:$0]  %s5, 256, %s60, [#allocation7], 128, 128, 8
    $region25: #{forward.1} parent=1 // pred_fallthru
      _
    // Predicated region
    $region26: #{forward.1} parent=1 // pred_check
      _
    $region27: #{forward.1} parent=1 // pred_check_branch
      %67 = sbr.rel (0) target = $region29
    $region28: #{forward.1} parent=1 // pred_region
      %s69 = ssub.s32 256, 256
      %70 = vsyncadd [#allocation7], %s69
      %s71 = sshll.u32 [#allocation8], 4
      %s72 = int_to_ptr.vmem [resolvable:$true] %s71
      %77 = dma.hbm_to_vmem [thread:$0]  %s6, 256, %s72, [#allocation7], 128, 128, 8
    $region29: #{forward.1} parent=1 // pred_fallthru
      _
    // Predicated region
    $region30: #{forward.1} parent=1 // pred_check
      _
    $region31: #{forward.1} parent=1 // pred_check_branch
      %79 = sbr.rel (0) target = $region33
    $region32: #{forward.1} parent=1 // pred_region
      _
    $region33: #{forward.1} parent=1 // pred_fallthru
      _
    // Predicated region
    $region34: #{forward.1} parent=1 // pred_check
      _
    $region35: #{forward.1} parent=1 // pred_check_branch
      %81 = sbr.rel (0) target = $region37
    $region36: #{forward.1} parent=1 // pred_region
      %s83 = ssub.s32 32, 32
      %84 = vsyncadd [#allocation10], %s83
      %s86 = sshll.u32 [#allocation9], 4
      %s87 = int_to_ptr.vmem [resolvable:$true] %s86
      %89 = dma.hbm_to_vmem [thread:$0]  %s8, 32, %s87, [#allocation10]
    $region37: #{forward.1} parent=1 // pred_fallthru
      _
    // Predicated region
    $region38: #{forward.1} parent=1 // pred_check
      _
    $region39: #{forward.1} parent=1 // pred_check_branch
      %91 = sbr.rel (0) target = $region41
    $region40: #{forward.1} parent=1 // pred_region
      _
    $region41: #{forward.1} parent=1 // pred_fallthru
      _
    // Predicated region
    $region42: #{forward.1} parent=1 // pred_check
      _
    $region43: #{forward.1} parent=1 // pred_check_branch
      %93 = sbr.rel (0) target = $region45
    $region44: #{forward.1} parent=1 // pred_region
      _
    $region45: #{forward.1} parent=1 // pred_fallthru
      _
    // Predicated region
    $region46: #{forward.1} parent=1 // pred_check
      _
    $region47: #{forward.1} parent=1 // pred_check_branch
      %95 = sbr.rel (0) target = $region49
    $region48: #{forward.1} parent=1 // pred_region
      _
    $region49: #{forward.1} parent=1 // pred_fallthru
      _
    // Predicated region
    $region50: #{forward.1} parent=1 // pred_check
      _
    $region51: #{forward.1} parent=1 // pred_check_branch
      %97 = sbr.rel (0) target = $region53
    $region52: #{forward.1} parent=1 // pred_region
      %s99 = ssub.s32 32, 32
      %100 = vsyncadd [#allocation10], %s99
      %s102 = sshll.u32 [#allocation11], 4
      %s103 = int_to_ptr.vmem [resolvable:$true] %s102
      %105 = dma.hbm_to_vmem [thread:$0]  %s12, 32, %s103, [#allocation10]
    $region53: #{forward.1} parent=1 // pred_fallthru
      _
    // Predicated region
    $region54: #{forward.1} parent=1 // pred_check
      _
    $region55: #{forward.1} parent=1 // pred_check_branch
      %107 = sbr.rel (0) target = $region57
    $region56: #{forward.1} parent=1 // pred_region
      _
    $region57: #{forward.1} parent=1 // pred_fallthru
      _
    // Predicated region
    $region58: #{forward.1} parent=1 // pred_check
      _
    $region59: #{forward.1} parent=1 // pred_check_branch
      %109 = sbr.rel (0) target = $region61
    $region60: #{forward.1} parent=1 // pred_region
      _
    $region61: #{forward.1} parent=1 // pred_fallthru
      _
    // Predicated region
    $region62: #{forward.1} parent=1 // pred_check
      _
    $region63: #{forward.1} parent=1 // pred_check_branch
      %111 = sbr.rel (0) target = $region65
    $region64: #{forward.1} parent=1 // pred_region
      _
    $region65: #{forward.1} parent=1 // pred_fallthru
      _
    // Predicated region
    $region66: #{forward.1} parent=1 // pred_check
      _
    $region67: #{forward.1} parent=1 // pred_check_branch
      %113 = sbr.rel (0) target = $region69
    $region68: #{forward.1} parent=1 // pred_region
      _
    $region69: #{forward.1} parent=1 // pred_fallthru
      _
    // Predicated region
    $region70: #{forward.1} parent=1 // pred_check
      _
    $region71: #{forward.1} parent=1 // pred_check_branch
      %115 = sbr.rel (0) target = $region73
    $region72: #{forward.1} parent=1 // pred_region
      _
    $region73: #{forward.1} parent=1 // pred_fallthru
      _
    // Predicated region
    $region74: #{forward.1} parent=1 // pred_check
      _
    $region75: #{forward.1} parent=1 // pred_check_branch
      %117 = sbr.rel (0) target = $region77
    $region76: #{forward.1} parent=1 // pred_region
      _
    $region77: #{forward.1} parent=1 // pred_fallthru
      _
    // Predicated region
    $region78: #{forward.1} parent=1 // pred_check
      _
    $region79: #{forward.1} parent=1 // pred_check_branch
      %119 = sbr.rel (0) target = $region81
    $region80: #{forward.1} parent=1 // pred_region
      _
    $region81: #{forward.1} parent=1 // pred_fallthru
      _
    // Predicated region
    $region82: #{forward.1} parent=1 // pred_check
      _
    $region83: #{forward.1} parent=1 // pred_check_branch
      %121 = sbr.rel (0) target = $region85
    $region84: #{forward.1} parent=1 // pred_region
      _
    $region85: #{forward.1} parent=1 // pred_fallthru
      _
    // Predicated region
    $region86: #{forward.1} parent=1 // pred_check
      _
    $region87: #{forward.1} parent=1 // pred_check_branch
      %123 = sbr.rel (0) target = $region89
    $region88: #{forward.1} parent=1 // pred_region
      _
    $region89: #{forward.1} parent=1 // pred_fallthru
      _
    // Predicated region
    $region90: #{forward.1} parent=1 // pred_check
      _
    $region91: #{forward.1} parent=1 // pred_check_branch
      %125 = sbr.rel (0) target = $region93
    $region92: #{forward.1} parent=1 // pred_region
      _
    $region93: #{forward.1} parent=1 // pred_fallthru
      _
    // Predicated region
    $region94: #{forward.1} parent=1 // pred_check
      _
    $region95: #{forward.1} parent=1 // pred_check_branch
      %127 = sbr.rel (0) target = $region97
    $region96: #{forward.1} parent=1 // pred_region
      %128 = dma.done [#allocation4], 256
    $region97: #{forward.1} parent=1 // pred_fallthru
      _
    // Predicated region
    $region98: #{forward.1} parent=1 // pred_check
      _
    $region99: #{forward.1} parent=1 // pred_check_branch
      %130 = sbr.rel (0) target = $region101
    $region100: #{forward.1} parent=1 // pred_region
      %131 = dma.done [#allocation7], 256
    $region101: #{forward.1} parent=1 // pred_fallthru
      _
    // Predicated region
    $region102: #{forward.1} parent=1 // pred_check
      _
    $region103: #{forward.1} parent=1 // pred_check_branch
      %133 = sbr.rel (0) target = $region105
    $region104: #{forward.1} parent=1 // pred_region
      %134 = dma.done [#allocation7], 256
    $region105: #{forward.1} parent=1 // pred_fallthru
      _
    // Predicated region
    $region106: #{forward.1} parent=1 // pred_check
      _
    $region107: #{forward.1} parent=1 // pred_check_branch
      %136 = sbr.rel (0) target = $region109
    $region108: #{forward.1} parent=1 // pred_region
      %137 = dma.done [#allocation10], 32
    $region109: #{forward.1} parent=1 // pred_fallthru
      _
    // Predicated region
    $region110: #{forward.1} parent=1 // pred_check
      _
    $region111: #{forward.1} parent=1 // pred_check_branch
      %139 = sbr.rel (0) target = $region113
    $region112: #{forward.1} parent=1 // pred_region
      %140 = dma.done [#allocation10], 32
    $region113: #{forward.1} parent=1 // pred_fallthru
      _
    %v142 = vld [vmem:[#allocation3] sm:$0xff]
    %v143 = vpack.c.bf16 %v142, %v142
    %s144 = scalar_lea.vmem [#allocation3], 8
    %v145 = vld [vmem:[%s144] sm:$0xff]
    %v146 = vpack.c.bf16 %v145, %v145
    %v147 = vld [vmem:[%s1] sm:$0xf]
    %v148 = vld [vmem:[%s1 + $0x4] sm:$0xf]
    %v149 = vld [vmem:[%s1 + $0x8] sm:$0xf]
    %v150 = vld [vmem:[%s1 + $0xc] sm:$0xf]
    %v151 = vld [vmem:[%s1 + $0x10] sm:$0xf]
    %v152 = vld [vmem:[%s1 + $0x14] sm:$0xf]
    %v153 = vld [vmem:[%s1 + $0x18] sm:$0xf]
    %v154 = vld [vmem:[%s1 + $0x1c] sm:$0xf]
    %v155 = vld [vmem:[%s2] sm:$0xf]
    %v156 = vld [vmem:[%s2 + $0x4] sm:$0xf]
    %v157 = vld [vmem:[%s2 + $0x8] sm:$0xf]
    %v158 = vld [vmem:[%s2 + $0xc] sm:$0xf]
    %v159 = vld [vmem:[%s2 + $0x10] sm:$0xf]
    %v160 = vld [vmem:[%s2 + $0x14] sm:$0xf]
    %v161 = vld [vmem:[%s2 + $0x18] sm:$0xf]
    %v162 = vld [vmem:[%s2 + $0x1c] sm:$0xf]
    %v171 = vunpack.c.l.b16 %v155
    %v172 = vunpack.c.l.b16 %v156
    %v173 = vunpack.c.l.b16 %v157
    %v174 = vunpack.c.l.b16 %v158
    %v175 = vunpack.c.l.b16 %v159
    %v176 = vunpack.c.l.b16 %v160
    %v177 = vunpack.c.l.b16 %v161
    %v178 = vunpack.c.l.b16 %v162
    %v179 = vpack.c.b16 %v172, %v171
    %v180 = vpack.c.b16 %v174, %v173
    %v181 = vpack.c.b16 %v176, %v175
    %v182 = vpack.c.b16 %v178, %v177
    %vm183 = vcmask 64512
    %v185 = vsel %vm183, %v179, 0
    %v188 = vsel %vm183, %v180, 0
    %v191 = vsel %vm183, %v181, 0
    %v194 = vsel %vm183, %v182, 0
    %vm196 = vcmask 1043456
    %v198 = vsel %vm196, %v146, 0
    %200 = vmatprep.subr.bf16.mxu0 0
    %201 = vmatpush1.bf16.msra.mxu0 0
    %202 = vmatprep.subr.bf16.mxu0 0
    %203 = vmatpush1.bf16.msra.mxu0 0
    %204 = vmatprep.subr.bf16.mxu0 0
    %205 = vmatpush1.bf16.msra.mxu0 0
    %206 = vmatprep.subr.bf16.mxu0 0
    %207 = vmatpush1.bf16.msra.mxu0 0
    %208 = vmatprep.subr.bf16.mxu0 0
    %209 = vmatpush1.bf16.msra.mxu0 0
    %210 = vmatprep.subr.bf16.mxu0 0
    %211 = vmatpush1.bf16.msra.mxu0 0
    %212 = vmatprep.subr.bf16.mxu0 0
    %213 = vmatpush1.bf16.msra.mxu0 0
    %214 = vmatprep.subr.bf16.mxu0 0
    %215 = vmatpush1.bf16.msra.mxu0 %v198
    %216 = vmatprep.subr.bf16.mxu0 0
    %217 = vmatpush2.bf16.msra.mxu0 0
    %218 = vmatprep.subr.bf16.mxu0 0
    %219 = vmatpush2.bf16.msra.mxu0 0
    %220 = vmatprep.subr.bf16.mxu0 0
    %221 = vmatpush2.bf16.msra.mxu0 0
    %222 = vmatprep.subr.bf16.mxu0 0
    %223 = vmatpush2.bf16.msra.mxu0 0
    %224 = vmatprep.subr.bf16.mxu0 0
    %225 = vmatpush2.bf16.msra.mxu0 0
    %226 = vmatprep.subr.bf16.mxu0 0
    %227 = vmatpush2.bf16.msra.mxu0 0
    %228 = vmatprep.subr.bf16.mxu0 0
    %229 = vmatpush2.bf16.msra.mxu0 0
    %230 = vmatprep.subr.bf16.mxu0 0
    %231 = vmatpush2.bf16.msra.mxu0 0
    %232 = vmatprep.mubr.bf16.mxu0 0
    %233 = vmatmul.mubr.bf16.gmra.mxu0 %v185
    %v234 = vpop.f32.mrf.mxu0
    %v235 = vadd.f32 0.0, %v234
    %v236 = vpop.f32.mrf.mxu0
    %v237 = vpop.f32.mrf.mxu0
    %v238 = vadd.f32 0.0, %v237
    %v239 = vpop.f32.mrf.mxu0
    %240 = vmatprep.mubr.bf16.mxu0 0
    %241 = vmatmul.mubr.bf16.gmra.mxu0 %v188
    %v242 = vpop.f32.mrf.mxu0
    %v243 = vadd.f32 0.0, %v242
    %v244 = vpop.f32.mrf.mxu0
    %v245 = vpop.f32.mrf.mxu0
    %v246 = vadd.f32 0.0, %v245
    %v247 = vpop.f32.mrf.mxu0
    %248 = vmatprep.mubr.bf16.mxu0 0
    %249 = vmatmul.mubr.bf16.gmra.mxu0 %v191
    %v250 = vpop.f32.mrf.mxu0
    %v251 = vadd.f32 0.0, %v250
    %v252 = vpop.f32.mrf.mxu0
    %v253 = vpop.f32.mrf.mxu0
    %v254 = vadd.f32 0.0, %v253
    %v255 = vpop.f32.mrf.mxu0
    %256 = vmatprep.mubr.bf16.mxu0 0
    %257 = vmatmul.mubr.bf16.gmra.mxu0 %v194
    %v258 = vpop.f32.mrf.mxu0
    %v259 = vadd.f32 0.0, %v258
    %v260 = vpop.f32.mrf.mxu0
    %v261 = vpop.f32.mrf.mxu0
    %v262 = vadd.f32 0.0, %v261
    %v263 = vpop.f32.mrf.mxu0
    %264 = vdwg.mxu0
    %v273 = vunpack.c.l.b16 %v147
    %v274 = vunpack.c.l.b16 %v148
    %v275 = vunpack.c.l.b16 %v149
    %v276 = vunpack.c.l.b16 %v150
    %v277 = vunpack.c.l.b16 %v151
    %v278 = vunpack.c.l.b16 %v152
    %v279 = vunpack.c.l.b16 %v153
    %v280 = vunpack.c.l.b16 %v154
    %v281 = vpack.c.b16 %v274, %v273
    %v282 = vpack.c.b16 %v276, %v275
    %v283 = vpack.c.b16 %v278, %v277
    %v284 = vpack.c.b16 %v280, %v279
    %v286 = vsel %vm183, %v281, 0
    %v289 = vsel %vm183, %v282, 0
    %v292 = vsel %vm183, %v283, 0
    %v295 = vsel %vm183, %v284, 0
    %v298 = vsel %vm196, %v143, 0
    %300 = vmatprep.subr.bf16.mxu0 0
    %301 = vmatpush1.bf16.msra.mxu0 0
    %302 = vmatprep.subr.bf16.mxu0 0
    %303 = vmatpush1.bf16.msra.mxu0 0
    %304 = vmatprep.subr.bf16.mxu0 0
    %305 = vmatpush1.bf16.msra.mxu0 0
    %306 = vmatprep.subr.bf16.mxu0 0
    %307 = vmatpush1.bf16.msra.mxu0 0
    %308 = vmatprep.subr.bf16.mxu0 0
    %309 = vmatpush1.bf16.msra.mxu0 0
    %310 = vmatprep.subr.bf16.mxu0 0
    %311 = vmatpush1.bf16.msra.mxu0 0
    %312 = vmatprep.subr.bf16.mxu0 0
    %313 = vmatpush1.bf16.msra.mxu0 0
    %314 = vmatprep.subr.bf16.mxu0 0
    %315 = vmatpush1.bf16.msra.mxu0 %v298
    %316 = vmatprep.subr.bf16.mxu0 0
    %317 = vmatpush2.bf16.msra.mxu0 0
    %318 = vmatprep.subr.bf16.mxu0 0
    %319 = vmatpush2.bf16.msra.mxu0 0
    %320 = vmatprep.subr.bf16.mxu0 0
    %321 = vmatpush2.bf16.msra.mxu0 0
    %322 = vmatprep.subr.bf16.mxu0 0
    %323 = vmatpush2.bf16.msra.mxu0 0
    %324 = vmatprep.subr.bf16.mxu0 0
    %325 = vmatpush2.bf16.msra.mxu0 0
    %326 = vmatprep.subr.bf16.mxu0 0
    %327 = vmatpush2.bf16.msra.mxu0 0
    %328 = vmatprep.subr.bf16.mxu0 0
    %329 = vmatpush2.bf16.msra.mxu0 0
    %330 = vmatprep.subr.bf16.mxu0 0
    %331 = vmatpush2.bf16.msra.mxu0 0
    %332 = vmatprep.mubr.bf16.mxu0 0
    %333 = vmatmul.mubr.bf16.gmra.mxu0 %v286
    %v334 = vpop.f32.mrf.mxu0
    %v335 = vadd.f32 %v235, %v334
    %v336 = vpop.f32.mrf.mxu0
    %v337 = vpop.f32.mrf.mxu0
    %v338 = vadd.f32 %v238, %v337
    %v339 = vpop.f32.mrf.mxu0
    %340 = vmatprep.mubr.bf16.mxu0 0
    %341 = vmatmul.mubr.bf16.gmra.mxu0 %v289
    %v342 = vpop.f32.mrf.mxu0
    %v343 = vadd.f32 %v243, %v342
    %v344 = vpop.f32.mrf.mxu0
    %v345 = vpop.f32.mrf.mxu0
    %v346 = vadd.f32 %v246, %v345
    %v347 = vpop.f32.mrf.mxu0
    %348 = vmatprep.mubr.bf16.mxu0 0
    %349 = vmatmul.mubr.bf16.gmra.mxu0 %v292
    %v350 = vpop.f32.mrf.mxu0
    %v351 = vadd.f32 %v251, %v350
    %v352 = vpop.f32.mrf.mxu0
    %v353 = vpop.f32.mrf.mxu0
    %v354 = vadd.f32 %v254, %v353
    %v355 = vpop.f32.mrf.mxu0
    %356 = vmatprep.mubr.bf16.mxu0 0
    %357 = vmatmul.mubr.bf16.gmra.mxu0 %v295
    %v358 = vpop.f32.mrf.mxu0
    %v359 = vadd.f32 %v259, %v358
    %v360 = vpop.f32.mrf.mxu0
    %v361 = vpop.f32.mrf.mxu0
    %v362 = vadd.f32 %v262, %v361
    %v363 = vpop.f32.mrf.mxu0
    %364 = vdwg.mxu0
    %v365 = vld [vmem:[%s3] sm:$0xf]
    %v366 = vld [vmem:[%s3 + $0x4] sm:$0xf]
    %v367 = vld [vmem:[%s3 + $0x8] sm:$0xf]
    %v368 = vld [vmem:[%s3 + $0xc] sm:$0xf]
    %v369 = vld [vmem:[%s3 + $0x10] sm:$0xf]
    %v370 = vld [vmem:[%s3 + $0x14] sm:$0xf]
    %v371 = vld [vmem:[%s3 + $0x18] sm:$0xf]
    %v372 = vld [vmem:[%s3 + $0x1c] sm:$0xf]
    %v373 = vld [vmem:[%s4] sm:$0xf]
    %v374 = vld [vmem:[%s4 + $0x4] sm:$0xf]
    %v375 = vld [vmem:[%s4 + $0x8] sm:$0xf]
    %v376 = vld [vmem:[%s4 + $0xc] sm:$0xf]
    %v377 = vld [vmem:[%s4 + $0x10] sm:$0xf]
    %v378 = vld [vmem:[%s4 + $0x14] sm:$0xf]
    %v379 = vld [vmem:[%s4 + $0x18] sm:$0xf]
    %v380 = vld [vmem:[%s4 + $0x1c] sm:$0xf]
    %v389 = vunpack.c.l.b16 %v373
    %v390 = vunpack.c.l.b16 %v374
    %v391 = vunpack.c.l.b16 %v375
    %v392 = vunpack.c.l.b16 %v376
    %v393 = vunpack.c.l.b16 %v377
    %v394 = vunpack.c.l.b16 %v378
    %v395 = vunpack.c.l.b16 %v379
    %v396 = vunpack.c.l.b16 %v380
    %v397 = vpack.c.b16 %v390, %v389
    %v398 = vpack.c.b16 %v392, %v391
    %v399 = vpack.c.b16 %v394, %v393
    %v400 = vpack.c.b16 %v396, %v395
    %v402 = vsel %vm183, %v397, 0
    %v405 = vsel %vm183, %v398, 0
    %v408 = vsel %vm183, %v399, 0
    %v411 = vsel %vm183, %v400, 0
    %413 = vmatprep.subr.bf16.mxu0 0
    %414 = vmatpush1.bf16.msra.mxu0 0
    %415 = vmatprep.subr.bf16.mxu0 0
    %416 = vmatpush1.bf16.msra.mxu0 0
    %417 = vmatprep.subr.bf16.mxu0 0
    %418 = vmatpush1.bf16.msra.mxu0 0
    %419 = vmatprep.subr.bf16.mxu0 0
    %420 = vmatpush1.bf16.msra.mxu0 0
    %421 = vmatprep.subr.bf16.mxu0 0
    %422 = vmatpush1.bf16.msra.mxu0 0
    %423 = vmatprep.subr.bf16.mxu0 0
    %424 = vmatpush1.bf16.msra.mxu0 0
    %425 = vmatprep.subr.bf16.mxu0 0
    %426 = vmatpush1.bf16.msra.mxu0 0
    %427 = vmatprep.subr.bf16.mxu0 0
    %428 = vmatpush1.bf16.msra.mxu0 %v198
    %429 = vmatprep.subr.bf16.mxu0 0
    %430 = vmatpush2.bf16.msra.mxu0 0
    %431 = vmatprep.subr.bf16.mxu0 0
    %432 = vmatpush2.bf16.msra.mxu0 0
    %433 = vmatprep.subr.bf16.mxu0 0
    %434 = vmatpush2.bf16.msra.mxu0 0
    %435 = vmatprep.subr.bf16.mxu0 0
    %436 = vmatpush2.bf16.msra.mxu0 0
    %437 = vmatprep.subr.bf16.mxu0 0
    %438 = vmatpush2.bf16.msra.mxu0 0
    %439 = vmatprep.subr.bf16.mxu0 0
    %440 = vmatpush2.bf16.msra.mxu0 0
    %441 = vmatprep.subr.bf16.mxu0 0
    %442 = vmatpush2.bf16.msra.mxu0 0
    %443 = vmatprep.subr.bf16.mxu0 0
    %444 = vmatpush2.bf16.msra.mxu0 0
    %445 = vmatprep.mubr.bf16.mxu0 0
    %446 = vmatmul.mubr.bf16.gmra.mxu0 %v402
    %v447 = vpop.f32.mrf.mxu0
    %v448 = vadd.f32 0.0, %v447
    %v449 = vpop.f32.mrf.mxu0
    %v450 = vpop.f32.mrf.mxu0
    %v451 = vadd.f32 0.0, %v450
    %v452 = vpop.f32.mrf.mxu0
    %453 = vmatprep.mubr.bf16.mxu0 0
    %454 = vmatmul.mubr.bf16.gmra.mxu0 %v405
    %v455 = vpop.f32.mrf.mxu0
    %v456 = vadd.f32 0.0, %v455
    %v457 = vpop.f32.mrf.mxu0
    %v458 = vpop.f32.mrf.mxu0
    %v459 = vadd.f32 0.0, %v458
    %v460 = vpop.f32.mrf.mxu0
    %461 = vmatprep.mubr.bf16.mxu0 0
    %462 = vmatmul.mubr.bf16.gmra.mxu0 %v408
    %v463 = vpop.f32.mrf.mxu0
    %v464 = vadd.f32 0.0, %v463
    %v465 = vpop.f32.mrf.mxu0
    %v466 = vpop.f32.mrf.mxu0
    %v467 = vadd.f32 0.0, %v466
    %v468 = vpop.f32.mrf.mxu0
    %469 = vmatprep.mubr.bf16.mxu0 0
    %470 = vmatmul.mubr.bf16.gmra.mxu0 %v411
    %v471 = vpop.f32.mrf.mxu0
    %v472 = vadd.f32 0.0, %v471
    %v473 = vpop.f32.mrf.mxu0
    %v474 = vpop.f32.mrf.mxu0
    %v475 = vadd.f32 0.0, %v474
    %v476 = vpop.f32.mrf.mxu0
    %477 = vdwg.mxu0
    %v486 = vunpack.c.l.b16 %v365
    %v487 = vunpack.c.l.b16 %v366
    %v488 = vunpack.c.l.b16 %v367
    %v489 = vunpack.c.l.b16 %v368
    %v490 = vunpack.c.l.b16 %v369
    %v491 = vunpack.c.l.b16 %v370
    %v492 = vunpack.c.l.b16 %v371
    %v493 = vunpack.c.l.b16 %v372
    %v494 = vpack.c.b16 %v487, %v486
    %v495 = vpack.c.b16 %v489, %v488
    %v496 = vpack.c.b16 %v491, %v490
    %v497 = vpack.c.b16 %v493, %v492
    %v499 = vsel %vm183, %v494, 0
    %v502 = vsel %vm183, %v495, 0
    %v505 = vsel %vm183, %v496, 0
    %v508 = vsel %vm183, %v497, 0
    %510 = vmatprep.subr.bf16.mxu0 0
    %511 = vmatpush1.bf16.msra.mxu0 0
    %512 = vmatprep.subr.bf16.mxu0 0
    %513 = vmatpush1.bf16.msra.mxu0 0
    %514 = vmatprep.subr.bf16.mxu0 0
    %515 = vmatpush1.bf16.msra.mxu0 0
    %516 = vmatprep.subr.bf16.mxu0 0
    %517 = vmatpush1.bf16.msra.mxu0 0
    %518 = vmatprep.subr.bf16.mxu0 0
    %519 = vmatpush1.bf16.msra.mxu0 0
    %520 = vmatprep.subr.bf16.mxu0 0
    %521 = vmatpush1.bf16.msra.mxu0 0
    %522 = vmatprep.subr.bf16.mxu0 0
    %523 = vmatpush1.bf16.msra.mxu0 0
    %524 = vmatprep.subr.bf16.mxu0 0
    %525 = vmatpush1.bf16.msra.mxu0 %v298
    %526 = vmatprep.subr.bf16.mxu0 0
    %527 = vmatpush2.bf16.msra.mxu0 0
    %528 = vmatprep.subr.bf16.mxu0 0
    %529 = vmatpush2.bf16.msra.mxu0 0
    %530 = vmatprep.subr.bf16.mxu0 0
    %531 = vmatpush2.bf16.msra.mxu0 0
    %532 = vmatprep.subr.bf16.mxu0 0
    %533 = vmatpush2.bf16.msra.mxu0 0
    %534 = vmatprep.subr.bf16.mxu0 0
    %535 = vmatpush2.bf16.msra.mxu0 0
    %536 = vmatprep.subr.bf16.mxu0 0
    %537 = vmatpush2.bf16.msra.mxu0 0
    %538 = vmatprep.subr.bf16.mxu0 0
    %539 = vmatpush2.bf16.msra.mxu0 0
    %540 = vmatprep.subr.bf16.mxu0 0
    %541 = vmatpush2.bf16.msra.mxu0 0
    %542 = vmatprep.mubr.bf16.mxu0 0
    %543 = vmatmul.mubr.bf16.gmra.mxu0 %v499
    %v544 = vpop.f32.mrf.mxu0
    %v545 = vadd.f32 %v448, %v544
    %v546 = vpop.f32.mrf.mxu0
    %v547 = vpop.f32.mrf.mxu0
    %v548 = vadd.f32 %v451, %v547
    %v549 = vpop.f32.mrf.mxu0
    %550 = vmatprep.mubr.bf16.mxu0 0
    %551 = vmatmul.mubr.bf16.gmra.mxu0 %v502
    %v552 = vpop.f32.mrf.mxu0
    %v553 = vadd.f32 %v456, %v552
    %v554 = vpop.f32.mrf.mxu0
    %v555 = vpop.f32.mrf.mxu0
    %v556 = vadd.f32 %v459, %v555
    %v557 = vpop.f32.mrf.mxu0
    %558 = vmatprep.mubr.bf16.mxu0 0
    %559 = vmatmul.mubr.bf16.gmra.mxu0 %v505
    %v560 = vpop.f32.mrf.mxu0
    %v561 = vadd.f32 %v464, %v560
    %v562 = vpop.f32.mrf.mxu0
    %v563 = vpop.f32.mrf.mxu0
    %v564 = vadd.f32 %v467, %v563
    %v565 = vpop.f32.mrf.mxu0
    %566 = vmatprep.mubr.bf16.mxu0 0
    %567 = vmatmul.mubr.bf16.gmra.mxu0 %v508
    %v568 = vpop.f32.mrf.mxu0
    %v569 = vadd.f32 %v472, %v568
    %v570 = vpop.f32.mrf.mxu0
    %v571 = vpop.f32.mrf.mxu0
    %v572 = vadd.f32 %v475, %v571
    %v573 = vpop.f32.mrf.mxu0
    %574 = vdwg.mxu0
    %v575 = vpack.c.bf16 %v338, %v335
    %v576 = vpack.c.bf16 %v346, %v343
    %v577 = vpack.c.bf16 %v354, %v351
    %v578 = vpack.c.bf16 %v362, %v359
    %v579 = vpack.c.bf16 %v548, %v545
    %v580 = vpack.c.bf16 %v556, %v553
    %v581 = vpack.c.bf16 %v564, %v561
    %v582 = vpack.c.bf16 %v572, %v569
    %v583 = vld [vmem:[#allocation6] sm:$0xff]
    %v584 = vld [vmem:[#allocation6 + $0x8] sm:$0xff]
    %v585 = vld [vmem:[#allocation8] sm:$0xff]
    %v586 = vld [vmem:[#allocation8 + $0x8] sm:$0xff]
    %v587 = vld [vmem:[%s7] sm:$0xff]
    %v588 = vld [vmem:[%s7 + $0x8] sm:$0xff]
    %v589 = vld [vmem:[%s7 + $0x10] sm:$0xff]
    %v590 = vld [vmem:[%s7 + $0x18] sm:$0xff]
    %v591 = vld [vmem:[%s7 + $0x20] sm:$0xff]
    %v592 = vld [vmem:[%s7 + $0x28] sm:$0xff]
    %v593 = vld [vmem:[%s7 + $0x30] sm:$0xff]
    %v594 = vld [vmem:[%s7 + $0x38] sm:$0xff]
    %v595 = vld [vmem:[#allocation9] sm:$0x3]
    %v598 = vunpack.c.l.b16 %v585
    %v599 = vunpack.c.h.b16 %v585
    %v600 = vunpack.c.l.b16 %v586
    %v601 = vunpack.c.h.b16 %v586
    %v602 = vpack.c.b16 %v600, %v598
    %v603 = vpack.c.b16 %v601, %v599
    %vm606 = vcmask 130048
    %v608 = vsel %vm606, %v579, 0
    %v611 = vsel %vm606, %v580, 0
    %v614 = vsel %vm606, %v581, 0
    %v617 = vsel %vm606, %v582, 0
    %619 = vmatprep.subr.bf16.mxu0 0
    %620 = vmatpush1.bf16.msra.mxu0 0
    %621 = vmatprep.subr.bf16.mxu0 0
    %622 = vmatpush1.bf16.msra.mxu0 0
    %623 = vmatprep.subr.bf16.mxu0 0
    %624 = vmatpush1.bf16.msra.mxu0 0
    %625 = vmatprep.subr.bf16.mxu0 0
    %626 = vmatpush1.bf16.msra.mxu0 0
    %627 = vmatprep.subr.bf16.mxu0 0
    %628 = vmatpush1.bf16.msra.mxu0 0
    %629 = vmatprep.subr.bf16.mxu0 0
    %630 = vmatpush1.bf16.msra.mxu0 0
    %631 = vmatprep.subr.bf16.mxu0 0
    %632 = vmatpush1.bf16.msra.mxu0 0
    %633 = vmatprep.subr.bf16.mxu0 %v603
    %634 = vmatpush1.bf16.msra.mxu0 %v602
    %635 = vmatprep.subr.bf16.mxu0 0
    %636 = vmatpush2.bf16.msra.mxu0 0
    %637 = vmatprep.subr.bf16.mxu0 0
    %638 = vmatpush2.bf16.msra.mxu0 0
    %639 = vmatprep.subr.bf16.mxu0 0
    %640 = vmatpush2.bf16.msra.mxu0 0
    %641 = vmatprep.subr.bf16.mxu0 0
    %642 = vmatpush2.bf16.msra.mxu0 0
    %643 = vmatprep.subr.bf16.mxu0 0
    %644 = vmatpush2.bf16.msra.mxu0 0
    %645 = vmatprep.subr.bf16.mxu0 0
    %646 = vmatpush2.bf16.msra.mxu0 0
    %647 = vmatprep.subr.bf16.mxu0 0
    %648 = vmatpush2.bf16.msra.mxu0 0
    %649 = vmatprep.subr.bf16.mxu0 0
    %650 = vmatpush2.bf16.msra.mxu0 0
    %651 = vmatprep.mubr.bf16.mxu0 0
    %652 = vmatmul.mubr.bf16.gmra.mxu0 %v608
    %v653 = vpop.f32.mrf.mxu0
    %v654 = vadd.f32 0.0, %v653
    %v655 = vpop.f32.mrf.mxu0
    %v656 = vadd.f32 0.0, %v655
    %v657 = vpop.f32.mrf.mxu0
    %v658 = vadd.f32 0.0, %v657
    %v659 = vpop.f32.mrf.mxu0
    %v660 = vadd.f32 0.0, %v659
    %661 = vmatprep.mubr.bf16.mxu0 0
    %662 = vmatmul.mubr.bf16.gmra.mxu0 %v611
    %v663 = vpop.f32.mrf.mxu0
    %v664 = vadd.f32 0.0, %v663
    %v665 = vpop.f32.mrf.mxu0
    %v666 = vadd.f32 0.0, %v665
    %v667 = vpop.f32.mrf.mxu0
    %v668 = vadd.f32 0.0, %v667
    %v669 = vpop.f32.mrf.mxu0
    %v670 = vadd.f32 0.0, %v669
    %671 = vmatprep.mubr.bf16.mxu0 0
    %672 = vmatmul.mubr.bf16.gmra.mxu0 %v614
    %v673 = vpop.f32.mrf.mxu0
    %v674 = vadd.f32 0.0, %v673
    %v675 = vpop.f32.mrf.mxu0
    %v676 = vadd.f32 0.0, %v675
    %v677 = vpop.f32.mrf.mxu0
    %v678 = vadd.f32 0.0, %v677
    %v679 = vpop.f32.mrf.mxu0
    %v680 = vadd.f32 0.0, %v679
    %681 = vmatprep.mubr.bf16.mxu0 0
    %682 = vmatmul.mubr.bf16.gmra.mxu0 %v617
    %v683 = vpop.f32.mrf.mxu0
    %v684 = vadd.f32 0.0, %v683
    %v685 = vpop.f32.mrf.mxu0
    %v686 = vadd.f32 0.0, %v685
    %v687 = vpop.f32.mrf.mxu0
    %v688 = vadd.f32 0.0, %v687
    %v689 = vpop.f32.mrf.mxu0
    %v690 = vadd.f32 0.0, %v689
    %691 = vdwg.mxu0
    %v694 = vunpack.c.l.b16 %v583
    %v695 = vunpack.c.h.b16 %v583
    %v696 = vunpack.c.l.b16 %v584
    %v697 = vunpack.c.h.b16 %v584
    %v698 = vpack.c.b16 %v696, %v694
    %v699 = vpack.c.b16 %v697, %v695
    %v703 = vsel %vm606, %v575, 0
    %v706 = vsel %vm606, %v576, 0
    %v709 = vsel %vm606, %v577, 0
    %v712 = vsel %vm606, %v578, 0
    %714 = vmatprep.subr.bf16.mxu0 0
    %715 = vmatpush1.bf16.msra.mxu0 0
    %716 = vmatprep.subr.bf16.mxu0 0
    %717 = vmatpush1.bf16.msra.mxu0 0
    %718 = vmatprep.subr.bf16.mxu0 0
    %719 = vmatpush1.bf16.msra.mxu0 0
    %720 = vmatprep.subr.bf16.mxu0 0
    %721 = vmatpush1.bf16.msra.mxu0 0
    %722 = vmatprep.subr.bf16.mxu0 0
    %723 = vmatpush1.bf16.msra.mxu0 0
    %724 = vmatprep.subr.bf16.mxu0 0
    %725 = vmatpush1.bf16.msra.mxu0 0
    %726 = vmatprep.subr.bf16.mxu0 0
    %727 = vmatpush1.bf16.msra.mxu0 0
    %728 = vmatprep.subr.bf16.mxu0 %v699
    %729 = vmatpush1.bf16.msra.mxu0 %v698
    %730 = vmatprep.subr.bf16.mxu0 0
    %731 = vmatpush2.bf16.msra.mxu0 0
    %732 = vmatprep.subr.bf16.mxu0 0
    %733 = vmatpush2.bf16.msra.mxu0 0
    %734 = vmatprep.subr.bf16.mxu0 0
    %735 = vmatpush2.bf16.msra.mxu0 0
    %736 = vmatprep.subr.bf16.mxu0 0
    %737 = vmatpush2.bf16.msra.mxu0 0
    %738 = vmatprep.subr.bf16.mxu0 0
    %739 = vmatpush2.bf16.msra.mxu0 0
    %740 = vmatprep.subr.bf16.mxu0 0
    %741 = vmatpush2.bf16.msra.mxu0 0
    %742 = vmatprep.subr.bf16.mxu0 0
    %743 = vmatpush2.bf16.msra.mxu0 0
    %744 = vmatprep.subr.bf16.mxu0 0
    %745 = vmatpush2.bf16.msra.mxu0 0
    %746 = vmatprep.mubr.bf16.mxu0 0
    %747 = vmatmul.mubr.bf16.gmra.mxu0 %v703
    %v748 = vpop.f32.mrf.mxu0
    %v749 = vadd.f32 %v654, %v748
    %v750 = vpop.f32.mrf.mxu0
    %v751 = vadd.f32 %v656, %v750
    %v752 = vpop.f32.mrf.mxu0
    %v753 = vadd.f32 %v658, %v752
    %v754 = vpop.f32.mrf.mxu0
    %v755 = vadd.f32 %v660, %v754
    %756 = vmatprep.mubr.bf16.mxu0 0
    %757 = vmatmul.mubr.bf16.gmra.mxu0 %v706
    %v758 = vpop.f32.mrf.mxu0
    %v759 = vadd.f32 %v664, %v758
    %v760 = vpop.f32.mrf.mxu0
    %v761 = vadd.f32 %v666, %v760
    %v762 = vpop.f32.mrf.mxu0
    %v763 = vadd.f32 %v668, %v762
    %v764 = vpop.f32.mrf.mxu0
    %v765 = vadd.f32 %v670, %v764
    %766 = vmatprep.mubr.bf16.mxu0 0
    %767 = vmatmul.mubr.bf16.gmra.mxu0 %v709
    %v768 = vpop.f32.mrf.mxu0
    %v769 = vadd.f32 %v674, %v768
    %v770 = vpop.f32.mrf.mxu0
    %v771 = vadd.f32 %v676, %v770
    %v772 = vpop.f32.mrf.mxu0
    %v773 = vadd.f32 %v678, %v772
    %v774 = vpop.f32.mrf.mxu0
    %v775 = vadd.f32 %v680, %v774
    %776 = vmatprep.mubr.bf16.mxu0 0
    %777 = vmatmul.mubr.bf16.gmra.mxu0 %v712
    %v778 = vpop.f32.mrf.mxu0
    %v779 = vadd.f32 %v684, %v778
    %v780 = vpop.f32.mrf.mxu0
    %v781 = vadd.f32 %v686, %v780
    %v782 = vpop.f32.mrf.mxu0
    %v783 = vadd.f32 %v688, %v782
    %v784 = vpop.f32.mrf.mxu0
    %v785 = vadd.f32 %v690, %v784
    %786 = vdwg.mxu0
    %v788 = vlaneseq
    %v789 = vshrl.u32 %v788, 7
    %v790 = vsub.s32 0, %v789
    %v791 = vrot.slane %v595, %v790
    %v792 = vlaneseq
    %v793 = vshrl.u32 %v792, 7
    %v794 = vsub.s32 1, %v793
    %v795 = vrot.slane %v595, %v794
    %v798 = vadd.f32 %v749, %v791
    %v799 = vadd.f32 %v751, %v795
    %v800 = vadd.f32 %v753, %v791
    %v801 = vadd.f32 %v755, %v795
    %v802 = vadd.f32 %v759, %v791
    %v803 = vadd.f32 %v761, %v795
    %v804 = vadd.f32 %v763, %v791
    %v805 = vadd.f32 %v765, %v795
    %v806 = vadd.f32 %v769, %v791
    %v807 = vadd.f32 %v771, %v795
    %v808 = vadd.f32 %v773, %v791
    %v809 = vadd.f32 %v775, %v795
    %v810 = vadd.f32 %v779, %v791
    %v811 = vadd.f32 %v781, %v795
    %v812 = vadd.f32 %v783, %v791
    %v813 = vadd.f32 %v785, %v795
    %v822 = vunpack.c.l.b16 %v587
    %v823 = vunpack.c.h.b16 %v587
    %v824 = vunpack.c.l.b16 %v588
    %v825 = vunpack.c.h.b16 %v588
    %v826 = vunpack.c.l.b16 %v589
    %v827 = vunpack.c.h.b16 %v589
    %v828 = vunpack.c.l.b16 %v590
    %v829 = vunpack.c.h.b16 %v590
    %v830 = vunpack.c.l.b16 %v591
    %v831 = vunpack.c.h.b16 %v591
    %v832 = vunpack.c.l.b16 %v592
    %v833 = vunpack.c.h.b16 %v592
    %v834 = vunpack.c.l.b16 %v593
    %v835 = vunpack.c.h.b16 %v593
    %v836 = vunpack.c.l.b16 %v594
    %v837 = vunpack.c.h.b16 %v594
    %v838 = vpack.c.b16 %v824, %v822
    %v839 = vpack.c.b16 %v825, %v823
    %v840 = vpack.c.b16 %v828, %v826
    %v841 = vpack.c.b16 %v829, %v827
    %v842 = vpack.c.b16 %v832, %v830
    %v843 = vpack.c.b16 %v833, %v831
    %v844 = vpack.c.b16 %v836, %v834
    %v845 = vpack.c.b16 %v837, %v835
    %vm854 = vcmask 523264
    %v856 = vsel %vm854, 0, 0
    %858 = vmatprep.subr.bf16.mxu0 0
    %859 = vmatpush1.bf16.msra.mxu0 0
    %860 = vmatprep.subr.bf16.mxu0 0
    %861 = vmatpush1.bf16.msra.mxu0 0
    %862 = vmatprep.subr.bf16.mxu0 0
    %863 = vmatpush1.bf16.msra.mxu0 0
    %864 = vmatprep.subr.bf16.mxu0 0
    %865 = vmatpush1.bf16.msra.mxu0 0
    %866 = vmatprep.subr.bf16.mxu0 %v845
    %867 = vmatpush1.bf16.msra.mxu0 %v844
    %868 = vmatprep.subr.bf16.mxu0 %v843
    %869 = vmatpush1.bf16.msra.mxu0 %v842
    %870 = vmatprep.subr.bf16.mxu0 %v841
    %871 = vmatpush1.bf16.msra.mxu0 %v840
    %872 = vmatprep.subr.bf16.mxu0 %v839
    %873 = vmatpush1.bf16.msra.mxu0 %v838
    %874 = vmatprep.subr.bf16.mxu0 0
    %875 = vmatpush2.bf16.msra.mxu0 0
    %876 = vmatprep.subr.bf16.mxu0 0
    %877 = vmatpush2.bf16.msra.mxu0 0
    %878 = vmatprep.subr.bf16.mxu0 0
    %879 = vmatpush2.bf16.msra.mxu0 0
    %880 = vmatprep.subr.bf16.mxu0 0
    %881 = vmatpush2.bf16.msra.mxu0 0
    %882 = vmatprep.subr.bf16.mxu0 0
    %883 = vmatpush2.bf16.msra.mxu0 0
    %884 = vmatprep.subr.bf16.mxu0 0
    %885 = vmatpush2.bf16.msra.mxu0 0
    %886 = vmatprep.subr.bf16.mxu0 0
    %887 = vmatpush2.bf16.msra.mxu0 0
    %888 = vmatprep.subr.bf16.mxu0 0
    %889 = vmatpush2.bf16.msra.mxu0 0
    %890 = vmatprep.mubr.bf16.mxu0 0
    %891 = vmatmul.mubr.bf16.gmra.mxu0 %v856
    %v892 = vpop.f32.mrf.mxu0
    %v893 = vadd.f32 0.0, %v892
    %v894 = vpop.f32.mrf.mxu0
    %v895 = vadd.f32 0.0, %v894
    %v896 = vpop.f32.mrf.mxu0
    %v897 = vpop.f32.mrf.mxu0
    %898 = vdwg.mxu0
    %v899 = vadd.f32 %v798, %v893
    %v900 = vadd.f32 %v799, %v895
    %v901 = vxor.u32 %v899, 2147483648
    %v902 = vxor.u32 %v900, 2147483648
    %v903 = vmul.f32 %v901, 1.442695
    %v904 = vpow.pop %v903
    %v905 = vmul.f32 %v902, 1.442695
    %v906 = vpow.pop %v905
    %v907 = vadd.f32 %v904, 1.0
    %v908 = vadd.f32 %v906, 1.0
    %v909 = vrcp.pop %v907
    %v910 = vmul.f32 1.0, %v909
    %v911 = vrcp.pop %v908
    %v912 = vmul.f32 1.0, %v911
    %v913 = vtanh.pop %v900
    %v914 = vmul.f32 %v910, 0.0
    %916 = vrot.lane.b32.xlu0 %v913, 64
    %v917 = vpop.permute.xlu0 %916
    %v919 = vmul.f32 %v910, %v917
    %921 = vrot.lane.b32.xlu0 %v919, 64
    %v922 = vpop.permute.xlu0 %921
    %v924 = vadd.f32 %v914, %v922
    %v925 = vtanh.pop %v924
    %927 = vrot.lane.b32.xlu0 %v925, 64
    %v928 = vpop.permute.xlu0 %927
    %v930 = vmul.f32 %v912, %v928
    %v931 = vpack.c.bf16 %v930, %v930
    %v933 = vsel %vm854, %v931, 0
    %935 = vmatprep.subr.bf16.mxu0 0
    %936 = vmatpush1.bf16.msra.mxu0 0
    %937 = vmatprep.subr.bf16.mxu0 0
    %938 = vmatpush1.bf16.msra.mxu0 0
    %939 = vmatprep.subr.bf16.mxu0 0
    %940 = vmatpush1.bf16.msra.mxu0 0
    %941 = vmatprep.subr.bf16.mxu0 0
    %942 = vmatpush1.bf16.msra.mxu0 0
    %943 = vmatprep.subr.bf16.mxu0 %v845
    %944 = vmatpush1.bf16.msra.mxu0 %v844
    %945 = vmatprep.subr.bf16.mxu0 %v843
    %946 = vmatpush1.bf16.msra.mxu0 %v842
    %947 = vmatprep.subr.bf16.mxu0 %v841
    %948 = vmatpush1.bf16.msra.mxu0 %v840
    %949 = vmatprep.subr.bf16.mxu0 %v839
    %950 = vmatpush1.bf16.msra.mxu0 %v838
    %951 = vmatprep.subr.bf16.mxu0 0
    %952 = vmatpush2.bf16.msra.mxu0 0
    %953 = vmatprep.subr.bf16.mxu0 0
    %954 = vmatpush2.bf16.msra.mxu0 0
    %955 = vmatprep.subr.bf16.mxu0 0
    %956 = vmatpush2.bf16.msra.mxu0 0
    %957 = vmatprep.subr.bf16.mxu0 0
    %958 = vmatpush2.bf16.msra.mxu0 0
    %959 = vmatprep.subr.bf16.mxu0 0
    %960 = vmatpush2.bf16.msra.mxu0 0
    %961 = vmatprep.subr.bf16.mxu0 0
    %962 = vmatpush2.bf16.msra.mxu0 0
    %963 = vmatprep.subr.bf16.mxu0 0
    %964 = vmatpush2.bf16.msra.mxu0 0
    %965 = vmatprep.subr.bf16.mxu0 0
    %966 = vmatpush2.bf16.msra.mxu0 0
    %967 = vmatprep.mubr.bf16.mxu0 0
    %968 = vmatmul.mubr.bf16.gmra.mxu0 %v933
    %v969 = vpop.f32.mrf.mxu0
    %v970 = vadd.f32 0.0, %v969
    %v971 = vpop.f32.mrf.mxu0
    %v972 = vadd.f32 0.0, %v971
    %v973 = vpop.f32.mrf.mxu0
    %v974 = vpop.f32.mrf.mxu0
    %975 = vdwg.mxu0
    %v976 = vadd.f32 %v800, %v970
    %v977 = vadd.f32 %v801, %v972
    %v978 = vxor.u32 %v976, 2147483648
    %v979 = vxor.u32 %v977, 2147483648
    %v980 = vmul.f32 %v978, 1.442695
    %v981 = vpow.pop %v980
    %v982 = vmul.f32 %v979, 1.442695
    %v983 = vpow.pop %v982
    %v984 = vadd.f32 %v981, 1.0
    %v985 = vadd.f32 %v983, 1.0
    %v986 = vrcp.pop %v984
    %v987 = vmul.f32 1.0, %v986
    %v988 = vrcp.pop %v985
    %v989 = vmul.f32 1.0, %v988
    %v990 = vtanh.pop %v977
    %v991 = vmul.f32 %v987, %v924
    %993 = vrot.lane.b32.xlu0 %v990, 64
    %v994 = vpop.permute.xlu0 %993
    %v996 = vmul.f32 %v987, %v994
    %998 = vrot.lane.b32.xlu0 %v996, 64
    %v999 = vpop.permute.xlu0 %998
    %v1001 = vadd.f32 %v991, %v999
    %v1002 = vtanh.pop %v1001
    %1004 = vrot.lane.b32.xlu0 %v1002, 64
    %v1005 = vpop.permute.xlu0 %1004
    %v1007 = vmul.f32 %v989, %v1005
    %v1008 = vpack.c.bf16 %v1007, %v1007
    %v1010 = vsel %vm854, %v1008, 0
    %1012 = vmatprep.subr.bf16.mxu0 0
    %1013 = vmatpush1.bf16.msra.mxu0 0
    %1014 = vmatprep.subr.bf16.mxu0 0
    %1015 = vmatpush1.bf16.msra.mxu0 0
    %1016 = vmatprep.subr.bf16.mxu0 0
    %1017 = vmatpush1.bf16.msra.mxu0 0
    %1018 = vmatprep.subr.bf16.mxu0 0
    %1019 = vmatpush1.bf16.msra.mxu0 0
    %1020 = vmatprep.subr.bf16.mxu0 %v845
    %1021 = vmatpush1.bf16.msra.mxu0 %v844
    %1022 = vmatprep.subr.bf16.mxu0 %v843
    %1023 = vmatpush1.bf16.msra.mxu0 %v842
    %1024 = vmatprep.subr.bf16.mxu0 %v841
    %1025 = vmatpush1.bf16.msra.mxu0 %v840
    %1026 = vmatprep.subr.bf16.mxu0 %v839
    %1027 = vmatpush1.bf16.msra.mxu0 %v838
    %1028 = vmatprep.subr.bf16.mxu0 0
    %1029 = vmatpush2.bf16.msra.mxu0 0
    %1030 = vmatprep.subr.bf16.mxu0 0
    %1031 = vmatpush2.bf16.msra.mxu0 0
    %1032 = vmatprep.subr.bf16.mxu0 0
    %1033 = vmatpush2.bf16.msra.mxu0 0
    %1034 = vmatprep.subr.bf16.mxu0 0
    %1035 = vmatpush2.bf16.msra.mxu0 0
    %1036 = vmatprep.subr.bf16.mxu0 0
    %1037 = vmatpush2.bf16.msra.mxu0 0
    %1038 = vmatprep.subr.bf16.mxu0 0
    %1039 = vmatpush2.bf16.msra.mxu0 0
    %1040 = vmatprep.subr.bf16.mxu0 0
    %1041 = vmatpush2.bf16.msra.mxu0 0
    %1042 = vmatprep.subr.bf16.mxu0 0
    %1043 = vmatpush2.bf16.msra.mxu0 0
    %1044 = vmatprep.mubr.bf16.mxu0 0
    %1045 = vmatmul.mubr.bf16.gmra.mxu0 %v1010
    %v1046 = vpop.f32.mrf.mxu0
    %v1047 = vadd.f32 0.0, %v1046
    %v1048 = vpop.f32.mrf.mxu0
    %v1049 = vadd.f32 0.0, %v1048
    %v1050 = vpop.f32.mrf.mxu0
    %v1051 = vpop.f32.mrf.mxu0
    %1052 = vdwg.mxu0
    %v1053 = vadd.f32 %v802, %v1047
    %v1054 = vadd.f32 %v803, %v1049
    %v1055 = vxor.u32 %v1053, 2147483648
    %v1056 = vxor.u32 %v1054, 2147483648
    %v1057 = vmul.f32 %v1055, 1.442695
    %v1058 = vpow.pop %v1057
    %v1059 = vmul.f32 %v1056, 1.442695
    %v1060 = vpow.pop %v1059
    %v1061 = vadd.f32 %v1058, 1.0
    %v1062 = vadd.f32 %v1060, 1.0
    %v1063 = vrcp.pop %v1061
    %v1064 = vmul.f32 1.0, %v1063
    %v1065 = vrcp.pop %v1062
    %v1066 = vmul.f32 1.0, %v1065
    %v1067 = vtanh.pop %v1054
    %v1068 = vmul.f32 %v1064, %v1001
    %1070 = vrot.lane.b32.xlu0 %v1067, 64
    %v1071 = vpop.permute.xlu0 %1070
    %v1073 = vmul.f32 %v1064, %v1071
    %1075 = vrot.lane.b32.xlu0 %v1073, 64
    %v1076 = vpop.permute.xlu0 %1075
    %v1078 = vadd.f32 %v1068, %v1076
    %v1079 = vtanh.pop %v1078
    %1081 = vrot.lane.b32.xlu0 %v1079, 64
    %v1082 = vpop.permute.xlu0 %1081
    %v1084 = vmul.f32 %v1066, %v1082
    %v1085 = vpack.c.bf16 %v1084, %v1084
    %v1087 = vsel %vm854, %v1085, 0
    %1089 = vmatprep.subr.bf16.mxu0 0
    %1090 = vmatpush1.bf16.msra.mxu0 0
    %1091 = vmatprep.subr.bf16.mxu0 0
    %1092 = vmatpush1.bf16.msra.mxu0 0
    %1093 = vmatprep.subr.bf16.mxu0 0
    %1094 = vmatpush1.bf16.msra.mxu0 0
    %1095 = vmatprep.subr.bf16.mxu0 0
    %1096 = vmatpush1.bf16.msra.mxu0 0
    %1097 = vmatprep.subr.bf16.mxu0 %v845
    %1098 = vmatpush1.bf16.msra.mxu0 %v844
    %1099 = vmatprep.subr.bf16.mxu0 %v843
    %1100 = vmatpush1.bf16.msra.mxu0 %v842
    %1101 = vmatprep.subr.bf16.mxu0 %v841
    %1102 = vmatpush1.bf16.msra.mxu0 %v840
    %1103 = vmatprep.subr.bf16.mxu0 %v839
    %1104 = vmatpush1.bf16.msra.mxu0 %v838
    %1105 = vmatprep.subr.bf16.mxu0 0
    %1106 = vmatpush2.bf16.msra.mxu0 0
    %1107 = vmatprep.subr.bf16.mxu0 0
    %1108 = vmatpush2.bf16.msra.mxu0 0
    %1109 = vmatprep.subr.bf16.mxu0 0
    %1110 = vmatpush2.bf16.msra.mxu0 0
    %1111 = vmatprep.subr.bf16.mxu0 0
    %1112 = vmatpush2.bf16.msra.mxu0 0
    %1113 = vmatprep.subr.bf16.mxu0 0
    %1114 = vmatpush2.bf16.msra.mxu0 0
    %1115 = vmatprep.subr.bf16.mxu0 0
    %1116 = vmatpush2.bf16.msra.mxu0 0
    %1117 = vmatprep.subr.bf16.mxu0 0
    %1118 = vmatpush2.bf16.msra.mxu0 0
    %1119 = vmatprep.subr.bf16.mxu0 0
    %1120 = vmatpush2.bf16.msra.mxu0 0
    %1121 = vmatprep.mubr.bf16.mxu0 0
    %1122 = vmatmul.mubr.bf16.gmra.mxu0 %v1087
    %v1123 = vpop.f32.mrf.mxu0
    %v1124 = vadd.f32 0.0, %v1123
    %v1125 = vpop.f32.mrf.mxu0
    %v1126 = vadd.f32 0.0, %v1125
    %v1127 = vpop.f32.mrf.mxu0
    %v1128 = vpop.f32.mrf.mxu0
    %1129 = vdwg.mxu0
    %v1130 = vadd.f32 %v804, %v1124
    %v1131 = vadd.f32 %v805, %v1126
    %v1132 = vxor.u32 %v1130, 2147483648
    %v1133 = vxor.u32 %v1131, 2147483648
    %v1134 = vmul.f32 %v1132, 1.442695
    %v1135 = vpow.pop %v1134
    %v1136 = vmul.f32 %v1133, 1.442695
    %v1137 = vpow.pop %v1136
    %v1138 = vadd.f32 %v1135, 1.0
    %v1139 = vadd.f32 %v1137, 1.0
    %v1140 = vrcp.pop %v1138
    %v1141 = vmul.f32 1.0, %v1140
    %v1142 = vrcp.pop %v1139
    %v1143 = vmul.f32 1.0, %v1142
    %v1144 = vtanh.pop %v1131
    %v1145 = vmul.f32 %v1141, %v1078
    %1147 = vrot.lane.b32.xlu0 %v1144, 64
    %v1148 = vpop.permute.xlu0 %1147
    %v1150 = vmul.f32 %v1141, %v1148
    %1152 = vrot.lane.b32.xlu0 %v1150, 64
    %v1153 = vpop.permute.xlu0 %1152
    %v1155 = vadd.f32 %v1145, %v1153
    %v1156 = vtanh.pop %v1155
    %1158 = vrot.lane.b32.xlu0 %v1156, 64
    %v1159 = vpop.permute.xlu0 %1158
    %v1161 = vmul.f32 %v1143, %v1159
    %v1162 = vpack.c.bf16 %v1161, %v1161
    %v1164 = vsel %vm854, %v1162, 0
    %1166 = vmatprep.subr.bf16.mxu0 0
    %1167 = vmatpush1.bf16.msra.mxu0 0
    %1168 = vmatprep.subr.bf16.mxu0 0
    %1169 = vmatpush1.bf16.msra.mxu0 0
    %1170 = vmatprep.subr.bf16.mxu0 0
    %1171 = vmatpush1.bf16.msra.mxu0 0
    %1172 = vmatprep.subr.bf16.mxu0 0
    %1173 = vmatpush1.bf16.msra.mxu0 0
    %1174 = vmatprep.subr.bf16.mxu0 %v845
    %1175 = vmatpush1.bf16.msra.mxu0 %v844
    %1176 = vmatprep.subr.bf16.mxu0 %v843
    %1177 = vmatpush1.bf16.msra.mxu0 %v842
    %1178 = vmatprep.subr.bf16.mxu0 %v841
    %1179 = vmatpush1.bf16.msra.mxu0 %v840
    %1180 = vmatprep.subr.bf16.mxu0 %v839
    %1181 = vmatpush1.bf16.msra.mxu0 %v838
    %1182 = vmatprep.subr.bf16.mxu0 0
    %1183 = vmatpush2.bf16.msra.mxu0 0
    %1184 = vmatprep.subr.bf16.mxu0 0
    %1185 = vmatpush2.bf16.msra.mxu0 0
    %1186 = vmatprep.subr.bf16.mxu0 0
    %1187 = vmatpush2.bf16.msra.mxu0 0
    %1188 = vmatprep.subr.bf16.mxu0 0
    %1189 = vmatpush2.bf16.msra.mxu0 0
    %1190 = vmatprep.subr.bf16.mxu0 0
    %1191 = vmatpush2.bf16.msra.mxu0 0
    %1192 = vmatprep.subr.bf16.mxu0 0
    %1193 = vmatpush2.bf16.msra.mxu0 0
    %1194 = vmatprep.subr.bf16.mxu0 0
    %1195 = vmatpush2.bf16.msra.mxu0 0
    %1196 = vmatprep.subr.bf16.mxu0 0
    %1197 = vmatpush2.bf16.msra.mxu0 0
    %1198 = vmatprep.mubr.bf16.mxu0 0
    %1199 = vmatmul.mubr.bf16.gmra.mxu0 %v1164
    %v1200 = vpop.f32.mrf.mxu0
    %v1201 = vadd.f32 0.0, %v1200
    %v1202 = vpop.f32.mrf.mxu0
    %v1203 = vadd.f32 0.0, %v1202
    %v1204 = vpop.f32.mrf.mxu0
    %v1205 = vpop.f32.mrf.mxu0
    %1206 = vdwg.mxu0
    %v1207 = vadd.f32 %v806, %v1201
    %v1208 = vadd.f32 %v807, %v1203
    %v1209 = vxor.u32 %v1207, 2147483648
    %v1210 = vxor.u32 %v1208, 2147483648
    %v1211 = vmul.f32 %v1209, 1.442695
    %v1212 = vpow.pop %v1211
    %v1213 = vmul.f32 %v1210, 1.442695
    %v1214 = vpow.pop %v1213
    %v1215 = vadd.f32 %v1212, 1.0
    %v1216 = vadd.f32 %v1214, 1.0
    %v1217 = vrcp.pop %v1215
    %v1218 = vmul.f32 1.0, %v1217
    %v1219 = vrcp.pop %v1216
    %v1220 = vmul.f32 1.0, %v1219
    %v1221 = vtanh.pop %v1208
    %v1222 = vmul.f32 %v1218, %v1155
    %1224 = vrot.lane.b32.xlu0 %v1221, 64
    %v1225 = vpop.permute.xlu0 %1224
    %v1227 = vmul.f32 %v1218, %v1225
    %1229 = vrot.lane.b32.xlu0 %v1227, 64
    %v1230 = vpop.permute.xlu0 %1229
    %v1232 = vadd.f32 %v1222, %v1230
    %v1233 = vtanh.pop %v1232
    %1235 = vrot.lane.b32.xlu0 %v1233, 64
    %v1236 = vpop.permute.xlu0 %1235
    %v1238 = vmul.f32 %v1220, %v1236
    %v1239 = vpack.c.bf16 %v1238, %v1238
    %v1241 = vsel %vm854, %v1239, 0
    %1243 = vmatprep.subr.bf16.mxu0 0
    %1244 = vmatpush1.bf16.msra.mxu0 0
    %1245 = vmatprep.subr.bf16.mxu0 0
    %1246 = vmatpush1.bf16.msra.mxu0 0
    %1247 = vmatprep.subr.bf16.mxu0 0
    %1248 = vmatpush1.bf16.msra.mxu0 0
    %1249 = vmatprep.subr.bf16.mxu0 0
    %1250 = vmatpush1.bf16.msra.mxu0 0
    %1251 = vmatprep.subr.bf16.mxu0 %v845
    %1252 = vmatpush1.bf16.msra.mxu0 %v844
    %1253 = vmatprep.subr.bf16.mxu0 %v843
    %1254 = vmatpush1.bf16.msra.mxu0 %v842
    %1255 = vmatprep.subr.bf16.mxu0 %v841
    %1256 = vmatpush1.bf16.msra.mxu0 %v840
    %1257 = vmatprep.subr.bf16.mxu0 %v839
    %1258 = vmatpush1.bf16.msra.mxu0 %v838
    %1259 = vmatprep.subr.bf16.mxu0 0
    %1260 = vmatpush2.bf16.msra.mxu0 0
    %1261 = vmatprep.subr.bf16.mxu0 0
    %1262 = vmatpush2.bf16.msra.mxu0 0
    %1263 = vmatprep.subr.bf16.mxu0 0
    %1264 = vmatpush2.bf16.msra.mxu0 0
    %1265 = vmatprep.subr.bf16.mxu0 0
    %1266 = vmatpush2.bf16.msra.mxu0 0
    %1267 = vmatprep.subr.bf16.mxu0 0
    %1268 = vmatpush2.bf16.msra.mxu0 0
    %1269 = vmatprep.subr.bf16.mxu0 0
    %1270 = vmatpush2.bf16.msra.mxu0 0
    %1271 = vmatprep.subr.bf16.mxu0 0
    %1272 = vmatpush2.bf16.msra.mxu0 0
    %1273 = vmatprep.subr.bf16.mxu0 0
    %1274 = vmatpush2.bf16.msra.mxu0 0
    %1275 = vmatprep.mubr.bf16.mxu0 0
    %1276 = vmatmul.mubr.bf16.gmra.mxu0 %v1241
    %v1277 = vpop.f32.mrf.mxu0
    %v1278 = vadd.f32 0.0, %v1277
    %v1279 = vpop.f32.mrf.mxu0
    %v1280 = vadd.f32 0.0, %v1279
    %v1281 = vpop.f32.mrf.mxu0
    %v1282 = vpop.f32.mrf.mxu0
    %1283 = vdwg.mxu0
    %v1284 = vadd.f32 %v808, %v1278
    %v1285 = vadd.f32 %v809, %v1280
    %v1286 = vxor.u32 %v1284, 2147483648
    %v1287 = vxor.u32 %v1285, 2147483648
    %v1288 = vmul.f32 %v1286, 1.442695
    %v1289 = vpow.pop %v1288
    %v1290 = vmul.f32 %v1287, 1.442695
    %v1291 = vpow.pop %v1290
    %v1292 = vadd.f32 %v1289, 1.0
    %v1293 = vadd.f32 %v1291, 1.0
    %v1294 = vrcp.pop %v1292
    %v1295 = vmul.f32 1.0, %v1294
    %v1296 = vrcp.pop %v1293
    %v1297 = vmul.f32 1.0, %v1296
    %v1298 = vtanh.pop %v1285
    %v1299 = vmul.f32 %v1295, %v1232
    %1301 = vrot.lane.b32.xlu0 %v1298, 64
    %v1302 = vpop.permute.xlu0 %1301
    %v1304 = vmul.f32 %v1295, %v1302
    %1306 = vrot.lane.b32.xlu0 %v1304, 64
    %v1307 = vpop.permute.xlu0 %1306
    %v1309 = vadd.f32 %v1299, %v1307
    %v1310 = vtanh.pop %v1309
    %1312 = vrot.lane.b32.xlu0 %v1310, 64
    %v1313 = vpop.permute.xlu0 %1312
    %v1315 = vmul.f32 %v1297, %v1313
    %v1316 = vpack.c.bf16 %v1315, %v1315
    %v1318 = vsel %vm854, %v1316, 0
    %1320 = vmatprep.subr.bf16.mxu0 0
    %1321 = vmatpush1.bf16.msra.mxu0 0
    %1322 = vmatprep.subr.bf16.mxu0 0
    %1323 = vmatpush1.bf16.msra.mxu0 0
    %1324 = vmatprep.subr.bf16.mxu0 0
    %1325 = vmatpush1.bf16.msra.mxu0 0
    %1326 = vmatprep.subr.bf16.mxu0 0
    %1327 = vmatpush1.bf16.msra.mxu0 0
    %1328 = vmatprep.subr.bf16.mxu0 %v845
    %1329 = vmatpush1.bf16.msra.mxu0 %v844
    %1330 = vmatprep.subr.bf16.mxu0 %v843
    %1331 = vmatpush1.bf16.msra.mxu0 %v842
    %1332 = vmatprep.subr.bf16.mxu0 %v841
    %1333 = vmatpush1.bf16.msra.mxu0 %v840
    %1334 = vmatprep.subr.bf16.mxu0 %v839
    %1335 = vmatpush1.bf16.msra.mxu0 %v838
    %1336 = vmatprep.subr.bf16.mxu0 0
    %1337 = vmatpush2.bf16.msra.mxu0 0
    %1338 = vmatprep.subr.bf16.mxu0 0
    %1339 = vmatpush2.bf16.msra.mxu0 0
    %1340 = vmatprep.subr.bf16.mxu0 0
    %1341 = vmatpush2.bf16.msra.mxu0 0
    %1342 = vmatprep.subr.bf16.mxu0 0
    %1343 = vmatpush2.bf16.msra.mxu0 0
    %1344 = vmatprep.subr.bf16.mxu0 0
    %1345 = vmatpush2.bf16.msra.mxu0 0
    %1346 = vmatprep.subr.bf16.mxu0 0
    %1347 = vmatpush2.bf16.msra.mxu0 0
    %1348 = vmatprep.subr.bf16.mxu0 0
    %1349 = vmatpush2.bf16.msra.mxu0 0
    %1350 = vmatprep.subr.bf16.mxu0 0
    %1351 = vmatpush2.bf16.msra.mxu0 0
    %1352 = vmatprep.mubr.bf16.mxu0 0
    %1353 = vmatmul.mubr.bf16.gmra.mxu0 %v1318
    %v1354 = vpop.f32.mrf.mxu0
    %v1355 = vadd.f32 0.0, %v1354
    %v1356 = vpop.f32.mrf.mxu0
    %v1357 = vadd.f32 0.0, %v1356
    %v1358 = vpop.f32.mrf.mxu0
    %v1359 = vpop.f32.mrf.mxu0
    %1360 = vdwg.mxu0
    %v1361 = vadd.f32 %v810, %v1355
    %v1362 = vadd.f32 %v811, %v1357
    %v1363 = vxor.u32 %v1361, 2147483648
    %v1364 = vxor.u32 %v1362, 2147483648
    %v1365 = vmul.f32 %v1363, 1.442695
    %v1366 = vpow.pop %v1365
    %v1367 = vmul.f32 %v1364, 1.442695
    %v1368 = vpow.pop %v1367
    %v1369 = vadd.f32 %v1366, 1.0
    %v1370 = vadd.f32 %v1368, 1.0
    %v1371 = vrcp.pop %v1369
    %v1372 = vmul.f32 1.0, %v1371
    %v1373 = vrcp.pop %v1370
    %v1374 = vmul.f32 1.0, %v1373
    %v1375 = vtanh.pop %v1362
    %v1376 = vmul.f32 %v1372, %v1309
    %1378 = vrot.lane.b32.xlu0 %v1375, 64
    %v1379 = vpop.permute.xlu0 %1378
    %v1381 = vmul.f32 %v1372, %v1379
    %1383 = vrot.lane.b32.xlu0 %v1381, 64
    %v1384 = vpop.permute.xlu0 %1383
    %v1386 = vadd.f32 %v1376, %v1384
    %v1387 = vtanh.pop %v1386
    %1389 = vrot.lane.b32.xlu0 %v1387, 64
    %v1390 = vpop.permute.xlu0 %1389
    %v1392 = vmul.f32 %v1374, %v1390
    %v1393 = vpack.c.bf16 %v1392, %v1392
    %v1395 = vsel %vm854, %v1393, 0
    %1397 = vmatprep.subr.bf16.mxu0 0
    %1398 = vmatpush1.bf16.msra.mxu0 0
    %1399 = vmatprep.subr.bf16.mxu0 0
    %1400 = vmatpush1.bf16.msra.mxu0 0
    %1401 = vmatprep.subr.bf16.mxu0 0
    %1402 = vmatpush1.bf16.msra.mxu0 0
    %1403 = vmatprep.subr.bf16.mxu0 0
    %1404 = vmatpush1.bf16.msra.mxu0 0
    %1405 = vmatprep.subr.bf16.mxu0 %v845
    %1406 = vmatpush1.bf16.msra.mxu0 %v844
    %1407 = vmatprep.subr.bf16.mxu0 %v843
    %1408 = vmatpush1.bf16.msra.mxu0 %v842
    %1409 = vmatprep.subr.bf16.mxu0 %v841
    %1410 = vmatpush1.bf16.msra.mxu0 %v840
    %1411 = vmatprep.subr.bf16.mxu0 %v839
    %1412 = vmatpush1.bf16.msra.mxu0 %v838
    %1413 = vmatprep.subr.bf16.mxu0 0
    %1414 = vmatpush2.bf16.msra.mxu0 0
    %1415 = vmatprep.subr.bf16.mxu0 0
    %1416 = vmatpush2.bf16.msra.mxu0 0
    %1417 = vmatprep.subr.bf16.mxu0 0
    %1418 = vmatpush2.bf16.msra.mxu0 0
    %1419 = vmatprep.subr.bf16.mxu0 0
    %1420 = vmatpush2.bf16.msra.mxu0 0
    %1421 = vmatprep.subr.bf16.mxu0 0
    %1422 = vmatpush2.bf16.msra.mxu0 0
    %1423 = vmatprep.subr.bf16.mxu0 0
    %1424 = vmatpush2.bf16.msra.mxu0 0
    %1425 = vmatprep.subr.bf16.mxu0 0
    %1426 = vmatpush2.bf16.msra.mxu0 0
    %1427 = vmatprep.subr.bf16.mxu0 0
    %1428 = vmatpush2.bf16.msra.mxu0 0
    %1429 = vmatprep.mubr.bf16.mxu0 0
    %1430 = vmatmul.mubr.bf16.gmra.mxu0 %v1395
    %v1431 = vpop.f32.mrf.mxu0
    %v1432 = vadd.f32 0.0, %v1431
    %v1433 = vpop.f32.mrf.mxu0
    %v1434 = vadd.f32 0.0, %v1433
    %v1435 = vpop.f32.mrf.mxu0
    %v1436 = vpop.f32.mrf.mxu0
    %1437 = vdwg.mxu0
    %v1438 = vadd.f32 %v812, %v1432
    %v1439 = vadd.f32 %v813, %v1434
    %v1440 = vxor.u32 %v1438, 2147483648
    %v1441 = vxor.u32 %v1439, 2147483648
    %v1442 = vmul.f32 %v1440, 1.442695
    %v1443 = vpow.pop %v1442
    %v1444 = vmul.f32 %v1441, 1.442695
    %v1445 = vpow.pop %v1444
    %v1446 = vadd.f32 %v1443, 1.0
    %v1447 = vadd.f32 %v1445, 1.0
    %v1448 = vrcp.pop %v1446
    %v1449 = vmul.f32 1.0, %v1448
    %v1450 = vrcp.pop %v1447
    %v1451 = vmul.f32 1.0, %v1450
    %v1452 = vtanh.pop %v1439
    %v1453 = vmul.f32 %v1449, %v1386
    %1455 = vrot.lane.b32.xlu0 %v1452, 64
    %v1456 = vpop.permute.xlu0 %1455
    %v1458 = vmul.f32 %v1449, %v1456
    %1460 = vrot.lane.b32.xlu0 %v1458, 64
    %v1461 = vpop.permute.xlu0 %1460
    %v1463 = vadd.f32 %v1453, %v1461
    %v1464 = vtanh.pop %v1463
    %1466 = vrot.lane.b32.xlu0 %v1464, 64
    %v1467 = vpop.permute.xlu0 %1466
    %v1469 = vmul.f32 %v1451, %v1467
    %v1470 = vpack.c.bf16 %v1007, %v930
    %v1471 = vpack.c.bf16 %v1161, %v1084
    %v1472 = vpack.c.bf16 %v1315, %v1238
    %v1473 = vpack.c.bf16 %v1469, %v1392
    %v1474 = vpack.c.bf16 %v1392, %v1469
    %v1475 = vpack.c.bf16 %v1238, %v1315
    %v1476 = vpack.c.bf16 %v1084, %v1161
    %v1477 = vpack.c.bf16 %v930, %v1007
    %v1478 = vld [vmem:[%s9] sm:$0xff]
    %v1479 = vld [vmem:[%s9 + $0x8] sm:$0xff]
    %v1480 = vld [vmem:[%s9 + $0x10] sm:$0xff]
    %v1481 = vld [vmem:[%s9 + $0x18] sm:$0xff]
    %v1482 = vld [vmem:[%s9 + $0x20] sm:$0xff]
    %v1483 = vld [vmem:[%s9 + $0x28] sm:$0xff]
    %v1484 = vld [vmem:[%s9 + $0x30] sm:$0xff]
    %v1485 = vld [vmem:[%s9 + $0x38] sm:$0xff]
    %v1486 = vld [vmem:[%s10] sm:$0xff]
    %v1487 = vld [vmem:[%s10 + $0x8] sm:$0xff]
    %v1488 = vld [vmem:[%s10 + $0x10] sm:$0xff]
    %v1489 = vld [vmem:[%s10 + $0x18] sm:$0xff]
    %v1490 = vld [vmem:[%s10 + $0x20] sm:$0xff]
    %v1491 = vld [vmem:[%s10 + $0x28] sm:$0xff]
    %v1492 = vld [vmem:[%s10 + $0x30] sm:$0xff]
    %v1493 = vld [vmem:[%s10 + $0x38] sm:$0xff]
    %v1494 = vld [vmem:[%s11] sm:$0xff]
    %v1495 = vld [vmem:[%s11 + $0x8] sm:$0xff]
    %v1496 = vld [vmem:[%s11 + $0x10] sm:$0xff]
    %v1497 = vld [vmem:[%s11 + $0x18] sm:$0xff]
    %v1498 = vld [vmem:[%s11 + $0x20] sm:$0xff]
    %v1499 = vld [vmem:[%s11 + $0x28] sm:$0xff]
    %v1500 = vld [vmem:[%s11 + $0x30] sm:$0xff]
    %v1501 = vld [vmem:[%s11 + $0x38] sm:$0xff]
    %v1502 = vld [vmem:[#allocation11] sm:$0x3]
    %v1511 = vunpack.c.l.b16 %v1486
    %v1512 = vunpack.c.h.b16 %v1486
    %v1513 = vunpack.c.l.b16 %v1487
    %v1514 = vunpack.c.h.b16 %v1487
    %v1515 = vunpack.c.l.b16 %v1488
    %v1516 = vunpack.c.h.b16 %v1488
    %v1517 = vunpack.c.l.b16 %v1489
    %v1518 = vunpack.c.h.b16 %v1489
    %v1519 = vunpack.c.l.b16 %v1490
    %v1520 = vunpack.c.h.b16 %v1490
    %v1521 = vunpack.c.l.b16 %v1491
    %v1522 = vunpack.c.h.b16 %v1491
    %v1523 = vunpack.c.l.b16 %v1492
    %v1524 = vunpack.c.h.b16 %v1492
    %v1525 = vunpack.c.l.b16 %v1493
    %v1526 = vunpack.c.h.b16 %v1493
    %v1527 = vpack.c.b16 %v1513, %v1511
    %v1528 = vpack.c.b16 %v1514, %v1512
    %v1529 = vpack.c.b16 %v1517, %v1515
    %v1530 = vpack.c.b16 %v1518, %v1516
    %v1531 = vpack.c.b16 %v1521, %v1519
    %v1532 = vpack.c.b16 %v1522, %v1520
    %v1533 = vpack.c.b16 %v1525, %v1523
    %v1534 = vpack.c.b16 %v1526, %v1524
    %v1544 = vsel %vm854, %v1474, 0
    %v1547 = vsel %vm854, %v1475, 0
    %v1550 = vsel %vm854, %v1476, 0
    %v1553 = vsel %vm854, %v1477, 0
    %1555 = vmatprep.subr.bf16.mxu0 0
    %1556 = vmatpush1.bf16.msra.mxu0 0
    %1557 = vmatprep.subr.bf16.mxu0 0
    %1558 = vmatpush1.bf16.msra.mxu0 0
    %1559 = vmatprep.subr.bf16.mxu0 0
    %1560 = vmatpush1.bf16.msra.mxu0 0
    %1561 = vmatprep.subr.bf16.mxu0 0
    %1562 = vmatpush1.bf16.msra.mxu0 0
    %1563 = vmatprep.subr.bf16.mxu0 %v1534
    %1564 = vmatpush1.bf16.msra.mxu0 %v1533
    %1565 = vmatprep.subr.bf16.mxu0 %v1532
    %1566 = vmatpush1.bf16.msra.mxu0 %v1531
    %1567 = vmatprep.subr.bf16.mxu0 %v1530
    %1568 = vmatpush1.bf16.msra.mxu0 %v1529
    %1569 = vmatprep.subr.bf16.mxu0 %v1528
    %1570 = vmatpush1.bf16.msra.mxu0 %v1527
    %1571 = vmatprep.subr.bf16.mxu0 0
    %1572 = vmatpush2.bf16.msra.mxu0 0
    %1573 = vmatprep.subr.bf16.mxu0 0
    %1574 = vmatpush2.bf16.msra.mxu0 0
    %1575 = vmatprep.subr.bf16.mxu0 0
    %1576 = vmatpush2.bf16.msra.mxu0 0
    %1577 = vmatprep.subr.bf16.mxu0 0
    %1578 = vmatpush2.bf16.msra.mxu0 0
    %1579 = vmatprep.subr.bf16.mxu0 0
    %1580 = vmatpush2.bf16.msra.mxu0 0
    %1581 = vmatprep.subr.bf16.mxu0 0
    %1582 = vmatpush2.bf16.msra.mxu0 0
    %1583 = vmatprep.subr.bf16.mxu0 0
    %1584 = vmatpush2.bf16.msra.mxu0 0
    %1585 = vmatprep.subr.bf16.mxu0 0
    %1586 = vmatpush2.bf16.msra.mxu0 0
    %1587 = vmatprep.mubr.bf16.mxu0 0
    %1588 = vmatmul.mubr.bf16.gmra.mxu0 %v1544
    %v1589 = vpop.f32.mrf.mxu0
    %v1590 = vadd.f32 0.0, %v1589
    %v1591 = vpop.f32.mrf.mxu0
    %v1592 = vadd.f32 0.0, %v1591
    %v1593 = vpop.f32.mrf.mxu0
    %v1594 = vadd.f32 0.0, %v1593
    %v1595 = vpop.f32.mrf.mxu0
    %v1596 = vadd.f32 0.0, %v1595
    %1597 = vmatprep.mubr.bf16.mxu0 0
    %1598 = vmatmul.mubr.bf16.gmra.mxu0 %v1547
    %v1599 = vpop.f32.mrf.mxu0
    %v1600 = vadd.f32 0.0, %v1599
    %v1601 = vpop.f32.mrf.mxu0
    %v1602 = vadd.f32 0.0, %v1601
    %v1603 = vpop.f32.mrf.mxu0
    %v1604 = vadd.f32 0.0, %v1603
    %v1605 = vpop.f32.mrf.mxu0
    %v1606 = vadd.f32 0.0, %v1605
    %1607 = vmatprep.mubr.bf16.mxu0 0
    %1608 = vmatmul.mubr.bf16.gmra.mxu0 %v1550
    %v1609 = vpop.f32.mrf.mxu0
    %v1610 = vadd.f32 0.0, %v1609
    %v1611 = vpop.f32.mrf.mxu0
    %v1612 = vadd.f32 0.0, %v1611
    %v1613 = vpop.f32.mrf.mxu0
    %v1614 = vadd.f32 0.0, %v1613
    %v1615 = vpop.f32.mrf.mxu0
    %v1616 = vadd.f32 0.0, %v1615
    %1617 = vmatprep.mubr.bf16.mxu0 0
    %1618 = vmatmul.mubr.bf16.gmra.mxu0 %v1553
    %v1619 = vpop.f32.mrf.mxu0
    %v1620 = vadd.f32 0.0, %v1619
    %v1621 = vpop.f32.mrf.mxu0
    %v1622 = vadd.f32 0.0, %v1621
    %v1623 = vpop.f32.mrf.mxu0
    %v1624 = vadd.f32 0.0, %v1623
    %v1625 = vpop.f32.mrf.mxu0
    %v1626 = vadd.f32 0.0, %v1625
    %1627 = vdwg.mxu0
    %v1636 = vunpack.c.l.b16 %v1478
    %v1637 = vunpack.c.h.b16 %v1478
    %v1638 = vunpack.c.l.b16 %v1479
    %v1639 = vunpack.c.h.b16 %v1479
    %v1640 = vunpack.c.l.b16 %v1480
    %v1641 = vunpack.c.h.b16 %v1480
    %v1642 = vunpack.c.l.b16 %v1481
    %v1643 = vunpack.c.h.b16 %v1481
    %v1644 = vunpack.c.l.b16 %v1482
    %v1645 = vunpack.c.h.b16 %v1482
    %v1646 = vunpack.c.l.b16 %v1483
    %v1647 = vunpack.c.h.b16 %v1483
    %v1648 = vunpack.c.l.b16 %v1484
    %v1649 = vunpack.c.h.b16 %v1484
    %v1650 = vunpack.c.l.b16 %v1485
    %v1651 = vunpack.c.h.b16 %v1485
    %v1652 = vpack.c.b16 %v1638, %v1636
    %v1653 = vpack.c.b16 %v1639, %v1637
    %v1654 = vpack.c.b16 %v1642, %v1640
    %v1655 = vpack.c.b16 %v1643, %v1641
    %v1656 = vpack.c.b16 %v1646, %v1644
    %v1657 = vpack.c.b16 %v1647, %v1645
    %v1658 = vpack.c.b16 %v1650, %v1648
    %v1659 = vpack.c.b16 %v1651, %v1649
    %v1669 = vsel %vm854, %v1470, 0
    %v1672 = vsel %vm854, %v1471, 0
    %v1675 = vsel %vm854, %v1472, 0
    %v1678 = vsel %vm854, %v1473, 0
    %1680 = vmatprep.subr.bf16.mxu0 0
    %1681 = vmatpush1.bf16.msra.mxu0 0
    %1682 = vmatprep.subr.bf16.mxu0 0
    %1683 = vmatpush1.bf16.msra.mxu0 0
    %1684 = vmatprep.subr.bf16.mxu0 0
    %1685 = vmatpush1.bf16.msra.mxu0 0
    %1686 = vmatprep.subr.bf16.mxu0 0
    %1687 = vmatpush1.bf16.msra.mxu0 0
    %1688 = vmatprep.subr.bf16.mxu0 %v1659
    %1689 = vmatpush1.bf16.msra.mxu0 %v1658
    %1690 = vmatprep.subr.bf16.mxu0 %v1657
    %1691 = vmatpush1.bf16.msra.mxu0 %v1656
    %1692 = vmatprep.subr.bf16.mxu0 %v1655
    %1693 = vmatpush1.bf16.msra.mxu0 %v1654
    %1694 = vmatprep.subr.bf16.mxu0 %v1653
    %1695 = vmatpush1.bf16.msra.mxu0 %v1652
    %1696 = vmatprep.subr.bf16.mxu0 0
    %1697 = vmatpush2.bf16.msra.mxu0 0
    %1698 = vmatprep.subr.bf16.mxu0 0
    %1699 = vmatpush2.bf16.msra.mxu0 0
    %1700 = vmatprep.subr.bf16.mxu0 0
    %1701 = vmatpush2.bf16.msra.mxu0 0
    %1702 = vmatprep.subr.bf16.mxu0 0
    %1703 = vmatpush2.bf16.msra.mxu0 0
    %1704 = vmatprep.subr.bf16.mxu0 0
    %1705 = vmatpush2.bf16.msra.mxu0 0
    %1706 = vmatprep.subr.bf16.mxu0 0
    %1707 = vmatpush2.bf16.msra.mxu0 0
    %1708 = vmatprep.subr.bf16.mxu0 0
    %1709 = vmatpush2.bf16.msra.mxu0 0
    %1710 = vmatprep.subr.bf16.mxu0 0
    %1711 = vmatpush2.bf16.msra.mxu0 0
    %1712 = vmatprep.mubr.bf16.mxu0 0
    %1713 = vmatmul.mubr.bf16.gmra.mxu0 %v1669
    %v1714 = vpop.f32.mrf.mxu0
    %v1715 = vadd.f32 %v1590, %v1714
    %v1716 = vpop.f32.mrf.mxu0
    %v1717 = vadd.f32 %v1592, %v1716
    %v1718 = vpop.f32.mrf.mxu0
    %v1719 = vadd.f32 %v1594, %v1718
    %v1720 = vpop.f32.mrf.mxu0
    %v1721 = vadd.f32 %v1596, %v1720
    %1722 = vmatprep.mubr.bf16.mxu0 0
    %1723 = vmatmul.mubr.bf16.gmra.mxu0 %v1672
    %v1724 = vpop.f32.mrf.mxu0
    %v1725 = vadd.f32 %v1600, %v1724
    %v1726 = vpop.f32.mrf.mxu0
    %v1727 = vadd.f32 %v1602, %v1726
    %v1728 = vpop.f32.mrf.mxu0
    %v1729 = vadd.f32 %v1604, %v1728
    %v1730 = vpop.f32.mrf.mxu0
    %v1731 = vadd.f32 %v1606, %v1730
    %1732 = vmatprep.mubr.bf16.mxu0 0
    %1733 = vmatmul.mubr.bf16.gmra.mxu0 %v1675
    %v1734 = vpop.f32.mrf.mxu0
    %v1735 = vadd.f32 %v1610, %v1734
    %v1736 = vpop.f32.mrf.mxu0
    %v1737 = vadd.f32 %v1612, %v1736
    %v1738 = vpop.f32.mrf.mxu0
    %v1739 = vadd.f32 %v1614, %v1738
    %v1740 = vpop.f32.mrf.mxu0
    %v1741 = vadd.f32 %v1616, %v1740
    %1742 = vmatprep.mubr.bf16.mxu0 0
    %1743 = vmatmul.mubr.bf16.gmra.mxu0 %v1678
    %v1744 = vpop.f32.mrf.mxu0
    %v1745 = vadd.f32 %v1620, %v1744
    %v1746 = vpop.f32.mrf.mxu0
    %v1747 = vadd.f32 %v1622, %v1746
    %v1748 = vpop.f32.mrf.mxu0
    %v1749 = vadd.f32 %v1624, %v1748
    %v1750 = vpop.f32.mrf.mxu0
    %v1751 = vadd.f32 %v1626, %v1750
    %1752 = vdwg.mxu0
    %v1754 = vlaneseq
    %v1755 = vshrl.u32 %v1754, 7
    %v1756 = vsub.s32 0, %v1755
    %v1757 = vrot.slane %v1502, %v1756
    %v1758 = vlaneseq
    %v1759 = vshrl.u32 %v1758, 7
    %v1760 = vsub.s32 1, %v1759
    %v1761 = vrot.slane %v1502, %v1760
    %v1764 = vadd.f32 %v1715, %v1757
    %v1765 = vadd.f32 %v1717, %v1761
    %v1766 = vadd.f32 %v1719, %v1757
    %v1767 = vadd.f32 %v1721, %v1761
    %v1768 = vadd.f32 %v1725, %v1757
    %v1769 = vadd.f32 %v1727, %v1761
    %v1770 = vadd.f32 %v1729, %v1757
    %v1771 = vadd.f32 %v1731, %v1761
    %v1772 = vadd.f32 %v1735, %v1757
    %v1773 = vadd.f32 %v1737, %v1761
    %v1774 = vadd.f32 %v1739, %v1757
    %v1775 = vadd.f32 %v1741, %v1761
    %v1776 = vadd.f32 %v1745, %v1757
    %v1777 = vadd.f32 %v1747, %v1761
    %v1778 = vadd.f32 %v1749, %v1757
    %v1779 = vadd.f32 %v1751, %v1761
    %v1788 = vunpack.c.l.b16 %v1494
    %v1789 = vunpack.c.h.b16 %v1494
    %v1790 = vunpack.c.l.b16 %v1495
    %v1791 = vunpack.c.h.b16 %v1495
    %v1792 = vunpack.c.l.b16 %v1496
    %v1793 = vunpack.c.h.b16 %v1496
    %v1794 = vunpack.c.l.b16 %v1497
    %v1795 = vunpack.c.h.b16 %v1497
    %v1796 = vunpack.c.l.b16 %v1498
    %v1797 = vunpack.c.h.b16 %v1498
    %v1798 = vunpack.c.l.b16 %v1499
    %v1799 = vunpack.c.h.b16 %v1499
    %v1800 = vunpack.c.l.b16 %v1500
    %v1801 = vunpack.c.h.b16 %v1500
    %v1802 = vunpack.c.l.b16 %v1501
    %v1803 = vunpack.c.h.b16 %v1501
    %v1804 = vpack.c.b16 %v1790, %v1788
    %v1805 = vpack.c.b16 %v1791, %v1789
    %v1806 = vpack.c.b16 %v1794, %v1792
    %v1807 = vpack.c.b16 %v1795, %v1793
    %v1808 = vpack.c.b16 %v1798, %v1796
    %v1809 = vpack.c.b16 %v1799, %v1797
    %v1810 = vpack.c.b16 %v1802, %v1800
    %v1811 = vpack.c.b16 %v1803, %v1801
    %1820 = vmatprep.subr.bf16.mxu0 0
    %1821 = vmatpush1.bf16.msra.mxu0 0
    %1822 = vmatprep.subr.bf16.mxu0 0
    %1823 = vmatpush1.bf16.msra.mxu0 0
    %1824 = vmatprep.subr.bf16.mxu0 0
    %1825 = vmatpush1.bf16.msra.mxu0 0
    %1826 = vmatprep.subr.bf16.mxu0 0
    %1827 = vmatpush1.bf16.msra.mxu0 0
    %1828 = vmatprep.subr.bf16.mxu0 %v1811
    %1829 = vmatpush1.bf16.msra.mxu0 %v1810
    %1830 = vmatprep.subr.bf16.mxu0 %v1809
    %1831 = vmatpush1.bf16.msra.mxu0 %v1808
    %1832 = vmatprep.subr.bf16.mxu0 %v1807
    %1833 = vmatpush1.bf16.msra.mxu0 %v1806
    %1834 = vmatprep.subr.bf16.mxu0 %v1805
    %1835 = vmatpush1.bf16.msra.mxu0 %v1804
    %1836 = vmatprep.subr.bf16.mxu0 0
    %1837 = vmatpush2.bf16.msra.mxu0 0
    %1838 = vmatprep.subr.bf16.mxu0 0
    %1839 = vmatpush2.bf16.msra.mxu0 0
    %1840 = vmatprep.subr.bf16.mxu0 0
    %1841 = vmatpush2.bf16.msra.mxu0 0
    %1842 = vmatprep.subr.bf16.mxu0 0
    %1843 = vmatpush2.bf16.msra.mxu0 0
    %1844 = vmatprep.subr.bf16.mxu0 0
    %1845 = vmatpush2.bf16.msra.mxu0 0
    %1846 = vmatprep.subr.bf16.mxu0 0
    %1847 = vmatpush2.bf16.msra.mxu0 0
    %1848 = vmatprep.subr.bf16.mxu0 0
    %1849 = vmatpush2.bf16.msra.mxu0 0
    %1850 = vmatprep.subr.bf16.mxu0 0
    %1851 = vmatpush2.bf16.msra.mxu0 0
    %1852 = vmatprep.mubr.bf16.mxu0 0
    %1853 = vmatmul.mubr.bf16.gmra.mxu0 %v856
    %v1854 = vpop.f32.mrf.mxu0
    %v1855 = vadd.f32 0.0, %v1854
    %v1856 = vpop.f32.mrf.mxu0
    %v1857 = vadd.f32 0.0, %v1856
    %v1858 = vpop.f32.mrf.mxu0
    %v1859 = vpop.f32.mrf.mxu0
    %1860 = vdwg.mxu0
    %v1861 = vadd.f32 %v1764, %v1855
    %v1862 = vadd.f32 %v1765, %v1857
    %v1863 = vxor.u32 %v1861, 2147483648
    %v1864 = vxor.u32 %v1862, 2147483648
    %v1865 = vmul.f32 %v1863, 1.442695
    %v1866 = vpow.pop %v1865
    %v1867 = vmul.f32 %v1864, 1.442695
    %v1868 = vpow.pop %v1867
    %v1869 = vadd.f32 %v1866, 1.0
    %v1870 = vadd.f32 %v1868, 1.0
    %v1871 = vrcp.pop %v1869
    %v1872 = vmul.f32 1.0, %v1871
    %v1873 = vrcp.pop %v1870
    %v1874 = vmul.f32 1.0, %v1873
    %v1875 = vtanh.pop %v1862
    %v1876 = vmul.f32 %v1872, 0.0
    %1878 = vrot.lane.b32.xlu0 %v1875, 64
    %v1879 = vpop.permute.xlu0 %1878
    %v1881 = vmul.f32 %v1872, %v1879
    %1883 = vrot.lane.b32.xlu0 %v1881, 64
    %v1884 = vpop.permute.xlu0 %1883
    %v1886 = vadd.f32 %v1876, %v1884
    %v1887 = vtanh.pop %v1886
    %1889 = vrot.lane.b32.xlu0 %v1887, 64
    %v1890 = vpop.permute.xlu0 %1889
    %v1892 = vmul.f32 %v1874, %v1890
    %v1893 = vpack.c.bf16 %v1892, %v1892
    %v1895 = vsel %vm854, %v1893, 0
    %1897 = vmatprep.subr.bf16.mxu0 0
    %1898 = vmatpush1.bf16.msra.mxu0 0
    %1899 = vmatprep.subr.bf16.mxu0 0
    %1900 = vmatpush1.bf16.msra.mxu0 0
    %1901 = vmatprep.subr.bf16.mxu0 0
    %1902 = vmatpush1.bf16.msra.mxu0 0
    %1903 = vmatprep.subr.bf16.mxu0 0
    %1904 = vmatpush1.bf16.msra.mxu0 0
    %1905 = vmatprep.subr.bf16.mxu0 %v1811
    %1906 = vmatpush1.bf16.msra.mxu0 %v1810
    %1907 = vmatprep.subr.bf16.mxu0 %v1809
    %1908 = vmatpush1.bf16.msra.mxu0 %v1808
    %1909 = vmatprep.subr.bf16.mxu0 %v1807
    %1910 = vmatpush1.bf16.msra.mxu0 %v1806
    %1911 = vmatprep.subr.bf16.mxu0 %v1805
    %1912 = vmatpush1.bf16.msra.mxu0 %v1804
    %1913 = vmatprep.subr.bf16.mxu0 0
    %1914 = vmatpush2.bf16.msra.mxu0 0
    %1915 = vmatprep.subr.bf16.mxu0 0
    %1916 = vmatpush2.bf16.msra.mxu0 0
    %1917 = vmatprep.subr.bf16.mxu0 0
    %1918 = vmatpush2.bf16.msra.mxu0 0
    %1919 = vmatprep.subr.bf16.mxu0 0
    %1920 = vmatpush2.bf16.msra.mxu0 0
    %1921 = vmatprep.subr.bf16.mxu0 0
    %1922 = vmatpush2.bf16.msra.mxu0 0
    %1923 = vmatprep.subr.bf16.mxu0 0
    %1924 = vmatpush2.bf16.msra.mxu0 0
    %1925 = vmatprep.subr.bf16.mxu0 0
    %1926 = vmatpush2.bf16.msra.mxu0 0
    %1927 = vmatprep.subr.bf16.mxu0 0
    %1928 = vmatpush2.bf16.msra.mxu0 0
    %1929 = vmatprep.mubr.bf16.mxu0 0
    %1930 = vmatmul.mubr.bf16.gmra.mxu0 %v1895
    %v1931 = vpop.f32.mrf.mxu0
    %v1932 = vadd.f32 0.0, %v1931
    %v1933 = vpop.f32.mrf.mxu0
    %v1934 = vadd.f32 0.0, %v1933
    %v1935 = vpop.f32.mrf.mxu0
    %v1936 = vpop.f32.mrf.mxu0
    %1937 = vdwg.mxu0
    %v1938 = vadd.f32 %v1766, %v1932
    %v1939 = vadd.f32 %v1767, %v1934
    %v1940 = vxor.u32 %v1938, 2147483648
    %v1941 = vxor.u32 %v1939, 2147483648
    %v1942 = vmul.f32 %v1940, 1.442695
    %v1943 = vpow.pop %v1942
    %v1944 = vmul.f32 %v1941, 1.442695
    %v1945 = vpow.pop %v1944
    %v1946 = vadd.f32 %v1943, 1.0
    %v1947 = vadd.f32 %v1945, 1.0
    %v1948 = vrcp.pop %v1946
    %v1949 = vmul.f32 1.0, %v1948
    %v1950 = vrcp.pop %v1947
    %v1951 = vmul.f32 1.0, %v1950
    %v1952 = vtanh.pop %v1939
    %v1953 = vmul.f32 %v1949, %v1886
    %1955 = vrot.lane.b32.xlu0 %v1952, 64
    %v1956 = vpop.permute.xlu0 %1955
    %v1958 = vmul.f32 %v1949, %v1956
    %1960 = vrot.lane.b32.xlu0 %v1958, 64
    %v1961 = vpop.permute.xlu0 %1960
    %v1963 = vadd.f32 %v1953, %v1961
    %v1964 = vtanh.pop %v1963
    %1966 = vrot.lane.b32.xlu0 %v1964, 64
    %v1967 = vpop.permute.xlu0 %1966
    %v1969 = vmul.f32 %v1951, %v1967
    %v1970 = vpack.c.bf16 %v1969, %v1969
    %v1972 = vsel %vm854, %v1970, 0
    %1974 = vmatprep.subr.bf16.mxu0 0
    %1975 = vmatpush1.bf16.msra.mxu0 0
    %1976 = vmatprep.subr.bf16.mxu0 0
    %1977 = vmatpush1.bf16.msra.mxu0 0
    %1978 = vmatprep.subr.bf16.mxu0 0
    %1979 = vmatpush1.bf16.msra.mxu0 0
    %1980 = vmatprep.subr.bf16.mxu0 0
    %1981 = vmatpush1.bf16.msra.mxu0 0
    %1982 = vmatprep.subr.bf16.mxu0 %v1811
    %1983 = vmatpush1.bf16.msra.mxu0 %v1810
    %1984 = vmatprep.subr.bf16.mxu0 %v1809
    %1985 = vmatpush1.bf16.msra.mxu0 %v1808
    %1986 = vmatprep.subr.bf16.mxu0 %v1807
    %1987 = vmatpush1.bf16.msra.mxu0 %v1806
    %1988 = vmatprep.subr.bf16.mxu0 %v1805
    %1989 = vmatpush1.bf16.msra.mxu0 %v1804
    %1990 = vmatprep.subr.bf16.mxu0 0
    %1991 = vmatpush2.bf16.msra.mxu0 0
    %1992 = vmatprep.subr.bf16.mxu0 0
    %1993 = vmatpush2.bf16.msra.mxu0 0
    %1994 = vmatprep.subr.bf16.mxu0 0
    %1995 = vmatpush2.bf16.msra.mxu0 0
    %1996 = vmatprep.subr.bf16.mxu0 0
    %1997 = vmatpush2.bf16.msra.mxu0 0
    %1998 = vmatprep.subr.bf16.mxu0 0
    %1999 = vmatpush2.bf16.msra.mxu0 0
    %2000 = vmatprep.subr.bf16.mxu0 0
    %2001 = vmatpush2.bf16.msra.mxu0 0
    %2002 = vmatprep.subr.bf16.mxu0 0
    %2003 = vmatpush2.bf16.msra.mxu0 0
    %2004 = vmatprep.subr.bf16.mxu0 0
    %2005 = vmatpush2.bf16.msra.mxu0 0
    %2006 = vmatprep.mubr.bf16.mxu0 0
    %2007 = vmatmul.mubr.bf16.gmra.mxu0 %v1972
    %v2008 = vpop.f32.mrf.mxu0
    %v2009 = vadd.f32 0.0, %v2008
    %v2010 = vpop.f32.mrf.mxu0
    %v2011 = vadd.f32 0.0, %v2010
    %v2012 = vpop.f32.mrf.mxu0
    %v2013 = vpop.f32.mrf.mxu0
    %2014 = vdwg.mxu0
    %v2015 = vadd.f32 %v1768, %v2009
    %v2016 = vadd.f32 %v1769, %v2011
    %v2017 = vxor.u32 %v2015, 2147483648
    %v2018 = vxor.u32 %v2016, 2147483648
    %v2019 = vmul.f32 %v2017, 1.442695
    %v2020 = vpow.pop %v2019
    %v2021 = vmul.f32 %v2018, 1.442695
    %v2022 = vpow.pop %v2021
    %v2023 = vadd.f32 %v2020, 1.0
    %v2024 = vadd.f32 %v2022, 1.0
    %v2025 = vrcp.pop %v2023
    %v2026 = vmul.f32 1.0, %v2025
    %v2027 = vrcp.pop %v2024
    %v2028 = vmul.f32 1.0, %v2027
    %v2029 = vtanh.pop %v2016
    %v2030 = vmul.f32 %v2026, %v1963
    %2032 = vrot.lane.b32.xlu0 %v2029, 64
    %v2033 = vpop.permute.xlu0 %2032
    %v2035 = vmul.f32 %v2026, %v2033
    %2037 = vrot.lane.b32.xlu0 %v2035, 64
    %v2038 = vpop.permute.xlu0 %2037
    %v2040 = vadd.f32 %v2030, %v2038
    %v2041 = vtanh.pop %v2040
    %2043 = vrot.lane.b32.xlu0 %v2041, 64
    %v2044 = vpop.permute.xlu0 %2043
    %v2046 = vmul.f32 %v2028, %v2044
    %v2047 = vpack.c.bf16 %v2046, %v2046
    %v2049 = vsel %vm854, %v2047, 0
    %2051 = vmatprep.subr.bf16.mxu0 0
    %2052 = vmatpush1.bf16.msra.mxu0 0
    %2053 = vmatprep.subr.bf16.mxu0 0
    %2054 = vmatpush1.bf16.msra.mxu0 0
    %2055 = vmatprep.subr.bf16.mxu0 0
    %2056 = vmatpush1.bf16.msra.mxu0 0
    %2057 = vmatprep.subr.bf16.mxu0 0
    %2058 = vmatpush1.bf16.msra.mxu0 0
    %2059 = vmatprep.subr.bf16.mxu0 %v1811
    %2060 = vmatpush1.bf16.msra.mxu0 %v1810
    %2061 = vmatprep.subr.bf16.mxu0 %v1809
    %2062 = vmatpush1.bf16.msra.mxu0 %v1808
    %2063 = vmatprep.subr.bf16.mxu0 %v1807
    %2064 = vmatpush1.bf16.msra.mxu0 %v1806
    %2065 = vmatprep.subr.bf16.mxu0 %v1805
    %2066 = vmatpush1.bf16.msra.mxu0 %v1804
    %2067 = vmatprep.subr.bf16.mxu0 0
    %2068 = vmatpush2.bf16.msra.mxu0 0
    %2069 = vmatprep.subr.bf16.mxu0 0
    %2070 = vmatpush2.bf16.msra.mxu0 0
    %2071 = vmatprep.subr.bf16.mxu0 0
    %2072 = vmatpush2.bf16.msra.mxu0 0
    %2073 = vmatprep.subr.bf16.mxu0 0
    %2074 = vmatpush2.bf16.msra.mxu0 0
    %2075 = vmatprep.subr.bf16.mxu0 0
    %2076 = vmatpush2.bf16.msra.mxu0 0
    %2077 = vmatprep.subr.bf16.mxu0 0
    %2078 = vmatpush2.bf16.msra.mxu0 0
    %2079 = vmatprep.subr.bf16.mxu0 0
    %2080 = vmatpush2.bf16.msra.mxu0 0
    %2081 = vmatprep.subr.bf16.mxu0 0
    %2082 = vmatpush2.bf16.msra.mxu0 0
    %2083 = vmatprep.mubr.bf16.mxu0 0
    %2084 = vmatmul.mubr.bf16.gmra.mxu0 %v2049
    %v2085 = vpop.f32.mrf.mxu0
    %v2086 = vadd.f32 0.0, %v2085
    %v2087 = vpop.f32.mrf.mxu0
    %v2088 = vadd.f32 0.0, %v2087
    %v2089 = vpop.f32.mrf.mxu0
    %v2090 = vpop.f32.mrf.mxu0
    %2091 = vdwg.mxu0
    %v2092 = vadd.f32 %v1770, %v2086
    %v2093 = vadd.f32 %v1771, %v2088
    %v2094 = vxor.u32 %v2092, 2147483648
    %v2095 = vxor.u32 %v2093, 2147483648
    %v2096 = vmul.f32 %v2094, 1.442695
    %v2097 = vpow.pop %v2096
    %v2098 = vmul.f32 %v2095, 1.442695
    %v2099 = vpow.pop %v2098
    %v2100 = vadd.f32 %v2097, 1.0
    %v2101 = vadd.f32 %v2099, 1.0
    %v2102 = vrcp.pop %v2100
    %v2103 = vmul.f32 1.0, %v2102
    %v2104 = vrcp.pop %v2101
    %v2105 = vmul.f32 1.0, %v2104
    %v2106 = vtanh.pop %v2093
    %v2107 = vmul.f32 %v2103, %v2040
    %2109 = vrot.lane.b32.xlu0 %v2106, 64
    %v2110 = vpop.permute.xlu0 %2109
    %v2112 = vmul.f32 %v2103, %v2110
    %2114 = vrot.lane.b32.xlu0 %v2112, 64
    %v2115 = vpop.permute.xlu0 %2114
    %v2117 = vadd.f32 %v2107, %v2115
    %v2118 = vtanh.pop %v2117
    %2120 = vrot.lane.b32.xlu0 %v2118, 64
    %v2121 = vpop.permute.xlu0 %2120
    %v2123 = vmul.f32 %v2105, %v2121
    %v2124 = vpack.c.bf16 %v2123, %v2123
    %v2126 = vsel %vm854, %v2124, 0
    %2128 = vmatprep.subr.bf16.mxu0 0
    %2129 = vmatpush1.bf16.msra.mxu0 0
    %2130 = vmatprep.subr.bf16.mxu0 0
    %2131 = vmatpush1.bf16.msra.mxu0 0
    %2132 = vmatprep.subr.bf16.mxu0 0
    %2133 = vmatpush1.bf16.msra.mxu0 0
    %2134 = vmatprep.subr.bf16.mxu0 0
    %2135 = vmatpush1.bf16.msra.mxu0 0
    %2136 = vmatprep.subr.bf16.mxu0 %v1811
    %2137 = vmatpush1.bf16.msra.mxu0 %v1810
    %2138 = vmatprep.subr.bf16.mxu0 %v1809
    %2139 = vmatpush1.bf16.msra.mxu0 %v1808
    %2140 = vmatprep.subr.bf16.mxu0 %v1807
    %2141 = vmatpush1.bf16.msra.mxu0 %v1806
    %2142 = vmatprep.subr.bf16.mxu0 %v1805
    %2143 = vmatpush1.bf16.msra.mxu0 %v1804
    %2144 = vmatprep.subr.bf16.mxu0 0
    %2145 = vmatpush2.bf16.msra.mxu0 0
    %2146 = vmatprep.subr.bf16.mxu0 0
    %2147 = vmatpush2.bf16.msra.mxu0 0
    %2148 = vmatprep.subr.bf16.mxu0 0
    %2149 = vmatpush2.bf16.msra.mxu0 0
    %2150 = vmatprep.subr.bf16.mxu0 0
    %2151 = vmatpush2.bf16.msra.mxu0 0
    %2152 = vmatprep.subr.bf16.mxu0 0
    %2153 = vmatpush2.bf16.msra.mxu0 0
    %2154 = vmatprep.subr.bf16.mxu0 0
    %2155 = vmatpush2.bf16.msra.mxu0 0
    %2156 = vmatprep.subr.bf16.mxu0 0
    %2157 = vmatpush2.bf16.msra.mxu0 0
    %2158 = vmatprep.subr.bf16.mxu0 0
    %2159 = vmatpush2.bf16.msra.mxu0 0
    %2160 = vmatprep.mubr.bf16.mxu0 0
    %2161 = vmatmul.mubr.bf16.gmra.mxu0 %v2126
    %v2162 = vpop.f32.mrf.mxu0
    %v2163 = vadd.f32 0.0, %v2162
    %v2164 = vpop.f32.mrf.mxu0
    %v2165 = vadd.f32 0.0, %v2164
    %v2166 = vpop.f32.mrf.mxu0
    %v2167 = vpop.f32.mrf.mxu0
    %2168 = vdwg.mxu0
    %v2169 = vadd.f32 %v1772, %v2163
    %v2170 = vadd.f32 %v1773, %v2165
    %v2171 = vxor.u32 %v2169, 2147483648
    %v2172 = vxor.u32 %v2170, 2147483648
    %v2173 = vmul.f32 %v2171, 1.442695
    %v2174 = vpow.pop %v2173
    %v2175 = vmul.f32 %v2172, 1.442695
    %v2176 = vpow.pop %v2175
    %v2177 = vadd.f32 %v2174, 1.0
    %v2178 = vadd.f32 %v2176, 1.0
    %v2179 = vrcp.pop %v2177
    %v2180 = vmul.f32 1.0, %v2179
    %v2181 = vrcp.pop %v2178
    %v2182 = vmul.f32 1.0, %v2181
    %v2183 = vtanh.pop %v2170
    %v2184 = vmul.f32 %v2180, %v2117
    %2186 = vrot.lane.b32.xlu0 %v2183, 64
    %v2187 = vpop.permute.xlu0 %2186
    %v2189 = vmul.f32 %v2180, %v2187
    %2191 = vrot.lane.b32.xlu0 %v2189, 64
    %v2192 = vpop.permute.xlu0 %2191
    %v2194 = vadd.f32 %v2184, %v2192
    %v2195 = vtanh.pop %v2194
    %2197 = vrot.lane.b32.xlu0 %v2195, 64
    %v2198 = vpop.permute.xlu0 %2197
    %v2200 = vmul.f32 %v2182, %v2198
    %v2201 = vpack.c.bf16 %v2200, %v2200
    %v2203 = vsel %vm854, %v2201, 0
    %2205 = vmatprep.subr.bf16.mxu0 0
    %2206 = vmatpush1.bf16.msra.mxu0 0
    %2207 = vmatprep.subr.bf16.mxu0 0
    %2208 = vmatpush1.bf16.msra.mxu0 0
    %2209 = vmatprep.subr.bf16.mxu0 0
    %2210 = vmatpush1.bf16.msra.mxu0 0
    %2211 = vmatprep.subr.bf16.mxu0 0
    %2212 = vmatpush1.bf16.msra.mxu0 0
    %2213 = vmatprep.subr.bf16.mxu0 %v1811
    %2214 = vmatpush1.bf16.msra.mxu0 %v1810
    %2215 = vmatprep.subr.bf16.mxu0 %v1809
    %2216 = vmatpush1.bf16.msra.mxu0 %v1808
    %2217 = vmatprep.subr.bf16.mxu0 %v1807
    %2218 = vmatpush1.bf16.msra.mxu0 %v1806
    %2219 = vmatprep.subr.bf16.mxu0 %v1805
    %2220 = vmatpush1.bf16.msra.mxu0 %v1804
    %2221 = vmatprep.subr.bf16.mxu0 0
    %2222 = vmatpush2.bf16.msra.mxu0 0
    %2223 = vmatprep.subr.bf16.mxu0 0
    %2224 = vmatpush2.bf16.msra.mxu0 0
    %2225 = vmatprep.subr.bf16.mxu0 0
    %2226 = vmatpush2.bf16.msra.mxu0 0
    %2227 = vmatprep.subr.bf16.mxu0 0
    %2228 = vmatpush2.bf16.msra.mxu0 0
    %2229 = vmatprep.subr.bf16.mxu0 0
    %2230 = vmatpush2.bf16.msra.mxu0 0
    %2231 = vmatprep.subr.bf16.mxu0 0
    %2232 = vmatpush2.bf16.msra.mxu0 0
    %2233 = vmatprep.subr.bf16.mxu0 0
    %2234 = vmatpush2.bf16.msra.mxu0 0
    %2235 = vmatprep.subr.bf16.mxu0 0
    %2236 = vmatpush2.bf16.msra.mxu0 0
    %2237 = vmatprep.mubr.bf16.mxu0 0
    %2238 = vmatmul.mubr.bf16.gmra.mxu0 %v2203
    %v2239 = vpop.f32.mrf.mxu0
    %v2240 = vadd.f32 0.0, %v2239
    %v2241 = vpop.f32.mrf.mxu0
    %v2242 = vadd.f32 0.0, %v2241
    %v2243 = vpop.f32.mrf.mxu0
    %v2244 = vpop.f32.mrf.mxu0
    %2245 = vdwg.mxu0
    %v2246 = vadd.f32 %v1774, %v2240
    %v2247 = vadd.f32 %v1775, %v2242
    %v2248 = vxor.u32 %v2246, 2147483648
    %v2249 = vxor.u32 %v2247, 2147483648
    %v2250 = vmul.f32 %v2248, 1.442695
    %v2251 = vpow.pop %v2250
    %v2252 = vmul.f32 %v2249, 1.442695
    %v2253 = vpow.pop %v2252
    %v2254 = vadd.f32 %v2251, 1.0
    %v2255 = vadd.f32 %v2253, 1.0
    %v2256 = vrcp.pop %v2254
    %v2257 = vmul.f32 1.0, %v2256
    %v2258 = vrcp.pop %v2255
    %v2259 = vmul.f32 1.0, %v2258
    %v2260 = vtanh.pop %v2247
    %v2261 = vmul.f32 %v2257, %v2194
    %2263 = vrot.lane.b32.xlu0 %v2260, 64
    %v2264 = vpop.permute.xlu0 %2263
    %v2266 = vmul.f32 %v2257, %v2264
    %2268 = vrot.lane.b32.xlu0 %v2266, 64
    %v2269 = vpop.permute.xlu0 %2268
    %v2271 = vadd.f32 %v2261, %v2269
    %v2272 = vtanh.pop %v2271
    %2274 = vrot.lane.b32.xlu0 %v2272, 64
    %v2275 = vpop.permute.xlu0 %2274
    %v2277 = vmul.f32 %v2259, %v2275
    %v2278 = vpack.c.bf16 %v2277, %v2277
    %v2280 = vsel %vm854, %v2278, 0
    %2282 = vmatprep.subr.bf16.mxu0 0
    %2283 = vmatpush1.bf16.msra.mxu0 0
    %2284 = vmatprep.subr.bf16.mxu0 0
    %2285 = vmatpush1.bf16.msra.mxu0 0
    %2286 = vmatprep.subr.bf16.mxu0 0
    %2287 = vmatpush1.bf16.msra.mxu0 0
    %2288 = vmatprep.subr.bf16.mxu0 0
    %2289 = vmatpush1.bf16.msra.mxu0 0
    %2290 = vmatprep.subr.bf16.mxu0 %v1811
    %2291 = vmatpush1.bf16.msra.mxu0 %v1810
    %2292 = vmatprep.subr.bf16.mxu0 %v1809
    %2293 = vmatpush1.bf16.msra.mxu0 %v1808
    %2294 = vmatprep.subr.bf16.mxu0 %v1807
    %2295 = vmatpush1.bf16.msra.mxu0 %v1806
    %2296 = vmatprep.subr.bf16.mxu0 %v1805
    %2297 = vmatpush1.bf16.msra.mxu0 %v1804
    %2298 = vmatprep.subr.bf16.mxu0 0
    %2299 = vmatpush2.bf16.msra.mxu0 0
    %2300 = vmatprep.subr.bf16.mxu0 0
    %2301 = vmatpush2.bf16.msra.mxu0 0
    %2302 = vmatprep.subr.bf16.mxu0 0
    %2303 = vmatpush2.bf16.msra.mxu0 0
    %2304 = vmatprep.subr.bf16.mxu0 0
    %2305 = vmatpush2.bf16.msra.mxu0 0
    %2306 = vmatprep.subr.bf16.mxu0 0
    %2307 = vmatpush2.bf16.msra.mxu0 0
    %2308 = vmatprep.subr.bf16.mxu0 0
    %2309 = vmatpush2.bf16.msra.mxu0 0
    %2310 = vmatprep.subr.bf16.mxu0 0
    %2311 = vmatpush2.bf16.msra.mxu0 0
    %2312 = vmatprep.subr.bf16.mxu0 0
    %2313 = vmatpush2.bf16.msra.mxu0 0
    %2314 = vmatprep.mubr.bf16.mxu0 0
    %2315 = vmatmul.mubr.bf16.gmra.mxu0 %v2280
    %v2316 = vpop.f32.mrf.mxu0
    %v2317 = vadd.f32 0.0, %v2316
    %v2318 = vpop.f32.mrf.mxu0
    %v2319 = vadd.f32 0.0, %v2318
    %v2320 = vpop.f32.mrf.mxu0
    %v2321 = vpop.f32.mrf.mxu0
    %2322 = vdwg.mxu0
    %v2323 = vadd.f32 %v1776, %v2317
    %v2324 = vadd.f32 %v1777, %v2319
    %v2325 = vxor.u32 %v2323, 2147483648
    %v2326 = vxor.u32 %v2324, 2147483648
    %v2327 = vmul.f32 %v2325, 1.442695
    %v2328 = vpow.pop %v2327
    %v2329 = vmul.f32 %v2326, 1.442695
    %v2330 = vpow.pop %v2329
    %v2331 = vadd.f32 %v2328, 1.0
    %v2332 = vadd.f32 %v2330, 1.0
    %v2333 = vrcp.pop %v2331
    %v2334 = vmul.f32 1.0, %v2333
    %v2335 = vrcp.pop %v2332
    %v2336 = vmul.f32 1.0, %v2335
    %v2337 = vtanh.pop %v2324
    %v2338 = vmul.f32 %v2334, %v2271
    %2340 = vrot.lane.b32.xlu0 %v2337, 64
    %v2341 = vpop.permute.xlu0 %2340
    %v2343 = vmul.f32 %v2334, %v2341
    %2345 = vrot.lane.b32.xlu0 %v2343, 64
    %v2346 = vpop.permute.xlu0 %2345
    %v2348 = vadd.f32 %v2338, %v2346
    %v2349 = vtanh.pop %v2348
    %2351 = vrot.lane.b32.xlu0 %v2349, 64
    %v2352 = vpop.permute.xlu0 %2351
    %v2354 = vmul.f32 %v2336, %v2352
    %v2355 = vpack.c.bf16 %v2354, %v2354
    %v2357 = vsel %vm854, %v2355, 0
    %2359 = vmatprep.subr.bf16.mxu0 0
    %2360 = vmatpush1.bf16.msra.mxu0 0
    %2361 = vmatprep.subr.bf16.mxu0 0
    %2362 = vmatpush1.bf16.msra.mxu0 0
    %2363 = vmatprep.subr.bf16.mxu0 0
    %2364 = vmatpush1.bf16.msra.mxu0 0
    %2365 = vmatprep.subr.bf16.mxu0 0
    %2366 = vmatpush1.bf16.msra.mxu0 0
    %2367 = vmatprep.subr.bf16.mxu0 %v1811
    %2368 = vmatpush1.bf16.msra.mxu0 %v1810
    %2369 = vmatprep.subr.bf16.mxu0 %v1809
    %2370 = vmatpush1.bf16.msra.mxu0 %v1808
    %2371 = vmatprep.subr.bf16.mxu0 %v1807
    %2372 = vmatpush1.bf16.msra.mxu0 %v1806
    %2373 = vmatprep.subr.bf16.mxu0 %v1805
    %2374 = vmatpush1.bf16.msra.mxu0 %v1804
    %2375 = vmatprep.subr.bf16.mxu0 0
    %2376 = vmatpush2.bf16.msra.mxu0 0
    %2377 = vmatprep.subr.bf16.mxu0 0
    %2378 = vmatpush2.bf16.msra.mxu0 0
    %2379 = vmatprep.subr.bf16.mxu0 0
    %2380 = vmatpush2.bf16.msra.mxu0 0
    %2381 = vmatprep.subr.bf16.mxu0 0
    %2382 = vmatpush2.bf16.msra.mxu0 0
    %2383 = vmatprep.subr.bf16.mxu0 0
    %2384 = vmatpush2.bf16.msra.mxu0 0
    %2385 = vmatprep.subr.bf16.mxu0 0
    %2386 = vmatpush2.bf16.msra.mxu0 0
    %2387 = vmatprep.subr.bf16.mxu0 0
    %2388 = vmatpush2.bf16.msra.mxu0 0
    %2389 = vmatprep.subr.bf16.mxu0 0
    %2390 = vmatpush2.bf16.msra.mxu0 0
    %2391 = vmatprep.mubr.bf16.mxu0 0
    %2392 = vmatmul.mubr.bf16.gmra.mxu0 %v2357
    %v2393 = vpop.f32.mrf.mxu0
    %v2394 = vadd.f32 0.0, %v2393
    %v2395 = vpop.f32.mrf.mxu0
    %v2396 = vadd.f32 0.0, %v2395
    %v2397 = vpop.f32.mrf.mxu0
    %v2398 = vpop.f32.mrf.mxu0
    %2399 = vdwg.mxu0
    %v2400 = vadd.f32 %v1778, %v2394
    %v2401 = vadd.f32 %v1779, %v2396
    %v2402 = vxor.u32 %v2400, 2147483648
    %v2403 = vxor.u32 %v2401, 2147483648
    %v2404 = vmul.f32 %v2402, 1.442695
    %v2405 = vpow.pop %v2404
    %v2406 = vmul.f32 %v2403, 1.442695
    %v2407 = vpow.pop %v2406
    %v2408 = vadd.f32 %v2405, 1.0
    %v2409 = vadd.f32 %v2407, 1.0
    %v2410 = vrcp.pop %v2408
    %v2411 = vmul.f32 1.0, %v2410
    %v2412 = vrcp.pop %v2409
    %v2413 = vmul.f32 1.0, %v2412
    %v2414 = vtanh.pop %v2401
    %v2415 = vmul.f32 %v2411, %v2348
    %2417 = vrot.lane.b32.xlu0 %v2414, 64
    %v2418 = vpop.permute.xlu0 %2417
    %v2420 = vmul.f32 %v2411, %v2418
    %2422 = vrot.lane.b32.xlu0 %v2420, 64
    %v2423 = vpop.permute.xlu0 %2422
    %v2425 = vadd.f32 %v2415, %v2423
    %v2426 = vtanh.pop %v2425
    %2428 = vrot.lane.b32.xlu0 %v2426, 64
    %v2429 = vpop.permute.xlu0 %2428
    %v2431 = vmul.f32 %v2413, %v2429
    %vm2432 = vcmask 261120
    %v2433 = vsel %vm2432, %v1892, %v2431
    %v2434 = vsel %vm2432, %v1969, %v2354
    %v2435 = vsel %vm2432, %v2046, %v2277
    %v2436 = vsel %vm2432, %v2123, %v2200
    %v2437 = vsel %vm2432, %v2200, %v2123
    %v2438 = vsel %vm2432, %v2277, %v2046
    %v2439 = vsel %vm2432, %v2354, %v1969
    %v2440 = vsel %vm2432, %v2431, %v1892
    %v2441 = vpack.c.bf16 %v2434, %v2433
    %v2442 = vpack.c.bf16 %v2436, %v2435
    %v2443 = vpack.c.bf16 %v2438, %v2437
    %v2444 = vpack.c.bf16 %v2440, %v2439
    %v2445 = vld [vmem:[%s13] sm:$0xf]
    %v2446 = vld [vmem:[%s13 + $0x4] sm:$0xf]
    %v2447 = vld [vmem:[%s13 + $0x8] sm:$0xf]
    %v2448 = vld [vmem:[%s13 + $0xc] sm:$0xf]
    %v2449 = vld [vmem:[%s13 + $0x10] sm:$0xf]
    %v2450 = vld [vmem:[%s13 + $0x14] sm:$0xf]
    %v2451 = vld [vmem:[%s13 + $0x18] sm:$0xf]
    %v2452 = vld [vmem:[%s13 + $0x1c] sm:$0xf]
    %v2453 = vld [vmem:[%s14] sm:$0x1]
    %v2455 = vlaneseq
    %v2456 = vshrl.u32 %v2455, 7
    %v2457 = vsub.s32 0, %v2456
    %v2458 = vrot.slane %v2453, %v2457
    %v2468 = vunpack.c.l.b16 %v2445
    %v2469 = vunpack.c.l.b16 %v2446
    %v2470 = vunpack.c.l.b16 %v2447
    %v2471 = vunpack.c.l.b16 %v2448
    %v2472 = vunpack.c.l.b16 %v2449
    %v2473 = vunpack.c.l.b16 %v2450
    %v2474 = vunpack.c.l.b16 %v2451
    %v2475 = vunpack.c.l.b16 %v2452
    %v2476 = vpack.c.b16 %v2469, %v2468
    %v2477 = vpack.c.b16 %v2471, %v2470
    %v2478 = vpack.c.b16 %v2473, %v2472
    %v2479 = vpack.c.b16 %v2475, %v2474
    %v2485 = vsel %vm854, %v2441, 0
    %v2488 = vsel %vm854, %v2442, 0
    %v2491 = vsel %vm854, %v2443, 0
    %v2494 = vsel %vm854, %v2444, 0
    %2496 = vmatprep.subr.bf16.mxu0 0
    %2497 = vmatpush1.bf16.msra.mxu0 0
    %2498 = vmatprep.subr.bf16.mxu0 0
    %2499 = vmatpush1.bf16.msra.mxu0 0
    %2500 = vmatprep.subr.bf16.mxu0 0
    %2501 = vmatpush1.bf16.msra.mxu0 0
    %2502 = vmatprep.subr.bf16.mxu0 0
    %2503 = vmatpush1.bf16.msra.mxu0 0
    %2504 = vmatprep.subr.bf16.mxu0 0
    %2505 = vmatpush1.bf16.msra.mxu0 %v2479
    %2506 = vmatprep.subr.bf16.mxu0 0
    %2507 = vmatpush1.bf16.msra.mxu0 %v2478
    %2508 = vmatprep.subr.bf16.mxu0 0
    %2509 = vmatpush1.bf16.msra.mxu0 %v2477
    %2510 = vmatprep.subr.bf16.mxu0 0
    %2511 = vmatpush1.bf16.msra.mxu0 %v2476
    %2512 = vmatprep.subr.bf16.mxu0 0
    %2513 = vmatpush2.bf16.msra.mxu0 0
    %2514 = vmatprep.subr.bf16.mxu0 0
    %2515 = vmatpush2.bf16.msra.mxu0 0
    %2516 = vmatprep.subr.bf16.mxu0 0
    %2517 = vmatpush2.bf16.msra.mxu0 0
    %2518 = vmatprep.subr.bf16.mxu0 0
    %2519 = vmatpush2.bf16.msra.mxu0 0
    %2520 = vmatprep.subr.bf16.mxu0 0
    %2521 = vmatpush2.bf16.msra.mxu0 0
    %2522 = vmatprep.subr.bf16.mxu0 0
    %2523 = vmatpush2.bf16.msra.mxu0 0
    %2524 = vmatprep.subr.bf16.mxu0 0
    %2525 = vmatpush2.bf16.msra.mxu0 0
    %2526 = vmatprep.subr.bf16.mxu0 0
    %2527 = vmatpush2.bf16.msra.mxu0 0
    %2528 = vmatprep.mubr.bf16.mxu0 0
    %2529 = vmatmul.mubr.bf16.gmra.mxu0 %v2485
    %v2530 = vpop.f32.mrf.mxu0
    %v2531 = vadd.f32 %v2458, %v2530
    %v2532 = vpop.f32.mrf.mxu0
    %v2533 = vpop.f32.mrf.mxu0
    %v2534 = vadd.f32 %v2458, %v2533
    %v2535 = vpop.f32.mrf.mxu0
    %2536 = vmatprep.mubr.bf16.mxu0 0
    %2537 = vmatmul.mubr.bf16.gmra.mxu0 %v2488
    %v2538 = vpop.f32.mrf.mxu0
    %v2539 = vadd.f32 %v2458, %v2538
    %v2540 = vpop.f32.mrf.mxu0
    %v2541 = vpop.f32.mrf.mxu0
    %v2542 = vadd.f32 %v2458, %v2541
    %v2543 = vpop.f32.mrf.mxu0
    %2544 = vmatprep.mubr.bf16.mxu0 0
    %2545 = vmatmul.mubr.bf16.gmra.mxu0 %v2491
    %v2546 = vpop.f32.mrf.mxu0
    %v2547 = vadd.f32 %v2458, %v2546
    %v2548 = vpop.f32.mrf.mxu0
    %v2549 = vpop.f32.mrf.mxu0
    %v2550 = vadd.f32 %v2458, %v2549
    %v2551 = vpop.f32.mrf.mxu0
    %2552 = vmatprep.mubr.bf16.mxu0 0
    %2553 = vmatmul.mubr.bf16.gmra.mxu0 %v2494
    %v2554 = vpop.f32.mrf.mxu0
    %v2555 = vadd.f32 %v2458, %v2554
    %v2556 = vpop.f32.mrf.mxu0
    %v2557 = vpop.f32.mrf.mxu0
    %v2558 = vadd.f32 %v2458, %v2557
    %v2559 = vpop.f32.mrf.mxu0
    %2560 = vdwg.mxu0
    %v2561 = vtanh.pop %v2531
    %v2562 = vtanh.pop %v2534
    %v2563 = vtanh.pop %v2539
    %v2564 = vtanh.pop %v2542
    %v2565 = vtanh.pop %v2547
    %v2566 = vtanh.pop %v2550
    %v2567 = vtanh.pop %v2555
    %v2568 = vtanh.pop %v2558
    %v2569 = vld [vmem:[%s15] sm:$0x1]
    %v2571 = vlaneseq
    %v2572 = vshrl.u32 %v2571, 7
    %v2573 = vsub.s32 0, %v2572
    %v2574 = vrot.slane %v2569, %v2573
    %v2576 = vmul.f32 %v2561, %v2574
    %v2577 = vmul.f32 %v2562, %v2574
    %v2578 = vmul.f32 %v2563, %v2574
    %v2579 = vmul.f32 %v2564, %v2574
    %v2580 = vmul.f32 %v2565, %v2574
    %v2581 = vmul.f32 %v2566, %v2574
    %v2582 = vmul.f32 %v2567, %v2574
    %v2583 = vmul.f32 %v2568, %v2574
    %v2584 = vsel %vm2432, %v2576, 0.0
    %2585 = vadd.xlane.f32.xlu0 %v2584
    %v2586 = vpop.xlane.xlu0 %2585
    %v2587 = vsel %vm2432, %v2577, 0.0
    %2588 = vadd.xlane.f32.xlu0 %v2587
    %v2589 = vpop.xlane.xlu0 %2588
    %v2590 = vsel %vm2432, %v2578, 0.0
    %2591 = vadd.xlane.f32.xlu0 %v2590
    %v2592 = vpop.xlane.xlu0 %2591
    %v2593 = vsel %vm2432, %v2579, 0.0
    %2594 = vadd.xlane.f32.xlu0 %v2593
    %v2595 = vpop.xlane.xlu0 %2594
    %v2596 = vsel %vm2432, %v2580, 0.0
    %2597 = vadd.xlane.f32.xlu0 %v2596
    %v2598 = vpop.xlane.xlu0 %2597
    %v2599 = vsel %vm2432, %v2581, 0.0
    %2600 = vadd.xlane.f32.xlu0 %v2599
    %v2601 = vpop.xlane.xlu0 %2600
    %v2602 = vsel %vm2432, %v2582, 0.0
    %2603 = vadd.xlane.f32.xlu0 %v2602
    %v2604 = vpop.xlane.xlu0 %2603
    %v2605 = vsel %vm2432, %v2583, 0.0
    %2606 = vadd.xlane.f32.xlu0 %v2605
    %v2607 = vpop.xlane.xlu0 %2606
    %v2608 = vld [vmem:[#allocation2] sm:$0x1]
    %v2610 = vlaneseq
    %v2611 = vshrl.u32 %v2610, 7
    %v2612 = vsub.s32 0, %v2611
    %v2613 = vrot.slane %v2608, %v2612
    %v2615 = vadd.f32 %v2586, %v2613
    %v2616 = vadd.f32 %v2589, %v2613
    %v2617 = vadd.f32 %v2592, %v2613
    %v2618 = vadd.f32 %v2595, %v2613
    %v2619 = vadd.f32 %v2598, %v2613
    %v2620 = vadd.f32 %v2601, %v2613
    %v2621 = vadd.f32 %v2604, %v2613
    %v2622 = vadd.f32 %v2607, %v2613
    %v2623 = vmax.f32 %v2615, %v2616
    %v2624 = vmax.f32 %v2623, %v2617
    %v2625 = vmax.f32 %v2624, %v2618
    %v2626 = vmax.f32 %v2625, %v2619
    %v2627 = vmax.f32 %v2626, %v2620
    %v2628 = vmax.f32 %v2627, %v2621
    %v2629 = vmax.f32 %v2628, %v2622
    %v2630 = vsub.f32 %v2615, %v2629
    %v2631 = vmul.f32 %v2630, 1.442695
    %v2632 = vpow.pop %v2631
    %v2633 = vsub.f32 %v2616, %v2629
    %v2634 = vmul.f32 %v2633, 1.442695
    %v2635 = vpow.pop %v2634
    %v2636 = vsub.f32 %v2617, %v2629
    %v2637 = vmul.f32 %v2636, 1.442695
    %v2638 = vpow.pop %v2637
    %v2639 = vsub.f32 %v2618, %v2629
    %v2640 = vmul.f32 %v2639, 1.442695
    %v2641 = vpow.pop %v2640
    %v2642 = vsub.f32 %v2619, %v2629
    %v2643 = vmul.f32 %v2642, 1.442695
    %v2644 = vpow.pop %v2643
    %v2645 = vsub.f32 %v2620, %v2629
    %v2646 = vmul.f32 %v2645, 1.442695
    %v2647 = vpow.pop %v2646
    %v2648 = vsub.f32 %v2621, %v2629
    %v2649 = vmul.f32 %v2648, 1.442695
    %v2650 = vpow.pop %v2649
    %v2651 = vsub.f32 %v2622, %v2629
    %v2652 = vmul.f32 %v2651, 1.442695
    %v2653 = vpow.pop %v2652
    %v2654 = vadd.f32 %v2632, %v2635
    %v2655 = vadd.f32 %v2654, %v2638
    %v2656 = vadd.f32 %v2655, %v2641
    %v2657 = vadd.f32 %v2656, %v2644
    %v2658 = vadd.f32 %v2657, %v2647
    %v2659 = vadd.f32 %v2658, %v2650
    %v2660 = vadd.f32 %v2659, %v2653
    %v2661 = vrcp.pop %v2660
    %v2662 = vmul.f32 %v2632, %v2661
    %2664 = vset.pattern.permute.xlu0 0
    %2665 = vperm.xlu0 %2664, %v2662
    %v2666 = vpop.permute.xlu0 %2665
    %v2668 = vmul.f32 %v2666, %v2433
    %v2669 = vmul.f32 %v2635, %v2661
    %2671 = vset.pattern.permute.xlu0 0
    %2672 = vperm.xlu0 %2671, %v2669
    %v2673 = vpop.permute.xlu0 %2672
    %v2675 = vmul.f32 %v2673, %v2434
    %v2676 = vadd.f32 %v2668, %v2675
    %v2677 = vmul.f32 %v2638, %v2661
    %2679 = vset.pattern.permute.xlu0 0
    %2680 = vperm.xlu0 %2679, %v2677
    %v2681 = vpop.permute.xlu0 %2680
    %v2683 = vmul.f32 %v2681, %v2435
    %v2684 = vadd.f32 %v2676, %v2683
    %v2685 = vmul.f32 %v2641, %v2661
    %2687 = vset.pattern.permute.xlu0 0
    %2688 = vperm.xlu0 %2687, %v2685
    %v2689 = vpop.permute.xlu0 %2688
    %v2691 = vmul.f32 %v2689, %v2436
    %v2692 = vadd.f32 %v2684, %v2691
    %v2693 = vmul.f32 %v2644, %v2661
    %2695 = vset.pattern.permute.xlu0 0
    %2696 = vperm.xlu0 %2695, %v2693
    %v2697 = vpop.permute.xlu0 %2696
    %v2699 = vmul.f32 %v2697, %v2437
    %v2700 = vadd.f32 %v2692, %v2699
    %v2701 = vmul.f32 %v2647, %v2661
    %2703 = vset.pattern.permute.xlu0 0
    %2704 = vperm.xlu0 %2703, %v2701
    %v2705 = vpop.permute.xlu0 %2704
    %v2707 = vmul.f32 %v2705, %v2438
    %v2708 = vadd.f32 %v2700, %v2707
    %v2709 = vmul.f32 %v2650, %v2661
    %2711 = vset.pattern.permute.xlu0 0
    %2712 = vperm.xlu0 %2711, %v2709
    %v2713 = vpop.permute.xlu0 %2712
    %v2715 = vmul.f32 %v2713, %v2439
    %v2716 = vadd.f32 %v2708, %v2715
    %v2717 = vmul.f32 %v2653, %v2661
    %2719 = vset.pattern.permute.xlu0 0
    %2720 = vperm.xlu0 %2719, %v2717
    %v2721 = vpop.permute.xlu0 %2720
    %v2723 = vmul.f32 %v2721, %v2440
    %v2724 = vadd.f32 %v2716, %v2723
    %v2725 = vpack.c.bf16 %v2724, %v2724
    %v2726 = vld [vmem:[%s17] sm:$0xf]
    %v2727 = vld [vmem:[%s17 + $0x4] sm:$0xf]
    %v2728 = vld [vmem:[%s17 + $0x8] sm:$0xf]
    %v2729 = vld [vmem:[%s17 + $0xc] sm:$0xf]
    %v2730 = vld [vmem:[%s17 + $0x10] sm:$0xf]
    %v2731 = vld [vmem:[%s17 + $0x14] sm:$0xf]
    %v2732 = vld [vmem:[%s17 + $0x18] sm:$0xf]
    %v2733 = vld [vmem:[%s17 + $0x1c] sm:$0xf]
    %v2734 = vld [vmem:[%s18] sm:$0x1]
    %v2736 = vlaneseq
    %v2737 = vshrl.u32 %v2736, 7
    %v2738 = vsub.s32 0, %v2737
    %v2739 = vrot.slane %v2734, %v2738
    %v2749 = vunpack.c.l.b16 %v2726
    %v2750 = vunpack.c.l.b16 %v2727
    %v2751 = vunpack.c.l.b16 %v2728
    %v2752 = vunpack.c.l.b16 %v2729
    %v2753 = vunpack.c.l.b16 %v2730
    %v2754 = vunpack.c.l.b16 %v2731
    %v2755 = vunpack.c.l.b16 %v2732
    %v2756 = vunpack.c.l.b16 %v2733
    %v2757 = vpack.c.b16 %v2750, %v2749
    %v2758 = vpack.c.b16 %v2752, %v2751
    %v2759 = vpack.c.b16 %v2754, %v2753
    %v2760 = vpack.c.b16 %v2756, %v2755
    %v2766 = vsel %vm854, %v2725, 0
    %2768 = vmatprep.subr.bf16.mxu0 0
    %2769 = vmatpush1.bf16.msra.mxu0 0
    %2770 = vmatprep.subr.bf16.mxu0 0
    %2771 = vmatpush1.bf16.msra.mxu0 0
    %2772 = vmatprep.subr.bf16.mxu0 0
    %2773 = vmatpush1.bf16.msra.mxu0 0
    %2774 = vmatprep.subr.bf16.mxu0 0
    %2775 = vmatpush1.bf16.msra.mxu0 0
    %2776 = vmatprep.subr.bf16.mxu0 0
    %2777 = vmatpush1.bf16.msra.mxu0 %v2760
    %2778 = vmatprep.subr.bf16.mxu0 0
    %2779 = vmatpush1.bf16.msra.mxu0 %v2759
    %2780 = vmatprep.subr.bf16.mxu0 0
    %2781 = vmatpush1.bf16.msra.mxu0 %v2758
    %2782 = vmatprep.subr.bf16.mxu0 0
    %2783 = vmatpush1.bf16.msra.mxu0 %v2757
    %2784 = vmatprep.subr.bf16.mxu0 0
    %2785 = vmatpush2.bf16.msra.mxu0 0
    %2786 = vmatprep.subr.bf16.mxu0 0
    %2787 = vmatpush2.bf16.msra.mxu0 0
    %2788 = vmatprep.subr.bf16.mxu0 0
    %2789 = vmatpush2.bf16.msra.mxu0 0
    %2790 = vmatprep.subr.bf16.mxu0 0
    %2791 = vmatpush2.bf16.msra.mxu0 0
    %2792 = vmatprep.subr.bf16.mxu0 0
    %2793 = vmatpush2.bf16.msra.mxu0 0
    %2794 = vmatprep.subr.bf16.mxu0 0
    %2795 = vmatpush2.bf16.msra.mxu0 0
    %2796 = vmatprep.subr.bf16.mxu0 0
    %2797 = vmatpush2.bf16.msra.mxu0 0
    %2798 = vmatprep.subr.bf16.mxu0 0
    %2799 = vmatpush2.bf16.msra.mxu0 0
    %2800 = vmatprep.mubr.bf16.mxu0 0
    %2801 = vmatmul.mubr.bf16.gmra.mxu0 %v2766
    %v2802 = vpop.f32.mrf.mxu0
    %v2803 = vadd.f32 %v2739, %v2802
    %v2804 = vpop.f32.mrf.mxu0
    %v2805 = vpop.f32.mrf.mxu0
    %v2806 = vpop.f32.mrf.mxu0
    %2807 = vdwg.mxu0
    %v2808 = vmax.f32 %v2803, 0.0
    %v2809 = vpack.c.bf16 %v2808, %v2808
    %v2810 = vld [vmem:[%s19] sm:$0xf]
    %v2811 = vld [vmem:[%s19 + $0x4] sm:$0xf]
    %v2812 = vld [vmem:[%s19 + $0x8] sm:$0xf]
    %v2813 = vld [vmem:[%s19 + $0xc] sm:$0xf]
    %v2814 = vld [vmem:[%s20] sm:$0x1]
    %v2816 = vlaneseq
    %v2817 = vshrl.u32 %v2816, 7
    %v2818 = vsub.s32 0, %v2817
    %v2819 = vrot.slane %v2814, %v2818
    %v2825 = vunpack.c.l.b16 %v2810
    %v2826 = vunpack.c.l.b16 %v2811
    %v2827 = vunpack.c.l.b16 %v2812
    %v2828 = vunpack.c.l.b16 %v2813
    %v2829 = vpack.c.b16 %v2826, %v2825
    %v2830 = vpack.c.b16 %v2828, %v2827
    %v2834 = vsel %vm2432, %v2809, 0
    %2836 = vmatprep.subr.bf16.mxu0 0
    %2837 = vmatpush1.bf16.msra.mxu0 0
    %2838 = vmatprep.subr.bf16.mxu0 0
    %2839 = vmatpush1.bf16.msra.mxu0 0
    %2840 = vmatprep.subr.bf16.mxu0 0
    %2841 = vmatpush1.bf16.msra.mxu0 0
    %2842 = vmatprep.subr.bf16.mxu0 0
    %2843 = vmatpush1.bf16.msra.mxu0 0
    %2844 = vmatprep.subr.bf16.mxu0 0
    %2845 = vmatpush1.bf16.msra.mxu0 0
    %2846 = vmatprep.subr.bf16.mxu0 0
    %2847 = vmatpush1.bf16.msra.mxu0 0
    %2848 = vmatprep.subr.bf16.mxu0 0
    %2849 = vmatpush1.bf16.msra.mxu0 %v2830
    %2850 = vmatprep.subr.bf16.mxu0 0
    %2851 = vmatpush1.bf16.msra.mxu0 %v2829
    %2852 = vmatprep.subr.bf16.mxu0 0
    %2853 = vmatpush2.bf16.msra.mxu0 0
    %2854 = vmatprep.subr.bf16.mxu0 0
    %2855 = vmatpush2.bf16.msra.mxu0 0
    %2856 = vmatprep.subr.bf16.mxu0 0
    %2857 = vmatpush2.bf16.msra.mxu0 0
    %2858 = vmatprep.subr.bf16.mxu0 0
    %2859 = vmatpush2.bf16.msra.mxu0 0
    %2860 = vmatprep.subr.bf16.mxu0 0
    %2861 = vmatpush2.bf16.msra.mxu0 0
    %2862 = vmatprep.subr.bf16.mxu0 0
    %2863 = vmatpush2.bf16.msra.mxu0 0
    %2864 = vmatprep.subr.bf16.mxu0 0
    %2865 = vmatpush2.bf16.msra.mxu0 0
    %2866 = vmatprep.subr.bf16.mxu0 0
    %2867 = vmatpush2.bf16.msra.mxu0 0
    %2868 = vmatprep.mubr.bf16.mxu0 0
    %2869 = vmatmul.mubr.bf16.gmra.mxu0 %v2834
    %v2870 = vpop.f32.mrf.mxu0
    %v2871 = vadd.f32 %v2819, %v2870
    %v2872 = vpop.f32.mrf.mxu0
    %v2873 = vpop.f32.mrf.mxu0
    %v2874 = vpop.f32.mrf.mxu0
    %2875 = vdwg.mxu0
    %v2876 = vmax.f32 %v2871, 0.0
    %v2877 = vpack.c.bf16 %v2876, %v2876
    %v2878 = vld [vmem:[%s21] sm:$0xf]
    %v2879 = vld [vmem:[%s21 + $0x4] sm:$0xf]
    %v2880 = vld [vmem:[%s22] sm:$0x1]
    %v2882 = vlaneseq
    %v2883 = vshrl.u32 %v2882, 7
    %v2884 = vsub.s32 0, %v2883
    %v2885 = vrot.slane %v2880, %v2884
    %v2889 = vunpack.c.l.b16 %v2878
    %v2890 = vunpack.c.l.b16 %v2879
    %v2891 = vpack.c.b16 %v2890, %v2889
    %v2894 = vsel %vm606, %v2877, 0
    %2896 = vmatprep.subr.bf16.mxu0 0
    %2897 = vmatpush1.bf16.msra.mxu0 0
    %2898 = vmatprep.subr.bf16.mxu0 0
    %2899 = vmatpush1.bf16.msra.mxu0 0
    %2900 = vmatprep.subr.bf16.mxu0 0
    %2901 = vmatpush1.bf16.msra.mxu0 0
    %2902 = vmatprep.subr.bf16.mxu0 0
    %2903 = vmatpush1.bf16.msra.mxu0 0
    %2904 = vmatprep.subr.bf16.mxu0 0
    %2905 = vmatpush1.bf16.msra.mxu0 0
    %2906 = vmatprep.subr.bf16.mxu0 0
    %2907 = vmatpush1.bf16.msra.mxu0 0
    %2908 = vmatprep.subr.bf16.mxu0 0
    %2909 = vmatpush1.bf16.msra.mxu0 0
    %2910 = vmatprep.subr.bf16.mxu0 0
    %2911 = vmatpush1.bf16.msra.mxu0 %v2891
    %2912 = vmatprep.subr.bf16.mxu0 0
    %2913 = vmatpush2.bf16.msra.mxu0 0
    %2914 = vmatprep.subr.bf16.mxu0 0
    %2915 = vmatpush2.bf16.msra.mxu0 0
    %2916 = vmatprep.subr.bf16.mxu0 0
    %2917 = vmatpush2.bf16.msra.mxu0 0
    %2918 = vmatprep.subr.bf16.mxu0 0
    %2919 = vmatpush2.bf16.msra.mxu0 0
    %2920 = vmatprep.subr.bf16.mxu0 0
    %2921 = vmatpush2.bf16.msra.mxu0 0
    %2922 = vmatprep.subr.bf16.mxu0 0
    %2923 = vmatpush2.bf16.msra.mxu0 0
    %2924 = vmatprep.subr.bf16.mxu0 0
    %2925 = vmatpush2.bf16.msra.mxu0 0
    %2926 = vmatprep.subr.bf16.mxu0 0
    %2927 = vmatpush2.bf16.msra.mxu0 0
    %2928 = vmatprep.mubr.bf16.mxu0 0
    %2929 = vmatmul.mubr.bf16.gmra.mxu0 %v2894
    %v2930 = vpop.f32.mrf.mxu0
    %v2931 = vadd.f32 %v2885, %v2930
    %v2932 = vpop.f32.mrf.mxu0
    %v2933 = vpop.f32.mrf.mxu0
    %v2934 = vpop.f32.mrf.mxu0
    %2935 = vdwg.mxu0
    %vm2936 = vcmask 25600
    %2937 = vst.msk [vmem:[#allocation12] sm:$0x3] %vm2936, %v2931
    // Predicated region
    $region114: #{forward.1} parent=1 // pred_check
      _
    $region115: #{forward.1} parent=1 // pred_check_branch
      %2939 = sbr.rel (0) target = $region117
    $region116: #{forward.1} parent=1 // pred_region
      %s2941 = ssub.s32 32, 32
      %2942 = vsyncadd [#allocation5], %s2941
      %s2944 = sshll.u32 [#allocation12], 4
      %s2945 = int_to_ptr.vmem [resolvable:$true] %s2944
      %2947 = dma.vmem_to_hbm [thread:$0]  %s2945, 32, %s23, [#allocation5]
    $region117: #{forward.1} parent=1 // pred_fallthru
      _
    // Predicated region
    $region118: #{forward.1} parent=1 // pred_check
      _
    $region119: #{forward.1} parent=1 // pred_check_branch
      %2949 = sbr.rel (0) target = $region121
    $region120: #{forward.1} parent=1 // pred_region
      %2950 = dma.done [#allocation5], 32
    $region121: #{forward.1} parent=1 // pred_fallthru
      _
    %2951 = vsyncpa [#allocation4], 1
    %2952 = vsyncpa [#allocation7], 1
    %2953 = vsyncpa [#allocation10], 1
    %2954 = vsyncpa [#allocation5], 1

</llo_original>
